<compile_context>
chip_gen: v7x
topology: tpu7x:2x2x1
jax: 0.10.0
libtpu: 0.0.40
codegen_flags: <defaults>
</compile_context>

<pallas_src>
import jax
import jax.numpy as jnp
from jax.experimental import pallas as pl
from jax.experimental.pallas import tpu as pltpu


LANE = 128


def _round_up(x, m):
    return ((x + m - 1) // m) * m


def _dragnn_lstm_kernel(
    x_ref,        # (T, Ip)        padded inputs
    wx_ref,       # (Ip, 3*Hp)     fused [x2i | x2o | x2c], zero-padded
    b_ref,        # (1, 3*Hp)      fused [bi  | bo  | bc ], zero-padded
    wh_ref,       # (Hp, 3*Hp)     fused [h2i | h2o | h2c], zero-padded
    wci_ref,      # (Hp, Hp)       c2i, zero-padded
    wco_ref,      # (Hp, Hp)       c2o, zero-padded
    h_out_ref,    # (T, Hp)        output hidden slab
    c_out_ref,    # (T, Hp)        output cell slab
    xproj_ref,    # (T, 3*Hp)      VMEM scratch: precomputed input projections
):
    T = x_ref.shape[0]
    Hp = h_out_ref.shape[1]

    # ---- Phase 1 (non-recurrent): batched input projection + biases ------
    # One MXU matmul with M = T instead of T matmuls with M = 1.
    xproj_ref[...] = (
        jnp.dot(x_ref[...], wx_ref[...], preferred_element_type=jnp.float32)
        + b_ref[...]
    )

    # Weights stay resident in vregs/VMEM across the whole recurrence.
    wh = wh_ref[...]
    wci = wci_ref[...]
    wco = wco_ref[...]

    # ---- Phase 2 (recurrent): sequential scan over time -------------------
    def step(t, carry):
        prev_h, prev_c = carry                              # (1, Hp) each, f32

        xp = xproj_ref[pl.ds(t, 1), :]                      # (1, 3*Hp)
        hp = jnp.dot(prev_h, wh, preferred_element_type=jnp.float32)
        pre = xp + hp                                       # (1, 3*Hp)

        pre_i = pre[:, 0:Hp]
        pre_o = pre[:, Hp:2 * Hp]
        pre_c = pre[:, 2 * Hp:3 * Hp]

        # input gate (coupled forget gate = 1 - input gate)
        a_i = pre_i + jnp.dot(prev_c, wci, preferred_element_type=jnp.float32)
        i_it = jax.nn.sigmoid(a_i)
        i_ft = 1.0 - i_it

        # candidate cell
        i_wt = jnp.tanh(pre_c)
        ct = i_it * i_wt + i_ft * prev_c

        # output gate uses the *new* cell ct (matches the PyTorch code)
        a_o = pre_o + jnp.dot(ct, wco, preferred_element_type=jnp.float32)
        i_ot = jax.nn.sigmoid(a_o)
        ht = i_ot * jnp.tanh(ct)

        # Lane-dense (Hp = multiple of 128) row stores into the VMEM-resident
        # output slabs; HBM writeback happens once, after the kernel.
        h_out_ref[pl.ds(t, 1), :] = ht
        c_out_ref[pl.ds(t, 1), :] = ct
        return ht, ct

    h0 = jnp.zeros((1, Hp), jnp.float32)
    c0 = jnp.zeros((1, Hp), jnp.float32)
    jax.lax.fori_loop(0, T, step, (h0, c0), unroll=(T <= 32))


def dragnn_lstm_forward(input_tensors, params):
    """input_tensors: (T, input_dim) f32.  params: dict of the 11 weights.

    Returns (hidden, cell), each (T, 1, hidden_dim) f32 — the stacked
    equivalents of the python lists the PyTorch module returns.
    """
    T, input_dim = input_tensors.shape
    hidden_dim = params["x2i"].shape[1]

    Ip = _round_up(input_dim, LANE)
    Hp = _round_up(hidden_dim, LANE)

    def pad2(a, rows, cols):
        a = a.astype(jnp.float32)
        return jnp.pad(a, ((0, rows - a.shape[0]), (0, cols - a.shape[1])))

    # Fused / padded parameter packing (gate order: [i, o, c]).
    wx = jnp.concatenate(
        [pad2(params["x2i"], Ip, Hp),
         pad2(params["x2o"], Ip, Hp),
         pad2(params["x2c"], Ip, Hp)], axis=1)             # (Ip, 3*Hp)
    b = jnp.concatenate(
        [pad2(params["bi"], 1, Hp),
         pad2(params["bo"], 1, Hp),
         pad2(params["bc"], 1, Hp)], axis=1)               # (1, 3*Hp)
    wh = jnp.concatenate(
        [pad2(params["h2i"], Hp, Hp),
         pad2(params["h2o"], Hp, Hp),
         pad2(params["h2c"], Hp, Hp)], axis=1)             # (Hp, 3*Hp)
    wci = pad2(params["c2i"], Hp, Hp)                      # (Hp, Hp)
    wco = pad2(params["c2o"], Hp, Hp)                      # (Hp, Hp)

    x_pad = pad2(input_tensors, T, Ip)                     # (T, Ip)

    # Single grid step: everything resident in VMEM; no per-timestep DMAs.
    grid_spec = pltpu.PrefetchScalarGridSpec(
        num_scalar_prefetch=0,
        grid=(1,),
        in_specs=[
            pl.BlockSpec((T, Ip), lambda i: (0, 0)),
            pl.BlockSpec((Ip, 3 * Hp), lambda i: (0, 0)),
            pl.BlockSpec((1, 3 * Hp), lambda i: (0, 0)),
            pl.BlockSpec((Hp, 3 * Hp), lambda i: (0, 0)),
            pl.BlockSpec((Hp, Hp), lambda i: (0, 0)),
            pl.BlockSpec((Hp, Hp), lambda i: (0, 0)),
        ],
        out_specs=[
            pl.BlockSpec((T, Hp), lambda i: (0, 0)),
            pl.BlockSpec((T, Hp), lambda i: (0, 0)),
        ],
        scratch_shapes=[
            pltpu.VMEM((T, 3 * Hp), jnp.float32),          # x-projection buffer
        ],
    )

    out_shape = (
        jax.ShapeDtypeStruct((T, Hp), jnp.float32),
        jax.ShapeDtypeStruct((T, Hp), jnp.float32),
    )

    h_pad, c_pad = pl.pallas_call(
        _dragnn_lstm_kernel,
        grid_spec=grid_spec,
        out_shape=out_shape,
        compiler_params=pltpu.CompilerParams(
            # Recurrence carried in the in-kernel loop; the (trivial) grid axis
            # must stay sequential and never be sharded across cores.
            dimension_semantics=("arbitrary",),
        ),
    )(x_pad, wx, b, wh, wci, wco)

    hidden = h_pad[:, :hidden_dim].reshape(T, 1, hidden_dim)
    cell = c_pad[:, :hidden_dim].reshape(T, 1, hidden_dim)
    return hidden, cell


def _reference_forward(input_tensors, params):
    """Pure-JAX reference mirroring the PyTorch forward exactly."""
    hidden_dim = params["x2i"].shape[1]

    def step(carry, x_row):
        h, c = carry
        x = x_row.reshape(1, -1)
        i_ait = (x @ params["x2i"] + h @ params["h2i"]
                 + c @ params["c2i"] + params["bi"])
        i_it = jax.nn.sigmoid(i_ait)
        i_ft = 1.0 - i_it
        i_awt = x @ params["x2c"] + h @ params["h2c"] + params["bc"]
        i_wt = jnp.tanh(i_awt)
        ct = i_it * i_wt + i_ft * c
        i_aot = (x @ params["x2o"] + ct @ params["c2o"]
                 + h @ params["h2o"] + params["bo"])
        i_ot = jax.nn.sigmoid(i_aot)
        ht = i_ot * jnp.tanh(ct)
        return (ht, ct), (ht, ct)

    h0 = jnp.zeros((1, hidden_dim), jnp.float32)
    c0 = jnp.zeros((1, hidden_dim), jnp.float32)
    _, (hs, cs) = jax.lax.scan(step, (h0, c0), input_tensors)
    return hs, cs  # (T, 1, H) each


def make_params(key, input_dim, hidden_dim):
    names_shapes = {
        "x2i": (input_dim, hidden_dim),
        "h2i": (hidden_dim, hidden_dim),
        "c2i": (hidden_dim, hidden_dim),
        "bi": (1, hidden_dim),
        "x2o": (input_dim, hidden_dim),
        "h2o": (hidden_dim, hidden_dim),
        "c2o": (hidden_dim, hidden_dim),
        "bo": (1, hidden_dim),
        "x2c": (input_dim, hidden_dim),
        "h2c": (hidden_dim, hidden_dim),
        "bc": (1, hidden_dim),
    }
    params = {}
    keys = jax.random.split(key, len(names_shapes))
    # torch.randn -> standard normal; scaled down slightly to keep tanh/sigmoid
    # in a numerically interesting range.
    for k, (name, shape) in zip(keys, names_shapes.items()):
        params[name] = 0.1 * jax.random.normal(k, shape, dtype=jnp.float32)
    return params


if __name__ == "__main__":
    input_dim = 32
    hidden_dim = 32
    seq_len = 8

    key = jax.random.PRNGKey(0)
    k_params, k_x = jax.random.split(key)
    params = make_params(k_params, input_dim, hidden_dim)
    input_tensors = jax.random.normal(k_x, (seq_len, input_dim), dtype=jnp.float32)

    hidden, cell = dragnn_lstm_forward(input_tensors, params)
    hidden = jax.block_until_ready(hidden)
    cell = jax.block_until_ready(cell)

    ref_h, ref_c = _reference_forward(input_tensors, params)
    assert jnp.allclose(hidden, ref_h, atol=1e-4, rtol=1e-4), "hidden mismatch"
    assert jnp.allclose(cell, ref_c, atol=1e-4, rtol=1e-4), "cell mismatch"

    print("KERNEL_OK")
</pallas_src>

<mosaic_0001>
module attributes {stable_mosaic.version = 11 : i64} {
  func.func @_dragnn_lstm_kernel(%arg0: i32, %arg1: memref<8x128xf32, #tpu.memory_space<vmem>>, %arg2: memref<128x384xf32, #tpu.memory_space<vmem>>, %arg3: memref<1x384xf32, #tpu.memory_space<vmem>>, %arg4: memref<128x384xf32, #tpu.memory_space<vmem>>, %arg5: memref<128x128xf32, #tpu.memory_space<vmem>>, %arg6: memref<128x128xf32, #tpu.memory_space<vmem>>, %arg7: memref<8x128xf32, #tpu.memory_space<vmem>>, %arg8: memref<8x128xf32, #tpu.memory_space<vmem>>, %arg9: memref<8x384xf32, #tpu.memory_space<vmem>>) attributes {dimension_semantics = [#tpu.dimension_semantics<arbitrary>], iteration_bounds = array<i64: 1>, scalar_prefetch = 0 : i64, scratch_operands = 1 : i64, tpu.core_type = #tpu.core_type<tc>, window_params = [{pipeline_mode = #tpu.pipeline_mode<synchronous>, transform_indices = @transform_0, window_bounds = array<i64: 8, 128>}, {pipeline_mode = #tpu.pipeline_mode<synchronous>, transform_indices = @transform_1, window_bounds = array<i64: 128, 384>}, {pipeline_mode = #tpu.pipeline_mode<synchronous>, transform_indices = @transform_2, window_bounds = array<i64: 1, 384>}, {pipeline_mode = #tpu.pipeline_mode<synchronous>, transform_indices = @transform_3, window_bounds = array<i64: 128, 384>}, {pipeline_mode = #tpu.pipeline_mode<synchronous>, transform_indices = @transform_4, window_bounds = array<i64: 128, 128>}, {pipeline_mode = #tpu.pipeline_mode<synchronous>, transform_indices = @transform_5, window_bounds = array<i64: 128, 128>}, {pipeline_mode = #tpu.pipeline_mode<synchronous>, transform_indices = @transform_6, window_bounds = array<i64: 8, 128>}, {pipeline_mode = #tpu.pipeline_mode<synchronous>, transform_indices = @transform_7, window_bounds = array<i64: 8, 128>}]} {
    %c0 = arith.constant 0 : index
    %c0_0 = arith.constant 0 : index
    %0 = vector.load %arg1[%c0, %c0_0] : memref<8x128xf32, #tpu.memory_space<vmem>>, vector<8x128xf32>
    %c0_1 = arith.constant 0 : index
    %c0_2 = arith.constant 0 : index
    %1 = vector.load %arg2[%c0_1, %c0_2] : memref<128x384xf32, #tpu.memory_space<vmem>>, vector<128x384xf32>
    %cst = arith.constant dense<0.000000e+00> : vector<8x384xf32>
    %2 = tpu.matmul %0, %1, %cst {dimension_numbers = #tpu.dot_dimension_numbers<[1], [0], [0], [1], [0, 0, 1, 1], [], []>} : vector<8x128xf32>, vector<128x384xf32>, vector<8x384xf32> -> vector<8x384xf32>
    %c0_3 = arith.constant 0 : index
    %c0_4 = arith.constant 0 : index
    %3 = vector.load %arg3[%c0_3, %c0_4] : memref<1x384xf32, #tpu.memory_space<vmem>>, vector<1x384xf32>
    %4 = vector.broadcast %3 : vector<1x384xf32> to vector<8x384xf32>
    %5 = arith.addf %2, %4 : vector<8x384xf32>
    %c0_5 = arith.constant 0 : index
    %c0_6 = arith.constant 0 : index
    %6 = vector.load %arg9[%c0_5, %c0_6] : memref<8x384xf32, #tpu.memory_space<vmem>>, vector<8x384xf32>
    tpu.vector_store %arg9[%c0_5, %c0_6], %5 {strides = array<i32>} : memref<8x384xf32, #tpu.memory_space<vmem>>, vector<8x384xf32>,
    %c0_7 = arith.constant 0 : index
    %c0_8 = arith.constant 0 : index
    %7 = vector.load %arg4[%c0_7, %c0_8] : memref<128x384xf32, #tpu.memory_space<vmem>>, vector<128x384xf32>
    %c0_9 = arith.constant 0 : index
    %c0_10 = arith.constant 0 : index
    %8 = vector.load %arg5[%c0_9, %c0_10] : memref<128x128xf32, #tpu.memory_space<vmem>>, vector<128x128xf32>
    %c0_11 = arith.constant 0 : index
    %c0_12 = arith.constant 0 : index
    %9 = vector.load %arg6[%c0_11, %c0_12] : memref<128x128xf32, #tpu.memory_space<vmem>>, vector<128x128xf32>
    %cst_13 = arith.constant 0.000000e+00 : f32
    %10 = vector.broadcast %cst_13 : f32 to vector<1x128xf32>
    %cst_14 = arith.constant 0.000000e+00 : f32
    %11 = vector.broadcast %cst_14 : f32 to vector<1x128xf32>
    %c0_i32 = arith.constant 0 : i32
    %12 = arith.index_cast %c0_i32 : i32 to index
    %c0_15 = arith.constant 0 : index
    %13 = vector.load %arg9[%12, %c0_15] : memref<8x384xf32, #tpu.memory_space<vmem>>, vector<1x384xf32>
    %cst_16 = arith.constant dense<0.000000e+00> : vector<1x384xf32>
    %14 = tpu.matmul %10, %7, %cst_16 {dimension_numbers = #tpu.dot_dimension_numbers<[1], [0], [0], [1], [0, 0, 1, 1], [], []>} : vector<1x128xf32>, vector<128x384xf32>, vector<1x384xf32> -> vector<1x384xf32>
    %15 = arith.addf %13, %14 : vector<1x384xf32>
    %16 = vector.extract_strided_slice %15 {offsets = [0, 0], sizes = [1, 128], strides = [1, 1]} : vector<1x384xf32> to vector<1x128xf32>
    %17 = vector.extract_strided_slice %15 {offsets = [0, 128], sizes = [1, 128], strides = [1, 1]} : vector<1x384xf32> to vector<1x128xf32>
    %18 = vector.extract_strided_slice %15 {offsets = [0, 256], sizes = [1, 128], strides = [1, 1]} : vector<1x384xf32> to vector<1x128xf32>
    %cst_17 = arith.constant dense<0.000000e+00> : vector<1x128xf32>
    %19 = tpu.matmul %11, %8, %cst_17 {dimension_numbers = #tpu.dot_dimension_numbers<[1], [0], [0], [1], [0, 0, 1, 1], [], []>} : vector<1x128xf32>, vector<128x128xf32>, vector<1x128xf32> -> vector<1x128xf32>
    %20 = arith.addf %16, %19 : vector<1x128xf32>
    %21 = arith.negf %20 : vector<1x128xf32>
    %22 = math.exp %21 : vector<1x128xf32>
    %cst_18 = arith.constant 1.000000e+00 : f32
    %23 = vector.broadcast %cst_18 : f32 to vector<1x128xf32>
    %24 = arith.addf %23, %22 : vector<1x128xf32>
    %25 = arith.divf %23, %24 : vector<1x128xf32>
    %cst_19 = arith.constant 1.000000e+00 : f32
    %26 = vector.broadcast %cst_19 : f32 to vector<1x128xf32>
    %27 = arith.subf %26, %25 : vector<1x128xf32>
    %28 = math.tanh %18 : vector<1x128xf32>
    %29 = arith.mulf %25, %28 : vector<1x128xf32>
    %30 = arith.mulf %27, %11 : vector<1x128xf32>
    %31 = arith.addf %29, %30 : vector<1x128xf32>
    %cst_20 = arith.constant dense<0.000000e+00> : vector<1x128xf32>
    %32 = tpu.matmul %31, %9, %cst_20 {dimension_numbers = #tpu.dot_dimension_numbers<[1], [0], [0], [1], [0, 0, 1, 1], [], []>} : vector<1x128xf32>, vector<128x128xf32>, vector<1x128xf32> -> vector<1x128xf32>
    %33 = arith.addf %17, %32 : vector<1x128xf32>
    %34 = arith.negf %33 : vector<1x128xf32>
    %35 = math.exp %34 : vector<1x128xf32>
    %cst_21 = arith.constant 1.000000e+00 : f32
    %36 = vector.broadcast %cst_21 : f32 to vector<1x128xf32>
    %37 = arith.addf %36, %35 : vector<1x128xf32>
    %38 = arith.divf %36, %37 : vector<1x128xf32>
    %39 = math.tanh %31 : vector<1x128xf32>
    %40 = arith.mulf %38, %39 : vector<1x128xf32>
    %41 = arith.index_cast %c0_i32 : i32 to index
    %c0_22 = arith.constant 0 : index
    %42 = vector.load %arg7[%41, %c0_22] : memref<8x128xf32, #tpu.memory_space<vmem>>, vector<1x128xf32>
    tpu.vector_store %arg7[%41, %c0_22], %40 {strides = array<i32>} : memref<8x128xf32, #tpu.memory_space<vmem>>, vector<1x128xf32>,
    %43 = arith.index_cast %c0_i32 : i32 to index
    %c0_23 = arith.constant 0 : index
    %44 = vector.load %arg8[%43, %c0_23] : memref<8x128xf32, #tpu.memory_space<vmem>>, vector<1x128xf32>
    tpu.vector_store %arg8[%43, %c0_23], %31 {strides = array<i32>} : memref<8x128xf32, #tpu.memory_space<vmem>>, vector<1x128xf32>,
    %c1_i32 = arith.constant 1 : i32
    %45 = arith.index_cast %c1_i32 : i32 to index
    %c0_24 = arith.constant 0 : index
    %46 = vector.load %arg9[%45, %c0_24] : memref<8x384xf32, #tpu.memory_space<vmem>>, vector<1x384xf32>
    %cst_25 = arith.constant dense<0.000000e+00> : vector<1x384xf32>
    %47 = tpu.matmul %40, %7, %cst_25 {dimension_numbers = #tpu.dot_dimension_numbers<[1], [0], [0], [1], [0, 0, 1, 1], [], []>} : vector<1x128xf32>, vector<128x384xf32>, vector<1x384xf32> -> vector<1x384xf32>
    %48 = arith.addf %46, %47 : vector<1x384xf32>
    %49 = vector.extract_strided_slice %48 {offsets = [0, 0], sizes = [1, 128], strides = [1, 1]} : vector<1x384xf32> to vector<1x128xf32>
    %50 = vector.extract_strided_slice %48 {offsets = [0, 128], sizes = [1, 128], strides = [1, 1]} : vector<1x384xf32> to vector<1x128xf32>
    %51 = vector.extract_strided_slice %48 {offsets = [0, 256], sizes = [1, 128], strides = [1, 1]} : vector<1x384xf32> to vector<1x128xf32>
    %cst_26 = arith.constant dense<0.000000e+00> : vector<1x128xf32>
    %52 = tpu.matmul %31, %8, %cst_26 {dimension_numbers = #tpu.dot_dimension_numbers<[1], [0], [0], [1], [0, 0, 1, 1], [], []>} : vector<1x128xf32>, vector<128x128xf32>, vector<1x128xf32> -> vector<1x128xf32>
    %53 = arith.addf %49, %52 : vector<1x128xf32>
    %54 = arith.negf %53 : vector<1x128xf32>
    %55 = math.exp %54 : vector<1x128xf32>
    %cst_27 = arith.constant 1.000000e+00 : f32
    %56 = vector.broadcast %cst_27 : f32 to vector<1x128xf32>
    %57 = arith.addf %56, %55 : vector<1x128xf32>
    %58 = arith.divf %56, %57 : vector<1x128xf32>
    %cst_28 = arith.constant 1.000000e+00 : f32
    %59 = vector.broadcast %cst_28 : f32 to vector<1x128xf32>
    %60 = arith.subf %59, %58 : vector<1x128xf32>
    %61 = math.tanh %51 : vector<1x128xf32>
    %62 = arith.mulf %58, %61 : vector<1x128xf32>
    %63 = arith.mulf %60, %31 : vector<1x128xf32>
    %64 = arith.addf %62, %63 : vector<1x128xf32>
    %cst_29 = arith.constant dense<0.000000e+00> : vector<1x128xf32>
    %65 = tpu.matmul %64, %9, %cst_29 {dimension_numbers = #tpu.dot_dimension_numbers<[1], [0], [0], [1], [0, 0, 1, 1], [], []>} : vector<1x128xf32>, vector<128x128xf32>, vector<1x128xf32> -> vector<1x128xf32>
    %66 = arith.addf %50, %65 : vector<1x128xf32>
    %67 = arith.negf %66 : vector<1x128xf32>
    %68 = math.exp %67 : vector<1x128xf32>
    %cst_30 = arith.constant 1.000000e+00 : f32
    %69 = vector.broadcast %cst_30 : f32 to vector<1x128xf32>
    %70 = arith.addf %69, %68 : vector<1x128xf32>
    %71 = arith.divf %69, %70 : vector<1x128xf32>
    %72 = math.tanh %64 : vector<1x128xf32>
    %73 = arith.mulf %71, %72 : vector<1x128xf32>
    %74 = arith.index_cast %c1_i32 : i32 to index
    %c0_31 = arith.constant 0 : index
    %75 = vector.load %arg7[%74, %c0_31] : memref<8x128xf32, #tpu.memory_space<vmem>>, vector<1x128xf32>
    tpu.vector_store %arg7[%74, %c0_31], %73 {strides = array<i32>} : memref<8x128xf32, #tpu.memory_space<vmem>>, vector<1x128xf32>,
    %76 = arith.index_cast %c1_i32 : i32 to index
    %c0_32 = arith.constant 0 : index
    %77 = vector.load %arg8[%76, %c0_32] : memref<8x128xf32, #tpu.memory_space<vmem>>, vector<1x128xf32>
    tpu.vector_store %arg8[%76, %c0_32], %64 {strides = array<i32>} : memref<8x128xf32, #tpu.memory_space<vmem>>, vector<1x128xf32>,
    %c2_i32 = arith.constant 2 : i32
    %78 = arith.index_cast %c2_i32 : i32 to index
    %c0_33 = arith.constant 0 : index
    %79 = vector.load %arg9[%78, %c0_33] : memref<8x384xf32, #tpu.memory_space<vmem>>, vector<1x384xf32>
    %cst_34 = arith.constant dense<0.000000e+00> : vector<1x384xf32>
    %80 = tpu.matmul %73, %7, %cst_34 {dimension_numbers = #tpu.dot_dimension_numbers<[1], [0], [0], [1], [0, 0, 1, 1], [], []>} : vector<1x128xf32>, vector<128x384xf32>, vector<1x384xf32> -> vector<1x384xf32>
    %81 = arith.addf %79, %80 : vector<1x384xf32>
    %82 = vector.extract_strided_slice %81 {offsets = [0, 0], sizes = [1, 128], strides = [1, 1]} : vector<1x384xf32> to vector<1x128xf32>
    %83 = vector.extract_strided_slice %81 {offsets = [0, 128], sizes = [1, 128], strides = [1, 1]} : vector<1x384xf32> to vector<1x128xf32>
    %84 = vector.extract_strided_slice %81 {offsets = [0, 256], sizes = [1, 128], strides = [1, 1]} : vector<1x384xf32> to vector<1x128xf32>
    %cst_35 = arith.constant dense<0.000000e+00> : vector<1x128xf32>
    %85 = tpu.matmul %64, %8, %cst_35 {dimension_numbers = #tpu.dot_dimension_numbers<[1], [0], [0], [1], [0, 0, 1, 1], [], []>} : vector<1x128xf32>, vector<128x128xf32>, vector<1x128xf32> -> vector<1x128xf32>
    %86 = arith.addf %82, %85 : vector<1x128xf32>
    %87 = arith.negf %86 : vector<1x128xf32>
    %88 = math.exp %87 : vector<1x128xf32>
    %cst_36 = arith.constant 1.000000e+00 : f32
    %89 = vector.broadcast %cst_36 : f32 to vector<1x128xf32>
    %90 = arith.addf %89, %88 : vector<1x128xf32>
    %91 = arith.divf %89, %90 : vector<1x128xf32>
    %cst_37 = arith.constant 1.000000e+00 : f32
    %92 = vector.broadcast %cst_37 : f32 to vector<1x128xf32>
    %93 = arith.subf %92, %91 : vector<1x128xf32>
    %94 = math.tanh %84 : vector<1x128xf32>
    %95 = arith.mulf %91, %94 : vector<1x128xf32>
    %96 = arith.mulf %93, %64 : vector<1x128xf32>
    %97 = arith.addf %95, %96 : vector<1x128xf32>
    %cst_38 = arith.constant dense<0.000000e+00> : vector<1x128xf32>
    %98 = tpu.matmul %97, %9, %cst_38 {dimension_numbers = #tpu.dot_dimension_numbers<[1], [0], [0], [1], [0, 0, 1, 1], [], []>} : vector<1x128xf32>, vector<128x128xf32>, vector<1x128xf32> -> vector<1x128xf32>
    %99 = arith.addf %83, %98 : vector<1x128xf32>
    %100 = arith.negf %99 : vector<1x128xf32>
    %101 = math.exp %100 : vector<1x128xf32>
    %cst_39 = arith.constant 1.000000e+00 : f32
    %102 = vector.broadcast %cst_39 : f32 to vector<1x128xf32>
    %103 = arith.addf %102, %101 : vector<1x128xf32>
    %104 = arith.divf %102, %103 : vector<1x128xf32>
    %105 = math.tanh %97 : vector<1x128xf32>
    %106 = arith.mulf %104, %105 : vector<1x128xf32>
    %107 = arith.index_cast %c2_i32 : i32 to index
    %c0_40 = arith.constant 0 : index
    %108 = vector.load %arg7[%107, %c0_40] : memref<8x128xf32, #tpu.memory_space<vmem>>, vector<1x128xf32>
    tpu.vector_store %arg7[%107, %c0_40], %106 {strides = array<i32>} : memref<8x128xf32, #tpu.memory_space<vmem>>, vector<1x128xf32>,
    %109 = arith.index_cast %c2_i32 : i32 to index
    %c0_41 = arith.constant 0 : index
    %110 = vector.load %arg8[%109, %c0_41] : memref<8x128xf32, #tpu.memory_space<vmem>>, vector<1x128xf32>
    tpu.vector_store %arg8[%109, %c0_41], %97 {strides = array<i32>} : memref<8x128xf32, #tpu.memory_space<vmem>>, vector<1x128xf32>,
    %c3_i32 = arith.constant 3 : i32
    %111 = arith.index_cast %c3_i32 : i32 to index
    %c0_42 = arith.constant 0 : index
    %112 = vector.load %arg9[%111, %c0_42] : memref<8x384xf32, #tpu.memory_space<vmem>>, vector<1x384xf32>
    %cst_43 = arith.constant dense<0.000000e+00> : vector<1x384xf32>
    %113 = tpu.matmul %106, %7, %cst_43 {dimension_numbers = #tpu.dot_dimension_numbers<[1], [0], [0], [1], [0, 0, 1, 1], [], []>} : vector<1x128xf32>, vector<128x384xf32>, vector<1x384xf32> -> vector<1x384xf32>
    %114 = arith.addf %112, %113 : vector<1x384xf32>
    %115 = vector.extract_strided_slice %114 {offsets = [0, 0], sizes = [1, 128], strides = [1, 1]} : vector<1x384xf32> to vector<1x128xf32>
    %116 = vector.extract_strided_slice %114 {offsets = [0, 128], sizes = [1, 128], strides = [1, 1]} : vector<1x384xf32> to vector<1x128xf32>
    %117 = vector.extract_strided_slice %114 {offsets = [0, 256], sizes = [1, 128], strides = [1, 1]} : vector<1x384xf32> to vector<1x128xf32>
    %cst_44 = arith.constant dense<0.000000e+00> : vector<1x128xf32>
    %118 = tpu.matmul %97, %8, %cst_44 {dimension_numbers = #tpu.dot_dimension_numbers<[1], [0], [0], [1], [0, 0, 1, 1], [], []>} : vector<1x128xf32>, vector<128x128xf32>, vector<1x128xf32> -> vector<1x128xf32>
    %119 = arith.addf %115, %118 : vector<1x128xf32>
    %120 = arith.negf %119 : vector<1x128xf32>
    %121 = math.exp %120 : vector<1x128xf32>
    %cst_45 = arith.constant 1.000000e+00 : f32
    %122 = vector.broadcast %cst_45 : f32 to vector<1x128xf32>
    %123 = arith.addf %122, %121 : vector<1x128xf32>
    %124 = arith.divf %122, %123 : vector<1x128xf32>
    %cst_46 = arith.constant 1.000000e+00 : f32
    %125 = vector.broadcast %cst_46 : f32 to vector<1x128xf32>
    %126 = arith.subf %125, %124 : vector<1x128xf32>
    %127 = math.tanh %117 : vector<1x128xf32>
    %128 = arith.mulf %124, %127 : vector<1x128xf32>
    %129 = arith.mulf %126, %97 : vector<1x128xf32>
    %130 = arith.addf %128, %129 : vector<1x128xf32>
    %cst_47 = arith.constant dense<0.000000e+00> : vector<1x128xf32>
    %131 = tpu.matmul %130, %9, %cst_47 {dimension_numbers = #tpu.dot_dimension_numbers<[1], [0], [0], [1], [0, 0, 1, 1], [], []>} : vector<1x128xf32>, vector<128x128xf32>, vector<1x128xf32> -> vector<1x128xf32>
    %132 = arith.addf %116, %131 : vector<1x128xf32>
    %133 = arith.negf %132 : vector<1x128xf32>
    %134 = math.exp %133 : vector<1x128xf32>
    %cst_48 = arith.constant 1.000000e+00 : f32
    %135 = vector.broadcast %cst_48 : f32 to vector<1x128xf32>
    %136 = arith.addf %135, %134 : vector<1x128xf32>
    %137 = arith.divf %135, %136 : vector<1x128xf32>
    %138 = math.tanh %130 : vector<1x128xf32>
    %139 = arith.mulf %137, %138 : vector<1x128xf32>
    %140 = arith.index_cast %c3_i32 : i32 to index
    %c0_49 = arith.constant 0 : index
    %141 = vector.load %arg7[%140, %c0_49] : memref<8x128xf32, #tpu.memory_space<vmem>>, vector<1x128xf32>
    tpu.vector_store %arg7[%140, %c0_49], %139 {strides = array<i32>} : memref<8x128xf32, #tpu.memory_space<vmem>>, vector<1x128xf32>,
    %142 = arith.index_cast %c3_i32 : i32 to index
    %c0_50 = arith.constant 0 : index
    %143 = vector.load %arg8[%142, %c0_50] : memref<8x128xf32, #tpu.memory_space<vmem>>, vector<1x128xf32>
    tpu.vector_store %arg8[%142, %c0_50], %130 {strides = array<i32>} : memref<8x128xf32, #tpu.memory_space<vmem>>, vector<1x128xf32>,
    %c4_i32 = arith.constant 4 : i32
    %144 = arith.index_cast %c4_i32 : i32 to index
    %c0_51 = arith.constant 0 : index
    %145 = vector.load %arg9[%144, %c0_51] : memref<8x384xf32, #tpu.memory_space<vmem>>, vector<1x384xf32>
    %cst_52 = arith.constant dense<0.000000e+00> : vector<1x384xf32>
    %146 = tpu.matmul %139, %7, %cst_52 {dimension_numbers = #tpu.dot_dimension_numbers<[1], [0], [0], [1], [0, 0, 1, 1], [], []>} : vector<1x128xf32>, vector<128x384xf32>, vector<1x384xf32> -> vector<1x384xf32>
    %147 = arith.addf %145, %146 : vector<1x384xf32>
    %148 = vector.extract_strided_slice %147 {offsets = [0, 0], sizes = [1, 128], strides = [1, 1]} : vector<1x384xf32> to vector<1x128xf32>
    %149 = vector.extract_strided_slice %147 {offsets = [0, 128], sizes = [1, 128], strides = [1, 1]} : vector<1x384xf32> to vector<1x128xf32>
    %150 = vector.extract_strided_slice %147 {offsets = [0, 256], sizes = [1, 128], strides = [1, 1]} : vector<1x384xf32> to vector<1x128xf32>
    %cst_53 = arith.constant dense<0.000000e+00> : vector<1x128xf32>
    %151 = tpu.matmul %130, %8, %cst_53 {dimension_numbers = #tpu.dot_dimension_numbers<[1], [0], [0], [1], [0, 0, 1, 1], [], []>} : vector<1x128xf32>, vector<128x128xf32>, vector<1x128xf32> -> vector<1x128xf32>
    %152 = arith.addf %148, %151 : vector<1x128xf32>
    %153 = arith.negf %152 : vector<1x128xf32>
    %154 = math.exp %153 : vector<1x128xf32>
    %cst_54 = arith.constant 1.000000e+00 : f32
    %155 = vector.broadcast %cst_54 : f32 to vector<1x128xf32>
    %156 = arith.addf %155, %154 : vector<1x128xf32>
    %157 = arith.divf %155, %156 : vector<1x128xf32>
    %cst_55 = arith.constant 1.000000e+00 : f32
    %158 = vector.broadcast %cst_55 : f32 to vector<1x128xf32>
    %159 = arith.subf %158, %157 : vector<1x128xf32>
    %160 = math.tanh %150 : vector<1x128xf32>
    %161 = arith.mulf %157, %160 : vector<1x128xf32>
    %162 = arith.mulf %159, %130 : vector<1x128xf32>
    %163 = arith.addf %161, %162 : vector<1x128xf32>
    %cst_56 = arith.constant dense<0.000000e+00> : vector<1x128xf32>
    %164 = tpu.matmul %163, %9, %cst_56 {dimension_numbers = #tpu.dot_dimension_numbers<[1], [0], [0], [1], [0, 0, 1, 1], [], []>} : vector<1x128xf32>, vector<128x128xf32>, vector<1x128xf32> -> vector<1x128xf32>
    %165 = arith.addf %149, %164 : vector<1x128xf32>
    %166 = arith.negf %165 : vector<1x128xf32>
    %167 = math.exp %166 : vector<1x128xf32>
    %cst_57 = arith.constant 1.000000e+00 : f32
    %168 = vector.broadcast %cst_57 : f32 to vector<1x128xf32>
    %169 = arith.addf %168, %167 : vector<1x128xf32>
    %170 = arith.divf %168, %169 : vector<1x128xf32>
    %171 = math.tanh %163 : vector<1x128xf32>
    %172 = arith.mulf %170, %171 : vector<1x128xf32>
    %173 = arith.index_cast %c4_i32 : i32 to index
    %c0_58 = arith.constant 0 : index
    %174 = vector.load %arg7[%173, %c0_58] : memref<8x128xf32, #tpu.memory_space<vmem>>, vector<1x128xf32>
    tpu.vector_store %arg7[%173, %c0_58], %172 {strides = array<i32>} : memref<8x128xf32, #tpu.memory_space<vmem>>, vector<1x128xf32>,
    %175 = arith.index_cast %c4_i32 : i32 to index
    %c0_59 = arith.constant 0 : index
    %176 = vector.load %arg8[%175, %c0_59] : memref<8x128xf32, #tpu.memory_space<vmem>>, vector<1x128xf32>
    tpu.vector_store %arg8[%175, %c0_59], %163 {strides = array<i32>} : memref<8x128xf32, #tpu.memory_space<vmem>>, vector<1x128xf32>,
    %c5_i32 = arith.constant 5 : i32
    %177 = arith.index_cast %c5_i32 : i32 to index
    %c0_60 = arith.constant 0 : index
    %178 = vector.load %arg9[%177, %c0_60] : memref<8x384xf32, #tpu.memory_space<vmem>>, vector<1x384xf32>
    %cst_61 = arith.constant dense<0.000000e+00> : vector<1x384xf32>
    %179 = tpu.matmul %172, %7, %cst_61 {dimension_numbers = #tpu.dot_dimension_numbers<[1], [0], [0], [1], [0, 0, 1, 1], [], []>} : vector<1x128xf32>, vector<128x384xf32>, vector<1x384xf32> -> vector<1x384xf32>
    %180 = arith.addf %178, %179 : vector<1x384xf32>
    %181 = vector.extract_strided_slice %180 {offsets = [0, 0], sizes = [1, 128], strides = [1, 1]} : vector<1x384xf32> to vector<1x128xf32>
    %182 = vector.extract_strided_slice %180 {offsets = [0, 128], sizes = [1, 128], strides = [1, 1]} : vector<1x384xf32> to vector<1x128xf32>
    %183 = vector.extract_strided_slice %180 {offsets = [0, 256], sizes = [1, 128], strides = [1, 1]} : vector<1x384xf32> to vector<1x128xf32>
    %cst_62 = arith.constant dense<0.000000e+00> : vector<1x128xf32>
    %184 = tpu.matmul %163, %8, %cst_62 {dimension_numbers = #tpu.dot_dimension_numbers<[1], [0], [0], [1], [0, 0, 1, 1], [], []>} : vector<1x128xf32>, vector<128x128xf32>, vector<1x128xf32> -> vector<1x128xf32>
    %185 = arith.addf %181, %184 : vector<1x128xf32>
    %186 = arith.negf %185 : vector<1x128xf32>
    %187 = math.exp %186 : vector<1x128xf32>
    %cst_63 = arith.constant 1.000000e+00 : f32
    %188 = vector.broadcast %cst_63 : f32 to vector<1x128xf32>
    %189 = arith.addf %188, %187 : vector<1x128xf32>
    %190 = arith.divf %188, %189 : vector<1x128xf32>
    %cst_64 = arith.constant 1.000000e+00 : f32
    %191 = vector.broadcast %cst_64 : f32 to vector<1x128xf32>
    %192 = arith.subf %191, %190 : vector<1x128xf32>
    %193 = math.tanh %183 : vector<1x128xf32>
    %194 = arith.mulf %190, %193 : vector<1x128xf32>
    %195 = arith.mulf %192, %163 : vector<1x128xf32>
    %196 = arith.addf %194, %195 : vector<1x128xf32>
    %cst_65 = arith.constant dense<0.000000e+00> : vector<1x128xf32>
    %197 = tpu.matmul %196, %9, %cst_65 {dimension_numbers = #tpu.dot_dimension_numbers<[1], [0], [0], [1], [0, 0, 1, 1], [], []>} : vector<1x128xf32>, vector<128x128xf32>, vector<1x128xf32> -> vector<1x128xf32>
    %198 = arith.addf %182, %197 : vector<1x128xf32>
    %199 = arith.negf %198 : vector<1x128xf32>
    %200 = math.exp %199 : vector<1x128xf32>
    %cst_66 = arith.constant 1.000000e+00 : f32
    %201 = vector.broadcast %cst_66 : f32 to vector<1x128xf32>
    %202 = arith.addf %201, %200 : vector<1x128xf32>
    %203 = arith.divf %201, %202 : vector<1x128xf32>
    %204 = math.tanh %196 : vector<1x128xf32>
    %205 = arith.mulf %203, %204 : vector<1x128xf32>
    %206 = arith.index_cast %c5_i32 : i32 to index
    %c0_67 = arith.constant 0 : index
    %207 = vector.load %arg7[%206, %c0_67] : memref<8x128xf32, #tpu.memory_space<vmem>>, vector<1x128xf32>
    tpu.vector_store %arg7[%206, %c0_67], %205 {strides = array<i32>} : memref<8x128xf32, #tpu.memory_space<vmem>>, vector<1x128xf32>,
    %208 = arith.index_cast %c5_i32 : i32 to index
    %c0_68 = arith.constant 0 : index
    %209 = vector.load %arg8[%208, %c0_68] : memref<8x128xf32, #tpu.memory_space<vmem>>, vector<1x128xf32>
    tpu.vector_store %arg8[%208, %c0_68], %196 {strides = array<i32>} : memref<8x128xf32, #tpu.memory_space<vmem>>, vector<1x128xf32>,
    %c6_i32 = arith.constant 6 : i32
    %210 = arith.index_cast %c6_i32 : i32 to index
    %c0_69 = arith.constant 0 : index
    %211 = vector.load %arg9[%210, %c0_69] : memref<8x384xf32, #tpu.memory_space<vmem>>, vector<1x384xf32>
    %cst_70 = arith.constant dense<0.000000e+00> : vector<1x384xf32>
    %212 = tpu.matmul %205, %7, %cst_70 {dimension_numbers = #tpu.dot_dimension_numbers<[1], [0], [0], [1], [0, 0, 1, 1], [], []>} : vector<1x128xf32>, vector<128x384xf32>, vector<1x384xf32> -> vector<1x384xf32>
    %213 = arith.addf %211, %212 : vector<1x384xf32>
    %214 = vector.extract_strided_slice %213 {offsets = [0, 0], sizes = [1, 128], strides = [1, 1]} : vector<1x384xf32> to vector<1x128xf32>
    %215 = vector.extract_strided_slice %213 {offsets = [0, 128], sizes = [1, 128], strides = [1, 1]} : vector<1x384xf32> to vector<1x128xf32>
    %216 = vector.extract_strided_slice %213 {offsets = [0, 256], sizes = [1, 128], strides = [1, 1]} : vector<1x384xf32> to vector<1x128xf32>
    %cst_71 = arith.constant dense<0.000000e+00> : vector<1x128xf32>
    %217 = tpu.matmul %196, %8, %cst_71 {dimension_numbers = #tpu.dot_dimension_numbers<[1], [0], [0], [1], [0, 0, 1, 1], [], []>} : vector<1x128xf32>, vector<128x128xf32>, vector<1x128xf32> -> vector<1x128xf32>
    %218 = arith.addf %214, %217 : vector<1x128xf32>
    %219 = arith.negf %218 : vector<1x128xf32>
    %220 = math.exp %219 : vector<1x128xf32>
    %cst_72 = arith.constant 1.000000e+00 : f32
    %221 = vector.broadcast %cst_72 : f32 to vector<1x128xf32>
    %222 = arith.addf %221, %220 : vector<1x128xf32>
    %223 = arith.divf %221, %222 : vector<1x128xf32>
    %cst_73 = arith.constant 1.000000e+00 : f32
    %224 = vector.broadcast %cst_73 : f32 to vector<1x128xf32>
    %225 = arith.subf %224, %223 : vector<1x128xf32>
    %226 = math.tanh %216 : vector<1x128xf32>
    %227 = arith.mulf %223, %226 : vector<1x128xf32>
    %228 = arith.mulf %225, %196 : vector<1x128xf32>
    %229 = arith.addf %227, %228 : vector<1x128xf32>
    %cst_74 = arith.constant dense<0.000000e+00> : vector<1x128xf32>
    %230 = tpu.matmul %229, %9, %cst_74 {dimension_numbers = #tpu.dot_dimension_numbers<[1], [0], [0], [1], [0, 0, 1, 1], [], []>} : vector<1x128xf32>, vector<128x128xf32>, vector<1x128xf32> -> vector<1x128xf32>
    %231 = arith.addf %215, %230 : vector<1x128xf32>
    %232 = arith.negf %231 : vector<1x128xf32>
    %233 = math.exp %232 : vector<1x128xf32>
    %cst_75 = arith.constant 1.000000e+00 : f32
    %234 = vector.broadcast %cst_75 : f32 to vector<1x128xf32>
    %235 = arith.addf %234, %233 : vector<1x128xf32>
    %236 = arith.divf %234, %235 : vector<1x128xf32>
    %237 = math.tanh %229 : vector<1x128xf32>
    %238 = arith.mulf %236, %237 : vector<1x128xf32>
    %239 = arith.index_cast %c6_i32 : i32 to index
    %c0_76 = arith.constant 0 : index
    %240 = vector.load %arg7[%239, %c0_76] : memref<8x128xf32, #tpu.memory_space<vmem>>, vector<1x128xf32>
    tpu.vector_store %arg7[%239, %c0_76], %238 {strides = array<i32>} : memref<8x128xf32, #tpu.memory_space<vmem>>, vector<1x128xf32>,
    %241 = arith.index_cast %c6_i32 : i32 to index
    %c0_77 = arith.constant 0 : index
    %242 = vector.load %arg8[%241, %c0_77] : memref<8x128xf32, #tpu.memory_space<vmem>>, vector<1x128xf32>
    tpu.vector_store %arg8[%241, %c0_77], %229 {strides = array<i32>} : memref<8x128xf32, #tpu.memory_space<vmem>>, vector<1x128xf32>,
    %c7_i32 = arith.constant 7 : i32
    %243 = arith.index_cast %c7_i32 : i32 to index
    %c0_78 = arith.constant 0 : index
    %244 = vector.load %arg9[%243, %c0_78] : memref<8x384xf32, #tpu.memory_space<vmem>>, vector<1x384xf32>
    %cst_79 = arith.constant dense<0.000000e+00> : vector<1x384xf32>
    %245 = tpu.matmul %238, %7, %cst_79 {dimension_numbers = #tpu.dot_dimension_numbers<[1], [0], [0], [1], [0, 0, 1, 1], [], []>} : vector<1x128xf32>, vector<128x384xf32>, vector<1x384xf32> -> vector<1x384xf32>
    %246 = arith.addf %244, %245 : vector<1x384xf32>
    %247 = vector.extract_strided_slice %246 {offsets = [0, 0], sizes = [1, 128], strides = [1, 1]} : vector<1x384xf32> to vector<1x128xf32>
    %248 = vector.extract_strided_slice %246 {offsets = [0, 128], sizes = [1, 128], strides = [1, 1]} : vector<1x384xf32> to vector<1x128xf32>
    %249 = vector.extract_strided_slice %246 {offsets = [0, 256], sizes = [1, 128], strides = [1, 1]} : vector<1x384xf32> to vector<1x128xf32>
    %cst_80 = arith.constant dense<0.000000e+00> : vector<1x128xf32>
    %250 = tpu.matmul %229, %8, %cst_80 {dimension_numbers = #tpu.dot_dimension_numbers<[1], [0], [0], [1], [0, 0, 1, 1], [], []>} : vector<1x128xf32>, vector<128x128xf32>, vector<1x128xf32> -> vector<1x128xf32>
    %251 = arith.addf %247, %250 : vector<1x128xf32>
    %252 = arith.negf %251 : vector<1x128xf32>
    %253 = math.exp %252 : vector<1x128xf32>
    %cst_81 = arith.constant 1.000000e+00 : f32
    %254 = vector.broadcast %cst_81 : f32 to vector<1x128xf32>
    %255 = arith.addf %254, %253 : vector<1x128xf32>
    %256 = arith.divf %254, %255 : vector<1x128xf32>
    %cst_82 = arith.constant 1.000000e+00 : f32
    %257 = vector.broadcast %cst_82 : f32 to vector<1x128xf32>
    %258 = arith.subf %257, %256 : vector<1x128xf32>
    %259 = math.tanh %249 : vector<1x128xf32>
    %260 = arith.mulf %256, %259 : vector<1x128xf32>
    %261 = arith.mulf %258, %229 : vector<1x128xf32>
    %262 = arith.addf %260, %261 : vector<1x128xf32>
    %cst_83 = arith.constant dense<0.000000e+00> : vector<1x128xf32>
    %263 = tpu.matmul %262, %9, %cst_83 {dimension_numbers = #tpu.dot_dimension_numbers<[1], [0], [0], [1], [0, 0, 1, 1], [], []>} : vector<1x128xf32>, vector<128x128xf32>, vector<1x128xf32> -> vector<1x128xf32>
    %264 = arith.addf %248, %263 : vector<1x128xf32>
    %265 = arith.negf %264 : vector<1x128xf32>
    %266 = math.exp %265 : vector<1x128xf32>
    %cst_84 = arith.constant 1.000000e+00 : f32
    %267 = vector.broadcast %cst_84 : f32 to vector<1x128xf32>
    %268 = arith.addf %267, %266 : vector<1x128xf32>
    %269 = arith.divf %267, %268 : vector<1x128xf32>
    %270 = math.tanh %262 : vector<1x128xf32>
    %271 = arith.mulf %269, %270 : vector<1x128xf32>
    %272 = arith.index_cast %c7_i32 : i32 to index
    %c0_85 = arith.constant 0 : index
    %273 = vector.load %arg7[%272, %c0_85] : memref<8x128xf32, #tpu.memory_space<vmem>>, vector<1x128xf32>
    tpu.vector_store %arg7[%272, %c0_85], %271 {strides = array<i32>} : memref<8x128xf32, #tpu.memory_space<vmem>>, vector<1x128xf32>,
    %274 = arith.index_cast %c7_i32 : i32 to index
    %c0_86 = arith.constant 0 : index
    %275 = vector.load %arg8[%274, %c0_86] : memref<8x128xf32, #tpu.memory_space<vmem>>, vector<1x128xf32>
    tpu.vector_store %arg8[%274, %c0_86], %262 {strides = array<i32>} : memref<8x128xf32, #tpu.memory_space<vmem>>, vector<1x128xf32>,
    %c8_i32 = arith.constant 8 : i32
    return
  }
  func.func @transform_0(%arg0: i32) -> (i32, i32) {
    %c0_i32 = arith.constant 0 : i32
    %c0_i32_0 = arith.constant 0 : i32
    %c0_i32_1 = arith.constant 0 : i32
    return %c0_i32, %c0_i32_0 : i32, i32
  }
  func.func @transform_1(%arg0: i32) -> (i32, i32) {
    %c0_i32 = arith.constant 0 : i32
    %c0_i32_0 = arith.constant 0 : i32
    %c0_i32_1 = arith.constant 0 : i32
    return %c0_i32, %c0_i32_0 : i32, i32
  }
  func.func @transform_2(%arg0: i32) -> (i32, i32) {
    %c0_i32 = arith.constant 0 : i32
    %c0_i32_0 = arith.constant 0 : i32
    %c0_i32_1 = arith.constant 0 : i32
    return %c0_i32, %c0_i32_0 : i32, i32
  }
  func.func @transform_3(%arg0: i32) -> (i32, i32) {
    %c0_i32 = arith.constant 0 : i32
    %c0_i32_0 = arith.constant 0 : i32
    %c0_i32_1 = arith.constant 0 : i32
    return %c0_i32, %c0_i32_0 : i32, i32
  }
  func.func @transform_4(%arg0: i32) -> (i32, i32) {
    %c0_i32 = arith.constant 0 : i32
    %c0_i32_0 = arith.constant 0 : i32
    %c0_i32_1 = arith.constant 0 : i32
    return %c0_i32, %c0_i32_0 : i32, i32
  }
  func.func @transform_5(%arg0: i32) -> (i32, i32) {
    %c0_i32 = arith.constant 0 : i32
    %c0_i32_0 = arith.constant 0 : i32
    %c0_i32_1 = arith.constant 0 : i32
    return %c0_i32, %c0_i32_0 : i32, i32
  }
  func.func @transform_6(%arg0: i32) -> (i32, i32) {
    %c0_i32 = arith.constant 0 : i32
    %c0_i32_0 = arith.constant 0 : i32
    %c0_i32_1 = arith.constant 0 : i32
    return %c0_i32, %c0_i32_0 : i32, i32
  }
  func.func @transform_7(%arg0: i32) -> (i32, i32) {
    %c0_i32 = arith.constant 0 : i32
    %c0_i32_0 = arith.constant 0 : i32
    %c0_i32_1 = arith.constant 0 : i32
    return %c0_i32, %c0_i32_0 : i32, i32
  }
}

</mosaic_0001>

<llo_original>
// kernel: tpu_custom_call.1
$region0: #{tpu_custom_call.1}
  #allocation0 [shape = 'u32[]', space=smem, size = 0x4, offset = 0x4, fixed_abs, tag = 'smem constant byte address 0x4 - core index']
  #allocation1 [shape = 'u32[144,128]{1,0:T(1,128)}', space=vmem, size = 0x12000, scoped, tag = 'internal scratch']
  #allocation2 [shape = 'f32[8,384]{1,0:T(8,128)}', space=vmem, size = 0x3000, scoped, tag = 'scratch operand']
  %s0 = inlined_call_operand.hbm [shape: f32[8,128], index: 0, kind: input, shape index: {}]
  %s1 = inlined_call_operand.hbm [shape: f32[128,384], index: 1, kind: input, shape index: {}]
  %s2 = inlined_call_operand.vmem [shape: f32[1,384], index: 2, kind: input, shape index: {}]
  %s3 = inlined_call_operand.hbm [shape: f32[128,384], index: 3, kind: input, shape index: {}]
  %s4 = inlined_call_operand.hbm [shape: f32[128,128], index: 4, kind: input, shape index: {}]
  %s5 = inlined_call_operand.hbm [shape: f32[128,128], index: 5, kind: input, shape index: {}]
  %s6 = inlined_call_operand.hbm [shape: f32[8,128], index: 6, kind: output, shape index: {0}]
  %s7 = inlined_call_operand.hbm [shape: f32[8,128], index: 7, kind: output, shape index: {1}]
  %8 = xla_tuple %s6, %s7
  %s9 = sld [smem:[#allocation0]]
  $region62: #{tpu_custom_call.1} parent=0
    _
  %s11 = ssub.s32 1, %s9
  %s12 = scalar_select 0, %s11, %s9
  $region1: #{tpu_custom_call.1} parent=0
    #allocation3 [shape = 'u8[4096]{0}', space=vmem, size = 0x1000, scoped, tag = 'input window, operand 0, single buffered']
    #allocation4 [shape = 's32[1]{0}', space=sflag, size = 0x4, scoped, tag = 'scoped memory for tpu_custom_call.1']
    #allocation5 [shape = 's32[1]{0}', space=sflag, size = 0x4, scoped, tag = 'scoped memory for tpu_custom_call.1']
    #allocation6 [shape = 'u8[196608]{0}', space=vmem, size = 0x30000, scoped, tag = 'input window, operand 1, single buffered']
    #allocation7 [shape = 's32[1]{0}', space=sflag, size = 0x4, scoped, tag = 'scoped memory for tpu_custom_call.1']
    #allocation8 [shape = 'u8[196608]{0}', space=vmem, size = 0x30000, scoped, tag = 'input window, operand 3, single buffered']
    #allocation9 [shape = 'u8[65536]{0}', space=vmem, size = 0x10000, scoped, tag = 'input window, operand 4, single buffered']
    #allocation10 [shape = 's32[1]{0}', space=sflag, size = 0x4, scoped, tag = 'scoped memory for tpu_custom_call.1']
    #allocation11 [shape = 'u8[65536]{0}', space=vmem, size = 0x10000, scoped, tag = 'input window, operand 5, single buffered']
    #allocation12 [shape = 'u8[4096]{0}', space=vmem, size = 0x1000, scoped, tag = 'output window, operand 0, single buffered']
    #allocation13 [shape = 'u8[4096]{0}', space=vmem, size = 0x1000, scoped, tag = 'output window, operand 1, single buffered']
    #allocation14 [shape = 's32[1]{0}', space=sflag, size = 0x4, scoped, tag = 'scoped memory for tpu_custom_call.1']
    %13 = vsyncpa [#allocation4], 0
    %14 = vsyncpa [#allocation7], 0
    %15 = vsyncpa [#allocation10], 0
    %16 = vsyncpa [#allocation5], 0
    %17 = vsyncpa [#allocation14], 0
    // Predicated region
    $region2: #{tpu_custom_call.1} parent=1 // pred_check
      _
    $region3: #{tpu_custom_call.1} parent=1 // pred_check_branch
      %19 = sbr.rel (0) target = $region5
    $region4: #{tpu_custom_call.1} parent=1 // pred_region
      %s21 = ssub.s32 128, 128
      %22 = vsyncadd [#allocation4], %s21
      %s24 = sshll.u32 [#allocation3], 4
      %s25 = int_to_ptr.vmem [resolvable:$true] %s24
      %27 = dma.hbm_to_vmem [thread:$0]  %s0, 128, %s25, [#allocation4]
    $region5: #{tpu_custom_call.1} parent=1 // pred_fallthru
      _
    // Predicated region
    $region6: #{tpu_custom_call.1} parent=1 // pred_check
      _
    $region7: #{tpu_custom_call.1} parent=1 // pred_check_branch
      %29 = sbr.rel (0) target = $region9
    $region8: #{tpu_custom_call.1} parent=1 // pred_region
      %s31 = ssub.s32 6144, 6144
      %32 = vsyncadd [#allocation7], %s31
      %s33 = sshll.u32 [#allocation6], 4
      %s34 = int_to_ptr.vmem [resolvable:$true] %s33
      %39 = dma.hbm_to_vmem [thread:$0]  %s1, 6144, %s34, [#allocation7], 384, 384, 24
    $region9: #{tpu_custom_call.1} parent=1 // pred_fallthru
      _
    // Predicated region
    $region10: #{tpu_custom_call.1} parent=1 // pred_check
      _
    $region11: #{tpu_custom_call.1} parent=1 // pred_check_branch
      %41 = sbr.rel (0) target = $region13
    $region12: #{tpu_custom_call.1} parent=1 // pred_region
      _
    $region13: #{tpu_custom_call.1} parent=1 // pred_fallthru
      _
    // Predicated region
    $region14: #{tpu_custom_call.1} parent=1 // pred_check
      _
    $region15: #{tpu_custom_call.1} parent=1 // pred_check_branch
      %43 = sbr.rel (0) target = $region17
    $region16: #{tpu_custom_call.1} parent=1 // pred_region
      %s45 = ssub.s32 6144, 6144
      %46 = vsyncadd [#allocation7], %s45
      %s47 = sshll.u32 [#allocation8], 4
      %s48 = int_to_ptr.vmem [resolvable:$true] %s47
      %53 = dma.hbm_to_vmem [thread:$0]  %s3, 6144, %s48, [#allocation7], 384, 384, 24
    $region17: #{tpu_custom_call.1} parent=1 // pred_fallthru
      _
    // Predicated region
    $region18: #{tpu_custom_call.1} parent=1 // pred_check
      _
    $region19: #{tpu_custom_call.1} parent=1 // pred_check_branch
      %55 = sbr.rel (0) target = $region21
    $region20: #{tpu_custom_call.1} parent=1 // pred_region
      %s57 = ssub.s32 2048, 2048
      %58 = vsyncadd [#allocation10], %s57
      %s59 = sshll.u32 [#allocation9], 4
      %s60 = int_to_ptr.vmem [resolvable:$true] %s59
      %65 = dma.hbm_to_vmem [thread:$0]  %s4, 2048, %s60, [#allocation10], 128, 128, 8
    $region21: #{tpu_custom_call.1} parent=1 // pred_fallthru
      _
    // Predicated region
    $region22: #{tpu_custom_call.1} parent=1 // pred_check
      _
    $region23: #{tpu_custom_call.1} parent=1 // pred_check_branch
      %67 = sbr.rel (0) target = $region25
    $region24: #{tpu_custom_call.1} parent=1 // pred_region
      %s69 = ssub.s32 2048, 2048
      %70 = vsyncadd [#allocation10], %s69
      %s71 = sshll.u32 [#allocation11], 4
      %s72 = int_to_ptr.vmem [resolvable:$true] %s71
      %77 = dma.hbm_to_vmem [thread:$0]  %s5, 2048, %s72, [#allocation10], 128, 128, 8
    $region25: #{tpu_custom_call.1} parent=1 // pred_fallthru
      _
    // Predicated region
    $region26: #{tpu_custom_call.1} parent=1 // pred_check
      _
    $region27: #{tpu_custom_call.1} parent=1 // pred_check_branch
      %79 = sbr.rel (0) target = $region29
    $region28: #{tpu_custom_call.1} parent=1 // pred_region
      %80 = dma.done [#allocation4], 128
    $region29: #{tpu_custom_call.1} parent=1 // pred_fallthru
      _
    // Predicated region
    $region30: #{tpu_custom_call.1} parent=1 // pred_check
      _
    $region31: #{tpu_custom_call.1} parent=1 // pred_check_branch
      %82 = sbr.rel (0) target = $region33
    $region32: #{tpu_custom_call.1} parent=1 // pred_region
      %83 = dma.done [#allocation7], 6144
    $region33: #{tpu_custom_call.1} parent=1 // pred_fallthru
      _
    // Predicated region
    $region34: #{tpu_custom_call.1} parent=1 // pred_check
      _
    $region35: #{tpu_custom_call.1} parent=1 // pred_check_branch
      %85 = sbr.rel (0) target = $region37
    $region36: #{tpu_custom_call.1} parent=1 // pred_region
      %86 = dma.done [#allocation7], 6144
    $region37: #{tpu_custom_call.1} parent=1 // pred_fallthru
      _
    // Predicated region
    $region38: #{tpu_custom_call.1} parent=1 // pred_check
      _
    $region39: #{tpu_custom_call.1} parent=1 // pred_check_branch
      %88 = sbr.rel (0) target = $region41
    $region40: #{tpu_custom_call.1} parent=1 // pred_region
      %89 = dma.done [#allocation10], 2048
    $region41: #{tpu_custom_call.1} parent=1 // pred_fallthru
      _
    // Predicated region
    $region42: #{tpu_custom_call.1} parent=1 // pred_check
      _
    $region43: #{tpu_custom_call.1} parent=1 // pred_check_branch
      %91 = sbr.rel (0) target = $region45
    $region44: #{tpu_custom_call.1} parent=1 // pred_region
      %92 = dma.done [#allocation10], 2048
    $region45: #{tpu_custom_call.1} parent=1 // pred_fallthru
      _
    %v93 = vld [vmem:[#allocation3] sm:$0xff]
    %v94 = vld [vmem:[#allocation6] sm:$0xff]
    %v95 = vld [vmem:[#allocation6 + $0x8] sm:$0xff]
    %v96 = vld [vmem:[#allocation6 + $0x10] sm:$0xff]
    %v97 = vld [vmem:[#allocation6 + $0x18] sm:$0xff]
    %v98 = vld [vmem:[#allocation6 + $0x20] sm:$0xff]
    %v99 = vld [vmem:[#allocation6 + $0x28] sm:$0xff]
    %v100 = vld [vmem:[#allocation6 + $0x30] sm:$0xff]
    %v101 = vld [vmem:[#allocation6 + $0x38] sm:$0xff]
    %v102 = vld [vmem:[#allocation6 + $0x40] sm:$0xff]
    %v103 = vld [vmem:[#allocation6 + $0x48] sm:$0xff]
    %v104 = vld [vmem:[#allocation6 + $0x50] sm:$0xff]
    %v105 = vld [vmem:[#allocation6 + $0x58] sm:$0xff]
    %v106 = vld [vmem:[#allocation6 + $0x60] sm:$0xff]
    %v107 = vld [vmem:[#allocation6 + $0x68] sm:$0xff]
    %v108 = vld [vmem:[#allocation6 + $0x70] sm:$0xff]
    %v109 = vld [vmem:[#allocation6 + $0x78] sm:$0xff]
    %v110 = vld [vmem:[#allocation6 + $0x80] sm:$0xff]
    %v111 = vld [vmem:[#allocation6 + $0x88] sm:$0xff]
    %v112 = vld [vmem:[#allocation6 + $0x90] sm:$0xff]
    %v113 = vld [vmem:[#allocation6 + $0x98] sm:$0xff]
    %v114 = vld [vmem:[#allocation6 + $0xa0] sm:$0xff]
    %v115 = vld [vmem:[#allocation6 + $0xa8] sm:$0xff]
    %v116 = vld [vmem:[#allocation6 + $0xb0] sm:$0xff]
    %v117 = vld [vmem:[#allocation6 + $0xb8] sm:$0xff]
    %v118 = vld [vmem:[#allocation6 + $0xc0] sm:$0xff]
    %v119 = vld [vmem:[#allocation6 + $0xc8] sm:$0xff]
    %v120 = vld [vmem:[#allocation6 + $0xd0] sm:$0xff]
    %v121 = vld [vmem:[#allocation6 + $0xd8] sm:$0xff]
    %v122 = vld [vmem:[#allocation6 + $0xe0] sm:$0xff]
    %v123 = vld [vmem:[#allocation6 + $0xe8] sm:$0xff]
    %v124 = vld [vmem:[#allocation6 + $0xf0] sm:$0xff]
    %v125 = vld [vmem:[#allocation6 + $0xf8] sm:$0xff]
    %v126 = vld [vmem:[#allocation6 + $0x100] sm:$0xff]
    %v127 = vld [vmem:[#allocation6 + $0x108] sm:$0xff]
    %v128 = vld [vmem:[#allocation6 + $0x110] sm:$0xff]
    %v129 = vld [vmem:[#allocation6 + $0x118] sm:$0xff]
    %v130 = vld [vmem:[#allocation6 + $0x120] sm:$0xff]
    %v131 = vld [vmem:[#allocation6 + $0x128] sm:$0xff]
    %v132 = vld [vmem:[#allocation6 + $0x130] sm:$0xff]
    %v133 = vld [vmem:[#allocation6 + $0x138] sm:$0xff]
    %v134 = vld [vmem:[#allocation6 + $0x140] sm:$0xff]
    %v135 = vld [vmem:[#allocation6 + $0x148] sm:$0xff]
    %v136 = vld [vmem:[#allocation6 + $0x150] sm:$0xff]
    %v137 = vld [vmem:[#allocation6 + $0x158] sm:$0xff]
    %v138 = vld [vmem:[#allocation6 + $0x160] sm:$0xff]
    %v139 = vld [vmem:[#allocation6 + $0x168] sm:$0xff]
    %v140 = vld [vmem:[#allocation6 + $0x170] sm:$0xff]
    %v141 = vld [vmem:[#allocation6 + $0x178] sm:$0xff]
    %v142 = vld [vmem:[%s2] sm:$0x7]
    %v144 = vlaneseq
    %v145 = vshrl.u32 %v144, 7
    %v146 = vsub.s32 0, %v145
    %v147 = vrot.slane %v142, %v146
    %v148 = vlaneseq
    %v149 = vshrl.u32 %v148, 7
    %v150 = vsub.s32 1, %v149
    %v151 = vrot.slane %v142, %v150
    %v152 = vlaneseq
    %v153 = vshrl.u32 %v152, 7
    %v154 = vsub.s32 2, %v153
    %v155 = vrot.slane %v142, %v154
    %159 = vmatprep.subr.mxu0 %v95
    %160 = vmatpush1.msra.mxu0 %v94
    %161 = vmatprep.subr.mxu0 %v98
    %162 = vmatpush1.msra.mxu0 %v97
    %163 = vmatprep.subr.mxu0 %v101
    %164 = vmatpush1.msra.mxu0 %v100
    %165 = vmatprep.subr.mxu0 %v104
    %166 = vmatpush1.msra.mxu0 %v103
    %167 = vmatprep.subr.mxu0 %v107
    %168 = vmatpush1.msra.mxu0 %v106
    %169 = vmatprep.subr.mxu0 %v110
    %170 = vmatpush1.msra.mxu0 %v109
    %171 = vmatprep.subr.mxu0 %v113
    %172 = vmatpush1.msra.mxu0 %v112
    %173 = vmatprep.subr.mxu0 %v116
    %174 = vmatpush1.msra.mxu0 %v115
    %175 = vmatprep.subr.mxu0 %v119
    %176 = vmatpush1.msra.mxu0 %v118
    %177 = vmatprep.subr.mxu0 %v122
    %178 = vmatpush1.msra.mxu0 %v121
    %179 = vmatprep.subr.mxu0 %v125
    %180 = vmatpush1.msra.mxu0 %v124
    %181 = vmatprep.subr.mxu0 %v128
    %182 = vmatpush1.msra.mxu0 %v127
    %183 = vmatprep.subr.mxu0 %v131
    %184 = vmatpush1.msra.mxu0 %v130
    %185 = vmatprep.subr.mxu0 %v134
    %186 = vmatpush1.msra.mxu0 %v133
    %187 = vmatprep.subr.mxu0 %v137
    %188 = vmatpush1.msra.mxu0 %v136
    %189 = vmatprep.subr.mxu0 %v140
    %190 = vmatpush1.msra.mxu0 %v139
    %191 = vmatprep.subr.mxu0 0.0
    %192 = vmatpush1.msra.mxu0 0.0
    %193 = vmatprep.subr.mxu0 0.0
    %194 = vmatpush1.msra.mxu0 0.0
    %195 = vmatprep.subr.mxu0 0.0
    %196 = vmatpush1.msra.mxu0 0.0
    %197 = vmatprep.subr.mxu0 0.0
    %198 = vmatpush1.msra.mxu0 0.0
    %199 = vmatprep.subr.mxu0 0.0
    %200 = vmatpush1.msra.mxu0 0.0
    %201 = vmatprep.subr.mxu0 0.0
    %202 = vmatpush1.msra.mxu0 0.0
    %203 = vmatprep.subr.mxu0 0.0
    %204 = vmatpush1.msra.mxu0 0.0
    %205 = vmatprep.subr.mxu0 0.0
    %206 = vmatpush1.msra.mxu0 0.0
    %207 = vmatprep.subr.mxu0 0.0
    %208 = vmatpush1.msra.mxu0 0.0
    %209 = vmatprep.subr.mxu0 0.0
    %210 = vmatpush1.msra.mxu0 0.0
    %211 = vmatprep.subr.mxu0 0.0
    %212 = vmatpush1.msra.mxu0 0.0
    %213 = vmatprep.subr.mxu0 0.0
    %214 = vmatpush1.msra.mxu0 0.0
    %215 = vmatprep.subr.mxu0 0.0
    %216 = vmatpush1.msra.mxu0 0.0
    %217 = vmatprep.subr.mxu0 0.0
    %218 = vmatpush1.msra.mxu0 0.0
    %219 = vmatprep.subr.mxu0 0.0
    %220 = vmatpush1.msra.mxu0 0.0
    %221 = vmatprep.subr.mxu0 0.0
    %222 = vmatpush1.msra.mxu0 0.0
    %223 = vmatprep.mubr.f32.mxu0 0.0
    %224 = vmatmul.mubr.f32.gmra.mrb[0].mxu0 %v93
    %v225 = vpop.f32.mrb[0].mxu0
    %v226 = vadd.f32 %v147, %v225
    %v227 = vpop.f32.mrb[0].mxu0
    %v228 = vadd.f32 %v151, %v227
    %229 = vdwg.mxu0
    %230 = vmatprep.subr.mxu0 0.0
    %231 = vmatpush1.msra.mxu0 %v96
    %232 = vmatprep.subr.mxu0 0.0
    %233 = vmatpush1.msra.mxu0 %v99
    %234 = vmatprep.subr.mxu0 0.0
    %235 = vmatpush1.msra.mxu0 %v102
    %236 = vmatprep.subr.mxu0 0.0
    %237 = vmatpush1.msra.mxu0 %v105
    %238 = vmatprep.subr.mxu0 0.0
    %239 = vmatpush1.msra.mxu0 %v108
    %240 = vmatprep.subr.mxu0 0.0
    %241 = vmatpush1.msra.mxu0 %v111
    %242 = vmatprep.subr.mxu0 0.0
    %243 = vmatpush1.msra.mxu0 %v114
    %244 = vmatprep.subr.mxu0 0.0
    %245 = vmatpush1.msra.mxu0 %v117
    %246 = vmatprep.subr.mxu0 0.0
    %247 = vmatpush1.msra.mxu0 %v120
    %248 = vmatprep.subr.mxu0 0.0
    %249 = vmatpush1.msra.mxu0 %v123
    %250 = vmatprep.subr.mxu0 0.0
    %251 = vmatpush1.msra.mxu0 %v126
    %252 = vmatprep.subr.mxu0 0.0
    %253 = vmatpush1.msra.mxu0 %v129
    %254 = vmatprep.subr.mxu0 0.0
    %255 = vmatpush1.msra.mxu0 %v132
    %256 = vmatprep.subr.mxu0 0.0
    %257 = vmatpush1.msra.mxu0 %v135
    %258 = vmatprep.subr.mxu0 0.0
    %259 = vmatpush1.msra.mxu0 %v138
    %260 = vmatprep.subr.mxu0 0.0
    %261 = vmatpush1.msra.mxu0 %v141
    %262 = vmatprep.subr.mxu0 0.0
    %263 = vmatpush1.msra.mxu0 0.0
    %264 = vmatprep.subr.mxu0 0.0
    %265 = vmatpush1.msra.mxu0 0.0
    %266 = vmatprep.subr.mxu0 0.0
    %267 = vmatpush1.msra.mxu0 0.0
    %268 = vmatprep.subr.mxu0 0.0
    %269 = vmatpush1.msra.mxu0 0.0
    %270 = vmatprep.subr.mxu0 0.0
    %271 = vmatpush1.msra.mxu0 0.0
    %272 = vmatprep.subr.mxu0 0.0
    %273 = vmatpush1.msra.mxu0 0.0
    %274 = vmatprep.subr.mxu0 0.0
    %275 = vmatpush1.msra.mxu0 0.0
    %276 = vmatprep.subr.mxu0 0.0
    %277 = vmatpush1.msra.mxu0 0.0
    %278 = vmatprep.subr.mxu0 0.0
    %279 = vmatpush1.msra.mxu0 0.0
    %280 = vmatprep.subr.mxu0 0.0
    %281 = vmatpush1.msra.mxu0 0.0
    %282 = vmatprep.subr.mxu0 0.0
    %283 = vmatpush1.msra.mxu0 0.0
    %284 = vmatprep.subr.mxu0 0.0
    %285 = vmatpush1.msra.mxu0 0.0
    %286 = vmatprep.subr.mxu0 0.0
    %287 = vmatpush1.msra.mxu0 0.0
    %288 = vmatprep.subr.mxu0 0.0
    %289 = vmatpush1.msra.mxu0 0.0
    %290 = vmatprep.subr.mxu0 0.0
    %291 = vmatpush1.msra.mxu0 0.0
    %292 = vmatprep.subr.mxu0 0.0
    %293 = vmatpush1.msra.mxu0 0.0
    %294 = vmatprep.mubr.f32.mxu0 0.0
    %295 = vmatmul.mubr.f32.gmra.mrb[0].mxu0 %v93
    %v296 = vpop.f32.mrb[0].mxu0
    %v297 = vadd.f32 %v155, %v296
    %v298 = vpop.f32.mrb[0].mxu0
    %299 = vdwg.mxu0
    %300 = vst [vmem:[#allocation2] sm:$0xff] %v226
    %301 = vst [vmem:[#allocation2 + $0x8] sm:$0xff] %v228
    %302 = vst [vmem:[#allocation2 + $0x10] sm:$0xff] %v297
    %v303 = vld [vmem:[#allocation8] sm:$0xff]
    %v304 = vld [vmem:[#allocation8 + $0x8] sm:$0xff]
    %v305 = vld [vmem:[#allocation8 + $0x10] sm:$0xff]
    %v306 = vld [vmem:[#allocation8 + $0x18] sm:$0xff]
    %v307 = vld [vmem:[#allocation8 + $0x20] sm:$0xff]
    %v308 = vld [vmem:[#allocation8 + $0x28] sm:$0xff]
    %v309 = vld [vmem:[#allocation8 + $0x30] sm:$0xff]
    %v310 = vld [vmem:[#allocation8 + $0x38] sm:$0xff]
    %v311 = vld [vmem:[#allocation8 + $0x40] sm:$0xff]
    %v312 = vld [vmem:[#allocation8 + $0x48] sm:$0xff]
    %v313 = vld [vmem:[#allocation8 + $0x50] sm:$0xff]
    %v314 = vld [vmem:[#allocation8 + $0x58] sm:$0xff]
    %v315 = vld [vmem:[#allocation8 + $0x60] sm:$0xff]
    %v316 = vld [vmem:[#allocation8 + $0x68] sm:$0xff]
    %v317 = vld [vmem:[#allocation8 + $0x70] sm:$0xff]
    %v318 = vld [vmem:[#allocation8 + $0x78] sm:$0xff]
    %v319 = vld [vmem:[#allocation8 + $0x80] sm:$0xff]
    %v320 = vld [vmem:[#allocation8 + $0x88] sm:$0xff]
    %v321 = vld [vmem:[#allocation8 + $0x90] sm:$0xff]
    %v322 = vld [vmem:[#allocation8 + $0x98] sm:$0xff]
    %v323 = vld [vmem:[#allocation8 + $0xa0] sm:$0xff]
    %v324 = vld [vmem:[#allocation8 + $0xa8] sm:$0xff]
    %v325 = vld [vmem:[#allocation8 + $0xb0] sm:$0xff]
    %v326 = vld [vmem:[#allocation8 + $0xb8] sm:$0xff]
    %v327 = vld [vmem:[#allocation8 + $0xc0] sm:$0xff]
    %v328 = vld [vmem:[#allocation8 + $0xc8] sm:$0xff]
    %v329 = vld [vmem:[#allocation8 + $0xd0] sm:$0xff]
    %v330 = vld [vmem:[#allocation8 + $0xd8] sm:$0xff]
    %v331 = vld [vmem:[#allocation8 + $0xe0] sm:$0xff]
    %v332 = vld [vmem:[#allocation8 + $0xe8] sm:$0xff]
    %v333 = vld [vmem:[#allocation8 + $0xf0] sm:$0xff]
    %v334 = vld [vmem:[#allocation8 + $0xf8] sm:$0xff]
    %v335 = vld [vmem:[#allocation8 + $0x100] sm:$0xff]
    %v336 = vld [vmem:[#allocation8 + $0x108] sm:$0xff]
    %v337 = vld [vmem:[#allocation8 + $0x110] sm:$0xff]
    %v338 = vld [vmem:[#allocation8 + $0x118] sm:$0xff]
    %v339 = vld [vmem:[#allocation8 + $0x120] sm:$0xff]
    %v340 = vld [vmem:[#allocation8 + $0x128] sm:$0xff]
    %v341 = vld [vmem:[#allocation8 + $0x130] sm:$0xff]
    %v342 = vld [vmem:[#allocation8 + $0x138] sm:$0xff]
    %v343 = vld [vmem:[#allocation8 + $0x140] sm:$0xff]
    %v344 = vld [vmem:[#allocation8 + $0x148] sm:$0xff]
    %v345 = vld [vmem:[#allocation8 + $0x150] sm:$0xff]
    %v346 = vld [vmem:[#allocation8 + $0x158] sm:$0xff]
    %v347 = vld [vmem:[#allocation8 + $0x160] sm:$0xff]
    %v348 = vld [vmem:[#allocation8 + $0x168] sm:$0xff]
    %v349 = vld [vmem:[#allocation8 + $0x170] sm:$0xff]
    %v350 = vld [vmem:[#allocation8 + $0x178] sm:$0xff]
    %v351 = vld [vmem:[#allocation9] sm:$0xff]
    %v352 = vld [vmem:[#allocation9 + $0x8] sm:$0xff]
    %v353 = vld [vmem:[#allocation9 + $0x10] sm:$0xff]
    %v354 = vld [vmem:[#allocation9 + $0x18] sm:$0xff]
    %v355 = vld [vmem:[#allocation9 + $0x20] sm:$0xff]
    %v356 = vld [vmem:[#allocation9 + $0x28] sm:$0xff]
    %v357 = vld [vmem:[#allocation9 + $0x30] sm:$0xff]
    %v358 = vld [vmem:[#allocation9 + $0x38] sm:$0xff]
    %v359 = vld [vmem:[#allocation9 + $0x40] sm:$0xff]
    %v360 = vld [vmem:[#allocation9 + $0x48] sm:$0xff]
    %v361 = vld [vmem:[#allocation9 + $0x50] sm:$0xff]
    %v362 = vld [vmem:[#allocation9 + $0x58] sm:$0xff]
    %v363 = vld [vmem:[#allocation9 + $0x60] sm:$0xff]
    %v364 = vld [vmem:[#allocation9 + $0x68] sm:$0xff]
    %v365 = vld [vmem:[#allocation9 + $0x70] sm:$0xff]
    %v366 = vld [vmem:[#allocation9 + $0x78] sm:$0xff]
    %v367 = vld [vmem:[#allocation11] sm:$0xff]
    %v368 = vld [vmem:[#allocation11 + $0x8] sm:$0xff]
    %v369 = vld [vmem:[#allocation11 + $0x10] sm:$0xff]
    %v370 = vld [vmem:[#allocation11 + $0x18] sm:$0xff]
    %v371 = vld [vmem:[#allocation11 + $0x20] sm:$0xff]
    %v372 = vld [vmem:[#allocation11 + $0x28] sm:$0xff]
    %v373 = vld [vmem:[#allocation11 + $0x30] sm:$0xff]
    %v374 = vld [vmem:[#allocation11 + $0x38] sm:$0xff]
    %v375 = vld [vmem:[#allocation11 + $0x40] sm:$0xff]
    %v376 = vld [vmem:[#allocation11 + $0x48] sm:$0xff]
    %v377 = vld [vmem:[#allocation11 + $0x50] sm:$0xff]
    %v378 = vld [vmem:[#allocation11 + $0x58] sm:$0xff]
    %v379 = vld [vmem:[#allocation11 + $0x60] sm:$0xff]
    %v380 = vld [vmem:[#allocation11 + $0x68] sm:$0xff]
    %v381 = vld [vmem:[#allocation11 + $0x70] sm:$0xff]
    %v382 = vld [vmem:[#allocation11 + $0x78] sm:$0xff]
    %v383 = vld [vmem:[#allocation2] ss:$8 sm:$0x7]
    %384 = vmatprep.subr.mxu0 %v304
    %385 = vmatpush1.msra.mxu0 %v303
    %386 = vmatprep.subr.mxu0 %v307
    %387 = vmatpush1.msra.mxu0 %v306
    %388 = vmatprep.subr.mxu0 %v310
    %389 = vmatpush1.msra.mxu0 %v309
    %390 = vmatprep.subr.mxu0 %v313
    %391 = vmatpush1.msra.mxu0 %v312
    %392 = vmatprep.subr.mxu0 %v316
    %393 = vmatpush1.msra.mxu0 %v315
    %394 = vmatprep.subr.mxu0 %v319
    %395 = vmatpush1.msra.mxu0 %v318
    %396 = vmatprep.subr.mxu0 %v322
    %397 = vmatpush1.msra.mxu0 %v321
    %398 = vmatprep.subr.mxu0 %v325
    %399 = vmatpush1.msra.mxu0 %v324
    %400 = vmatprep.subr.mxu0 %v328
    %401 = vmatpush1.msra.mxu0 %v327
    %402 = vmatprep.subr.mxu0 %v331
    %403 = vmatpush1.msra.mxu0 %v330
    %404 = vmatprep.subr.mxu0 %v334
    %405 = vmatpush1.msra.mxu0 %v333
    %406 = vmatprep.subr.mxu0 %v337
    %407 = vmatpush1.msra.mxu0 %v336
    %408 = vmatprep.subr.mxu0 %v340
    %409 = vmatpush1.msra.mxu0 %v339
    %410 = vmatprep.subr.mxu0 %v343
    %411 = vmatpush1.msra.mxu0 %v342
    %412 = vmatprep.subr.mxu0 %v346
    %413 = vmatpush1.msra.mxu0 %v345
    %414 = vmatprep.subr.mxu0 %v349
    %415 = vmatpush1.msra.mxu0 %v348
    %416 = vmatprep.subr.mxu0 0.0
    %417 = vmatpush1.msra.mxu0 0.0
    %418 = vmatprep.subr.mxu0 0.0
    %419 = vmatpush1.msra.mxu0 0.0
    %420 = vmatprep.subr.mxu0 0.0
    %421 = vmatpush1.msra.mxu0 0.0
    %422 = vmatprep.subr.mxu0 0.0
    %423 = vmatpush1.msra.mxu0 0.0
    %424 = vmatprep.subr.mxu0 0.0
    %425 = vmatpush1.msra.mxu0 0.0
    %426 = vmatprep.subr.mxu0 0.0
    %427 = vmatpush1.msra.mxu0 0.0
    %428 = vmatprep.subr.mxu0 0.0
    %429 = vmatpush1.msra.mxu0 0.0
    %430 = vmatprep.subr.mxu0 0.0
    %431 = vmatpush1.msra.mxu0 0.0
    %432 = vmatprep.subr.mxu0 0.0
    %433 = vmatpush1.msra.mxu0 0.0
    %434 = vmatprep.subr.mxu0 0.0
    %435 = vmatpush1.msra.mxu0 0.0
    %436 = vmatprep.subr.mxu0 0.0
    %437 = vmatpush1.msra.mxu0 0.0
    %438 = vmatprep.subr.mxu0 0.0
    %439 = vmatpush1.msra.mxu0 0.0
    %440 = vmatprep.subr.mxu0 0.0
    %441 = vmatpush1.msra.mxu0 0.0
    %442 = vmatprep.subr.mxu0 0.0
    %443 = vmatpush1.msra.mxu0 0.0
    %444 = vmatprep.subr.mxu0 0.0
    %445 = vmatpush1.msra.mxu0 0.0
    %446 = vmatprep.subr.mxu0 0.0
    %447 = vmatpush1.msra.mxu0 0.0
    %448 = vmatprep.mubr.f32.mxu0 0.0
    %449 = vmatmul.mubr.f32.gmra.mrb[0].mxu0 0.0
    %v450 = vpop.f32.mrb[0].mxu0
    %v451 = vadd.f32 0.0, %v450
    %v452 = vpop.f32.mrb[0].mxu0
    %v453 = vadd.f32 0.0, %v452
    %454 = vdwg.mxu0
    %455 = vmatprep.subr.mxu0 0.0
    %456 = vmatpush1.msra.mxu0 %v305
    %457 = vmatprep.subr.mxu0 0.0
    %458 = vmatpush1.msra.mxu0 %v308
    %459 = vmatprep.subr.mxu0 0.0
    %460 = vmatpush1.msra.mxu0 %v311
    %461 = vmatprep.subr.mxu0 0.0
    %462 = vmatpush1.msra.mxu0 %v314
    %463 = vmatprep.subr.mxu0 0.0
    %464 = vmatpush1.msra.mxu0 %v317
    %465 = vmatprep.subr.mxu0 0.0
    %466 = vmatpush1.msra.mxu0 %v320
    %467 = vmatprep.subr.mxu0 0.0
    %468 = vmatpush1.msra.mxu0 %v323
    %469 = vmatprep.subr.mxu0 0.0
    %470 = vmatpush1.msra.mxu0 %v326
    %471 = vmatprep.subr.mxu0 0.0
    %472 = vmatpush1.msra.mxu0 %v329
    %473 = vmatprep.subr.mxu0 0.0
    %474 = vmatpush1.msra.mxu0 %v332
    %475 = vmatprep.subr.mxu0 0.0
    %476 = vmatpush1.msra.mxu0 %v335
    %477 = vmatprep.subr.mxu0 0.0
    %478 = vmatpush1.msra.mxu0 %v338
    %479 = vmatprep.subr.mxu0 0.0
    %480 = vmatpush1.msra.mxu0 %v341
    %481 = vmatprep.subr.mxu0 0.0
    %482 = vmatpush1.msra.mxu0 %v344
    %483 = vmatprep.subr.mxu0 0.0
    %484 = vmatpush1.msra.mxu0 %v347
    %485 = vmatprep.subr.mxu0 0.0
    %486 = vmatpush1.msra.mxu0 %v350
    %487 = vmatprep.subr.mxu0 0.0
    %488 = vmatpush1.msra.mxu0 0.0
    %489 = vmatprep.subr.mxu0 0.0
    %490 = vmatpush1.msra.mxu0 0.0
    %491 = vmatprep.subr.mxu0 0.0
    %492 = vmatpush1.msra.mxu0 0.0
    %493 = vmatprep.subr.mxu0 0.0
    %494 = vmatpush1.msra.mxu0 0.0
    %495 = vmatprep.subr.mxu0 0.0
    %496 = vmatpush1.msra.mxu0 0.0
    %497 = vmatprep.subr.mxu0 0.0
    %498 = vmatpush1.msra.mxu0 0.0
    %499 = vmatprep.subr.mxu0 0.0
    %500 = vmatpush1.msra.mxu0 0.0
    %501 = vmatprep.subr.mxu0 0.0
    %502 = vmatpush1.msra.mxu0 0.0
    %503 = vmatprep.subr.mxu0 0.0
    %504 = vmatpush1.msra.mxu0 0.0
    %505 = vmatprep.subr.mxu0 0.0
    %506 = vmatpush1.msra.mxu0 0.0
    %507 = vmatprep.subr.mxu0 0.0
    %508 = vmatpush1.msra.mxu0 0.0
    %509 = vmatprep.subr.mxu0 0.0
    %510 = vmatpush1.msra.mxu0 0.0
    %511 = vmatprep.subr.mxu0 0.0
    %512 = vmatpush1.msra.mxu0 0.0
    %513 = vmatprep.subr.mxu0 0.0
    %514 = vmatpush1.msra.mxu0 0.0
    %515 = vmatprep.subr.mxu0 0.0
    %516 = vmatpush1.msra.mxu0 0.0
    %517 = vmatprep.subr.mxu0 0.0
    %518 = vmatpush1.msra.mxu0 0.0
    %519 = vmatprep.mubr.f32.mxu0 0.0
    %520 = vmatmul.mubr.f32.gmra.mrb[0].mxu0 0.0
    %v521 = vpop.f32.mrb[0].mxu0
    %v522 = vadd.f32 0.0, %v521
    %v523 = vpop.f32.mrb[0].mxu0
    %524 = vdwg.mxu0
    %v528 = vcombine.low %v451, %v453
    %v530 = vunpack.c.l.s4 1966171168
    %v531 = vunpack.c.0.s8 %v530
    %v532 = vlaneseq
    %v533 = vshrl.u32 %v532, 7
    %v534 = vsub.s32 %v531, %v533
    %v535 = vrot.slane %v528, %v534
    %v537 = vunpack.c.l.s4 1966171168
    %v538 = vunpack.c.0.s8 %v537
    %v539 = vlaneseq
    %v540 = vshrl.u32 %v539, 7
    %v541 = vsub.s32 %v538, %v540
    %v542 = vrot.slane %v522, %v541
    %v543 = vcombine.low %v535, %v542
    %v545 = vunpack.c.l.s4 1966171168
    %v546 = vunpack.c.0.s8 %v545
    %v547 = vlaneseq
    %v548 = vshrl.u32 %v547, 7
    %v549 = vsub.s32 %v546, %v548
    %v550 = vrot.slane %v543, %v549
    %v552 = vadd.f32 %v383, %v550
    %553 = vmatprep.subr.mxu0 0.0
    %554 = vmatpush1.msra.mxu0 %v351
    %555 = vmatprep.subr.mxu0 0.0
    %556 = vmatpush1.msra.mxu0 %v352
    %557 = vmatprep.subr.mxu0 0.0
    %558 = vmatpush1.msra.mxu0 %v353
    %559 = vmatprep.subr.mxu0 0.0
    %560 = vmatpush1.msra.mxu0 %v354
    %561 = vmatprep.subr.mxu0 0.0
    %562 = vmatpush1.msra.mxu0 %v355
    %563 = vmatprep.subr.mxu0 0.0
    %564 = vmatpush1.msra.mxu0 %v356
    %565 = vmatprep.subr.mxu0 0.0
    %566 = vmatpush1.msra.mxu0 %v357
    %567 = vmatprep.subr.mxu0 0.0
    %568 = vmatpush1.msra.mxu0 %v358
    %569 = vmatprep.subr.mxu0 0.0
    %570 = vmatpush1.msra.mxu0 %v359
    %571 = vmatprep.subr.mxu0 0.0
    %572 = vmatpush1.msra.mxu0 %v360
    %573 = vmatprep.subr.mxu0 0.0
    %574 = vmatpush1.msra.mxu0 %v361
    %575 = vmatprep.subr.mxu0 0.0
    %576 = vmatpush1.msra.mxu0 %v362
    %577 = vmatprep.subr.mxu0 0.0
    %578 = vmatpush1.msra.mxu0 %v363
    %579 = vmatprep.subr.mxu0 0.0
    %580 = vmatpush1.msra.mxu0 %v364
    %581 = vmatprep.subr.mxu0 0.0
    %582 = vmatpush1.msra.mxu0 %v365
    %583 = vmatprep.subr.mxu0 0.0
    %584 = vmatpush1.msra.mxu0 %v366
    %585 = vmatprep.subr.mxu0 0.0
    %586 = vmatpush1.msra.mxu0 0.0
    %587 = vmatprep.subr.mxu0 0.0
    %588 = vmatpush1.msra.mxu0 0.0
    %589 = vmatprep.subr.mxu0 0.0
    %590 = vmatpush1.msra.mxu0 0.0
    %591 = vmatprep.subr.mxu0 0.0
    %592 = vmatpush1.msra.mxu0 0.0
    %593 = vmatprep.subr.mxu0 0.0
    %594 = vmatpush1.msra.mxu0 0.0
    %595 = vmatprep.subr.mxu0 0.0
    %596 = vmatpush1.msra.mxu0 0.0
    %597 = vmatprep.subr.mxu0 0.0
    %598 = vmatpush1.msra.mxu0 0.0
    %599 = vmatprep.subr.mxu0 0.0
    %600 = vmatpush1.msra.mxu0 0.0
    %601 = vmatprep.subr.mxu0 0.0
    %602 = vmatpush1.msra.mxu0 0.0
    %603 = vmatprep.subr.mxu0 0.0
    %604 = vmatpush1.msra.mxu0 0.0
    %605 = vmatprep.subr.mxu0 0.0
    %606 = vmatpush1.msra.mxu0 0.0
    %607 = vmatprep.subr.mxu0 0.0
    %608 = vmatpush1.msra.mxu0 0.0
    %609 = vmatprep.subr.mxu0 0.0
    %610 = vmatpush1.msra.mxu0 0.0
    %611 = vmatprep.subr.mxu0 0.0
    %612 = vmatpush1.msra.mxu0 0.0
    %613 = vmatprep.subr.mxu0 0.0
    %614 = vmatpush1.msra.mxu0 0.0
    %615 = vmatprep.subr.mxu0 0.0
    %616 = vmatpush1.msra.mxu0 0.0
    %617 = vmatprep.mubr.f32.mxu0 0.0
    %618 = vmatmul.mubr.f32.gmra.mrb[0].mxu0 0.0
    %v619 = vpop.f32.mrb[0].mxu0
    %v620 = vadd.f32 0.0, %v619
    %v621 = vpop.f32.mrb[0].mxu0
    %622 = vdwg.mxu0
    %v623 = vadd.f32 %v552, %v620
    %v624 = vxor.u32 %v623, 2147483648
    %v625 = vmul.f32 %v624, 1.442695
    %v626 = vpow.pop %v625
    %v627 = vadd.f32 %v626, 1.0
    %v628 = vrcp.pop %v627
    %v629 = vmul.f32 1.0, %v628
    %v630 = vsub.f32 1.0, %v629
    %v632 = vrot.slane %v552, 2
    %v634 = vtanh.pop %v632
    %v635 = vmul.f32 %v629, %v634
    %v636 = vmul.f32 %v630, 0.0
    %v637 = vadd.f32 %v635, %v636
    %638 = vmatprep.subr.mxu0 0.0
    %639 = vmatpush1.msra.mxu0 %v367
    %640 = vmatprep.subr.mxu0 0.0
    %641 = vmatpush1.msra.mxu0 %v368
    %642 = vmatprep.subr.mxu0 0.0
    %643 = vmatpush1.msra.mxu0 %v369
    %644 = vmatprep.subr.mxu0 0.0
    %645 = vmatpush1.msra.mxu0 %v370
    %646 = vmatprep.subr.mxu0 0.0
    %647 = vmatpush1.msra.mxu0 %v371
    %648 = vmatprep.subr.mxu0 0.0
    %649 = vmatpush1.msra.mxu0 %v372
    %650 = vmatprep.subr.mxu0 0.0
    %651 = vmatpush1.msra.mxu0 %v373
    %652 = vmatprep.subr.mxu0 0.0
    %653 = vmatpush1.msra.mxu0 %v374
    %654 = vmatprep.subr.mxu0 0.0
    %655 = vmatpush1.msra.mxu0 %v375
    %656 = vmatprep.subr.mxu0 0.0
    %657 = vmatpush1.msra.mxu0 %v376
    %658 = vmatprep.subr.mxu0 0.0
    %659 = vmatpush1.msra.mxu0 %v377
    %660 = vmatprep.subr.mxu0 0.0
    %661 = vmatpush1.msra.mxu0 %v378
    %662 = vmatprep.subr.mxu0 0.0
    %663 = vmatpush1.msra.mxu0 %v379
    %664 = vmatprep.subr.mxu0 0.0
    %665 = vmatpush1.msra.mxu0 %v380
    %666 = vmatprep.subr.mxu0 0.0
    %667 = vmatpush1.msra.mxu0 %v381
    %668 = vmatprep.subr.mxu0 0.0
    %669 = vmatpush1.msra.mxu0 %v382
    %670 = vmatprep.subr.mxu0 0.0
    %671 = vmatpush1.msra.mxu0 0.0
    %672 = vmatprep.subr.mxu0 0.0
    %673 = vmatpush1.msra.mxu0 0.0
    %674 = vmatprep.subr.mxu0 0.0
    %675 = vmatpush1.msra.mxu0 0.0
    %676 = vmatprep.subr.mxu0 0.0
    %677 = vmatpush1.msra.mxu0 0.0
    %678 = vmatprep.subr.mxu0 0.0
    %679 = vmatpush1.msra.mxu0 0.0
    %680 = vmatprep.subr.mxu0 0.0
    %681 = vmatpush1.msra.mxu0 0.0
    %682 = vmatprep.subr.mxu0 0.0
    %683 = vmatpush1.msra.mxu0 0.0
    %684 = vmatprep.subr.mxu0 0.0
    %685 = vmatpush1.msra.mxu0 0.0
    %686 = vmatprep.subr.mxu0 0.0
    %687 = vmatpush1.msra.mxu0 0.0
    %688 = vmatprep.subr.mxu0 0.0
    %689 = vmatpush1.msra.mxu0 0.0
    %690 = vmatprep.subr.mxu0 0.0
    %691 = vmatpush1.msra.mxu0 0.0
    %692 = vmatprep.subr.mxu0 0.0
    %693 = vmatpush1.msra.mxu0 0.0
    %694 = vmatprep.subr.mxu0 0.0
    %695 = vmatpush1.msra.mxu0 0.0
    %696 = vmatprep.subr.mxu0 0.0
    %697 = vmatpush1.msra.mxu0 0.0
    %698 = vmatprep.subr.mxu0 0.0
    %699 = vmatpush1.msra.mxu0 0.0
    %700 = vmatprep.subr.mxu0 0.0
    %701 = vmatpush1.msra.mxu0 0.0
    %702 = vmatprep.mubr.f32.mxu0 0.0
    %703 = vmatmul.mubr.f32.gmra.mrb[0].mxu0 %v637
    %v704 = vpop.f32.mrb[0].mxu0
    %v705 = vadd.f32 0.0, %v704
    %v706 = vpop.f32.mrb[0].mxu0
    %707 = vdwg.mxu0
    %v708 = vrot.slane %v552, 1
    %v710 = vadd.f32 %v708, %v705
    %v711 = vxor.u32 %v710, 2147483648
    %v712 = vmul.f32 %v711, 1.442695
    %v713 = vpow.pop %v712
    %v714 = vadd.f32 %v713, 1.0
    %v715 = vrcp.pop %v714
    %v716 = vmul.f32 1.0, %v715
    %v717 = vtanh.pop %v637
    %v718 = vmul.f32 %v716, %v717
    %719 = vst [vmem:[#allocation12] sm:$0x1] %v718
    %720 = vst [vmem:[#allocation13] sm:$0x1] %v637
    %s721 = scalar_lea.vmem [#allocation2], 1
    %v722 = vld [vmem:[%s721] ss:$8 sm:$0x7]
    %723 = vmatprep.subr.mxu0 %v304
    %724 = vmatpush1.msra.mxu0 %v303
    %725 = vmatprep.subr.mxu0 %v307
    %726 = vmatpush1.msra.mxu0 %v306
    %727 = vmatprep.subr.mxu0 %v310
    %728 = vmatpush1.msra.mxu0 %v309
    %729 = vmatprep.subr.mxu0 %v313
    %730 = vmatpush1.msra.mxu0 %v312
    %731 = vmatprep.subr.mxu0 %v316
    %732 = vmatpush1.msra.mxu0 %v315
    %733 = vmatprep.subr.mxu0 %v319
    %734 = vmatpush1.msra.mxu0 %v318
    %735 = vmatprep.subr.mxu0 %v322
    %736 = vmatpush1.msra.mxu0 %v321
    %737 = vmatprep.subr.mxu0 %v325
    %738 = vmatpush1.msra.mxu0 %v324
    %739 = vmatprep.subr.mxu0 %v328
    %740 = vmatpush1.msra.mxu0 %v327
    %741 = vmatprep.subr.mxu0 %v331
    %742 = vmatpush1.msra.mxu0 %v330
    %743 = vmatprep.subr.mxu0 %v334
    %744 = vmatpush1.msra.mxu0 %v333
    %745 = vmatprep.subr.mxu0 %v337
    %746 = vmatpush1.msra.mxu0 %v336
    %747 = vmatprep.subr.mxu0 %v340
    %748 = vmatpush1.msra.mxu0 %v339
    %749 = vmatprep.subr.mxu0 %v343
    %750 = vmatpush1.msra.mxu0 %v342
    %751 = vmatprep.subr.mxu0 %v346
    %752 = vmatpush1.msra.mxu0 %v345
    %753 = vmatprep.subr.mxu0 %v349
    %754 = vmatpush1.msra.mxu0 %v348
    %755 = vmatprep.subr.mxu0 0.0
    %756 = vmatpush1.msra.mxu0 0.0
    %757 = vmatprep.subr.mxu0 0.0
    %758 = vmatpush1.msra.mxu0 0.0
    %759 = vmatprep.subr.mxu0 0.0
    %760 = vmatpush1.msra.mxu0 0.0
    %761 = vmatprep.subr.mxu0 0.0
    %762 = vmatpush1.msra.mxu0 0.0
    %763 = vmatprep.subr.mxu0 0.0
    %764 = vmatpush1.msra.mxu0 0.0
    %765 = vmatprep.subr.mxu0 0.0
    %766 = vmatpush1.msra.mxu0 0.0
    %767 = vmatprep.subr.mxu0 0.0
    %768 = vmatpush1.msra.mxu0 0.0
    %769 = vmatprep.subr.mxu0 0.0
    %770 = vmatpush1.msra.mxu0 0.0
    %771 = vmatprep.subr.mxu0 0.0
    %772 = vmatpush1.msra.mxu0 0.0
    %773 = vmatprep.subr.mxu0 0.0
    %774 = vmatpush1.msra.mxu0 0.0
    %775 = vmatprep.subr.mxu0 0.0
    %776 = vmatpush1.msra.mxu0 0.0
    %777 = vmatprep.subr.mxu0 0.0
    %778 = vmatpush1.msra.mxu0 0.0
    %779 = vmatprep.subr.mxu0 0.0
    %780 = vmatpush1.msra.mxu0 0.0
    %781 = vmatprep.subr.mxu0 0.0
    %782 = vmatpush1.msra.mxu0 0.0
    %783 = vmatprep.subr.mxu0 0.0
    %784 = vmatpush1.msra.mxu0 0.0
    %785 = vmatprep.subr.mxu0 0.0
    %786 = vmatpush1.msra.mxu0 0.0
    %787 = vmatprep.mubr.f32.mxu0 0.0
    %788 = vmatmul.mubr.f32.gmra.mrb[0].mxu0 %v718
    %v789 = vpop.f32.mrb[0].mxu0
    %v790 = vadd.f32 0.0, %v789
    %v791 = vpop.f32.mrb[0].mxu0
    %v792 = vadd.f32 0.0, %v791
    %793 = vdwg.mxu0
    %794 = vmatprep.subr.mxu0 0.0
    %795 = vmatpush1.msra.mxu0 %v305
    %796 = vmatprep.subr.mxu0 0.0
    %797 = vmatpush1.msra.mxu0 %v308
    %798 = vmatprep.subr.mxu0 0.0
    %799 = vmatpush1.msra.mxu0 %v311
    %800 = vmatprep.subr.mxu0 0.0
    %801 = vmatpush1.msra.mxu0 %v314
    %802 = vmatprep.subr.mxu0 0.0
    %803 = vmatpush1.msra.mxu0 %v317
    %804 = vmatprep.subr.mxu0 0.0
    %805 = vmatpush1.msra.mxu0 %v320
    %806 = vmatprep.subr.mxu0 0.0
    %807 = vmatpush1.msra.mxu0 %v323
    %808 = vmatprep.subr.mxu0 0.0
    %809 = vmatpush1.msra.mxu0 %v326
    %810 = vmatprep.subr.mxu0 0.0
    %811 = vmatpush1.msra.mxu0 %v329
    %812 = vmatprep.subr.mxu0 0.0
    %813 = vmatpush1.msra.mxu0 %v332
    %814 = vmatprep.subr.mxu0 0.0
    %815 = vmatpush1.msra.mxu0 %v335
    %816 = vmatprep.subr.mxu0 0.0
    %817 = vmatpush1.msra.mxu0 %v338
    %818 = vmatprep.subr.mxu0 0.0
    %819 = vmatpush1.msra.mxu0 %v341
    %820 = vmatprep.subr.mxu0 0.0
    %821 = vmatpush1.msra.mxu0 %v344
    %822 = vmatprep.subr.mxu0 0.0
    %823 = vmatpush1.msra.mxu0 %v347
    %824 = vmatprep.subr.mxu0 0.0
    %825 = vmatpush1.msra.mxu0 %v350
    %826 = vmatprep.subr.mxu0 0.0
    %827 = vmatpush1.msra.mxu0 0.0
    %828 = vmatprep.subr.mxu0 0.0
    %829 = vmatpush1.msra.mxu0 0.0
    %830 = vmatprep.subr.mxu0 0.0
    %831 = vmatpush1.msra.mxu0 0.0
    %832 = vmatprep.subr.mxu0 0.0
    %833 = vmatpush1.msra.mxu0 0.0
    %834 = vmatprep.subr.mxu0 0.0
    %835 = vmatpush1.msra.mxu0 0.0
    %836 = vmatprep.subr.mxu0 0.0
    %837 = vmatpush1.msra.mxu0 0.0
    %838 = vmatprep.subr.mxu0 0.0
    %839 = vmatpush1.msra.mxu0 0.0
    %840 = vmatprep.subr.mxu0 0.0
    %841 = vmatpush1.msra.mxu0 0.0
    %842 = vmatprep.subr.mxu0 0.0
    %843 = vmatpush1.msra.mxu0 0.0
    %844 = vmatprep.subr.mxu0 0.0
    %845 = vmatpush1.msra.mxu0 0.0
    %846 = vmatprep.subr.mxu0 0.0
    %847 = vmatpush1.msra.mxu0 0.0
    %848 = vmatprep.subr.mxu0 0.0
    %849 = vmatpush1.msra.mxu0 0.0
    %850 = vmatprep.subr.mxu0 0.0
    %851 = vmatpush1.msra.mxu0 0.0
    %852 = vmatprep.subr.mxu0 0.0
    %853 = vmatpush1.msra.mxu0 0.0
    %854 = vmatprep.subr.mxu0 0.0
    %855 = vmatpush1.msra.mxu0 0.0
    %856 = vmatprep.subr.mxu0 0.0
    %857 = vmatpush1.msra.mxu0 0.0
    %858 = vmatprep.mubr.f32.mxu0 0.0
    %859 = vmatmul.mubr.f32.gmra.mrb[0].mxu0 %v718
    %v860 = vpop.f32.mrb[0].mxu0
    %v861 = vadd.f32 0.0, %v860
    %v862 = vpop.f32.mrb[0].mxu0
    %863 = vdwg.mxu0
    %v867 = vcombine.low %v790, %v792
    %v869 = vunpack.c.l.s4 1966171168
    %v870 = vunpack.c.0.s8 %v869
    %v871 = vlaneseq
    %v872 = vshrl.u32 %v871, 7
    %v873 = vsub.s32 %v870, %v872
    %v874 = vrot.slane %v867, %v873
    %v876 = vunpack.c.l.s4 1966171168
    %v877 = vunpack.c.0.s8 %v876
    %v878 = vlaneseq
    %v879 = vshrl.u32 %v878, 7
    %v880 = vsub.s32 %v877, %v879
    %v881 = vrot.slane %v861, %v880
    %v882 = vcombine.low %v874, %v881
    %v884 = vunpack.c.l.s4 1966171168
    %v885 = vunpack.c.0.s8 %v884
    %v886 = vlaneseq
    %v887 = vshrl.u32 %v886, 7
    %v888 = vsub.s32 %v885, %v887
    %v889 = vrot.slane %v882, %v888
    %v891 = vadd.f32 %v722, %v889
    %892 = vmatprep.subr.mxu0 0.0
    %893 = vmatpush1.msra.mxu0 %v351
    %894 = vmatprep.subr.mxu0 0.0
    %895 = vmatpush1.msra.mxu0 %v352
    %896 = vmatprep.subr.mxu0 0.0
    %897 = vmatpush1.msra.mxu0 %v353
    %898 = vmatprep.subr.mxu0 0.0
    %899 = vmatpush1.msra.mxu0 %v354
    %900 = vmatprep.subr.mxu0 0.0
    %901 = vmatpush1.msra.mxu0 %v355
    %902 = vmatprep.subr.mxu0 0.0
    %903 = vmatpush1.msra.mxu0 %v356
    %904 = vmatprep.subr.mxu0 0.0
    %905 = vmatpush1.msra.mxu0 %v357
    %906 = vmatprep.subr.mxu0 0.0
    %907 = vmatpush1.msra.mxu0 %v358
    %908 = vmatprep.subr.mxu0 0.0
    %909 = vmatpush1.msra.mxu0 %v359
    %910 = vmatprep.subr.mxu0 0.0
    %911 = vmatpush1.msra.mxu0 %v360
    %912 = vmatprep.subr.mxu0 0.0
    %913 = vmatpush1.msra.mxu0 %v361
    %914 = vmatprep.subr.mxu0 0.0
    %915 = vmatpush1.msra.mxu0 %v362
    %916 = vmatprep.subr.mxu0 0.0
    %917 = vmatpush1.msra.mxu0 %v363
    %918 = vmatprep.subr.mxu0 0.0
    %919 = vmatpush1.msra.mxu0 %v364
    %920 = vmatprep.subr.mxu0 0.0
    %921 = vmatpush1.msra.mxu0 %v365
    %922 = vmatprep.subr.mxu0 0.0
    %923 = vmatpush1.msra.mxu0 %v366
    %924 = vmatprep.subr.mxu0 0.0
    %925 = vmatpush1.msra.mxu0 0.0
    %926 = vmatprep.subr.mxu0 0.0
    %927 = vmatpush1.msra.mxu0 0.0
    %928 = vmatprep.subr.mxu0 0.0
    %929 = vmatpush1.msra.mxu0 0.0
    %930 = vmatprep.subr.mxu0 0.0
    %931 = vmatpush1.msra.mxu0 0.0
    %932 = vmatprep.subr.mxu0 0.0
    %933 = vmatpush1.msra.mxu0 0.0
    %934 = vmatprep.subr.mxu0 0.0
    %935 = vmatpush1.msra.mxu0 0.0
    %936 = vmatprep.subr.mxu0 0.0
    %937 = vmatpush1.msra.mxu0 0.0
    %938 = vmatprep.subr.mxu0 0.0
    %939 = vmatpush1.msra.mxu0 0.0
    %940 = vmatprep.subr.mxu0 0.0
    %941 = vmatpush1.msra.mxu0 0.0
    %942 = vmatprep.subr.mxu0 0.0
    %943 = vmatpush1.msra.mxu0 0.0
    %944 = vmatprep.subr.mxu0 0.0
    %945 = vmatpush1.msra.mxu0 0.0
    %946 = vmatprep.subr.mxu0 0.0
    %947 = vmatpush1.msra.mxu0 0.0
    %948 = vmatprep.subr.mxu0 0.0
    %949 = vmatpush1.msra.mxu0 0.0
    %950 = vmatprep.subr.mxu0 0.0
    %951 = vmatpush1.msra.mxu0 0.0
    %952 = vmatprep.subr.mxu0 0.0
    %953 = vmatpush1.msra.mxu0 0.0
    %954 = vmatprep.subr.mxu0 0.0
    %955 = vmatpush1.msra.mxu0 0.0
    %956 = vmatprep.mubr.f32.mxu0 0.0
    %957 = vmatmul.mubr.f32.gmra.mrb[0].mxu0 %v637
    %v958 = vpop.f32.mrb[0].mxu0
    %v959 = vadd.f32 0.0, %v958
    %v960 = vpop.f32.mrb[0].mxu0
    %961 = vdwg.mxu0
    %v962 = vadd.f32 %v891, %v959
    %v963 = vxor.u32 %v962, 2147483648
    %v964 = vmul.f32 %v963, 1.442695
    %v965 = vpow.pop %v964
    %v966 = vadd.f32 %v965, 1.0
    %v967 = vrcp.pop %v966
    %v968 = vmul.f32 1.0, %v967
    %v969 = vsub.f32 1.0, %v968
    %v971 = vrot.slane %v891, 2
    %v973 = vtanh.pop %v971
    %v974 = vmul.f32 %v968, %v973
    %v975 = vmul.f32 %v969, %v637
    %v976 = vadd.f32 %v974, %v975
    %977 = vmatprep.subr.mxu0 0.0
    %978 = vmatpush1.msra.mxu0 %v367
    %979 = vmatprep.subr.mxu0 0.0
    %980 = vmatpush1.msra.mxu0 %v368
    %981 = vmatprep.subr.mxu0 0.0
    %982 = vmatpush1.msra.mxu0 %v369
    %983 = vmatprep.subr.mxu0 0.0
    %984 = vmatpush1.msra.mxu0 %v370
    %985 = vmatprep.subr.mxu0 0.0
    %986 = vmatpush1.msra.mxu0 %v371
    %987 = vmatprep.subr.mxu0 0.0
    %988 = vmatpush1.msra.mxu0 %v372
    %989 = vmatprep.subr.mxu0 0.0
    %990 = vmatpush1.msra.mxu0 %v373
    %991 = vmatprep.subr.mxu0 0.0
    %992 = vmatpush1.msra.mxu0 %v374
    %993 = vmatprep.subr.mxu0 0.0
    %994 = vmatpush1.msra.mxu0 %v375
    %995 = vmatprep.subr.mxu0 0.0
    %996 = vmatpush1.msra.mxu0 %v376
    %997 = vmatprep.subr.mxu0 0.0
    %998 = vmatpush1.msra.mxu0 %v377
    %999 = vmatprep.subr.mxu0 0.0
    %1000 = vmatpush1.msra.mxu0 %v378
    %1001 = vmatprep.subr.mxu0 0.0
    %1002 = vmatpush1.msra.mxu0 %v379
    %1003 = vmatprep.subr.mxu0 0.0
    %1004 = vmatpush1.msra.mxu0 %v380
    %1005 = vmatprep.subr.mxu0 0.0
    %1006 = vmatpush1.msra.mxu0 %v381
    %1007 = vmatprep.subr.mxu0 0.0
    %1008 = vmatpush1.msra.mxu0 %v382
    %1009 = vmatprep.subr.mxu0 0.0
    %1010 = vmatpush1.msra.mxu0 0.0
    %1011 = vmatprep.subr.mxu0 0.0
    %1012 = vmatpush1.msra.mxu0 0.0
    %1013 = vmatprep.subr.mxu0 0.0
    %1014 = vmatpush1.msra.mxu0 0.0
    %1015 = vmatprep.subr.mxu0 0.0
    %1016 = vmatpush1.msra.mxu0 0.0
    %1017 = vmatprep.subr.mxu0 0.0
    %1018 = vmatpush1.msra.mxu0 0.0
    %1019 = vmatprep.subr.mxu0 0.0
    %1020 = vmatpush1.msra.mxu0 0.0
    %1021 = vmatprep.subr.mxu0 0.0
    %1022 = vmatpush1.msra.mxu0 0.0
    %1023 = vmatprep.subr.mxu0 0.0
    %1024 = vmatpush1.msra.mxu0 0.0
    %1025 = vmatprep.subr.mxu0 0.0
    %1026 = vmatpush1.msra.mxu0 0.0
    %1027 = vmatprep.subr.mxu0 0.0
    %1028 = vmatpush1.msra.mxu0 0.0
    %1029 = vmatprep.subr.mxu0 0.0
    %1030 = vmatpush1.msra.mxu0 0.0
    %1031 = vmatprep.subr.mxu0 0.0
    %1032 = vmatpush1.msra.mxu0 0.0
    %1033 = vmatprep.subr.mxu0 0.0
    %1034 = vmatpush1.msra.mxu0 0.0
    %1035 = vmatprep.subr.mxu0 0.0
    %1036 = vmatpush1.msra.mxu0 0.0
    %1037 = vmatprep.subr.mxu0 0.0
    %1038 = vmatpush1.msra.mxu0 0.0
    %1039 = vmatprep.subr.mxu0 0.0
    %1040 = vmatpush1.msra.mxu0 0.0
    %1041 = vmatprep.mubr.f32.mxu0 0.0
    %1042 = vmatmul.mubr.f32.gmra.mrb[0].mxu0 %v976
    %v1043 = vpop.f32.mrb[0].mxu0
    %v1044 = vadd.f32 0.0, %v1043
    %v1045 = vpop.f32.mrb[0].mxu0
    %1046 = vdwg.mxu0
    %v1047 = vrot.slane %v891, 1
    %v1049 = vadd.f32 %v1047, %v1044
    %v1050 = vxor.u32 %v1049, 2147483648
    %v1051 = vmul.f32 %v1050, 1.442695
    %v1052 = vpow.pop %v1051
    %v1053 = vadd.f32 %v1052, 1.0
    %v1054 = vrcp.pop %v1053
    %v1055 = vmul.f32 1.0, %v1054
    %v1056 = vtanh.pop %v976
    %v1057 = vmul.f32 %v1055, %v1056
    %1058 = vst [vmem:[#allocation12 + $0x1] sm:$0x1] %v1057
    %1059 = vst [vmem:[#allocation13 + $0x1] sm:$0x1] %v976
    %s1060 = scalar_lea.vmem [#allocation2], 2
    %v1061 = vld [vmem:[%s1060] ss:$8 sm:$0x7]
    %1062 = vmatprep.subr.mxu0 %v304
    %1063 = vmatpush1.msra.mxu0 %v303
    %1064 = vmatprep.subr.mxu0 %v307
    %1065 = vmatpush1.msra.mxu0 %v306
    %1066 = vmatprep.subr.mxu0 %v310
    %1067 = vmatpush1.msra.mxu0 %v309
    %1068 = vmatprep.subr.mxu0 %v313
    %1069 = vmatpush1.msra.mxu0 %v312
    %1070 = vmatprep.subr.mxu0 %v316
    %1071 = vmatpush1.msra.mxu0 %v315
    %1072 = vmatprep.subr.mxu0 %v319
    %1073 = vmatpush1.msra.mxu0 %v318
    %1074 = vmatprep.subr.mxu0 %v322
    %1075 = vmatpush1.msra.mxu0 %v321
    %1076 = vmatprep.subr.mxu0 %v325
    %1077 = vmatpush1.msra.mxu0 %v324
    %1078 = vmatprep.subr.mxu0 %v328
    %1079 = vmatpush1.msra.mxu0 %v327
    %1080 = vmatprep.subr.mxu0 %v331
    %1081 = vmatpush1.msra.mxu0 %v330
    %1082 = vmatprep.subr.mxu0 %v334
    %1083 = vmatpush1.msra.mxu0 %v333
    %1084 = vmatprep.subr.mxu0 %v337
    %1085 = vmatpush1.msra.mxu0 %v336
    %1086 = vmatprep.subr.mxu0 %v340
    %1087 = vmatpush1.msra.mxu0 %v339
    %1088 = vmatprep.subr.mxu0 %v343
    %1089 = vmatpush1.msra.mxu0 %v342
    %1090 = vmatprep.subr.mxu0 %v346
    %1091 = vmatpush1.msra.mxu0 %v345
    %1092 = vmatprep.subr.mxu0 %v349
    %1093 = vmatpush1.msra.mxu0 %v348
    %1094 = vmatprep.subr.mxu0 0.0
    %1095 = vmatpush1.msra.mxu0 0.0
    %1096 = vmatprep.subr.mxu0 0.0
    %1097 = vmatpush1.msra.mxu0 0.0
    %1098 = vmatprep.subr.mxu0 0.0
    %1099 = vmatpush1.msra.mxu0 0.0
    %1100 = vmatprep.subr.mxu0 0.0
    %1101 = vmatpush1.msra.mxu0 0.0
    %1102 = vmatprep.subr.mxu0 0.0
    %1103 = vmatpush1.msra.mxu0 0.0
    %1104 = vmatprep.subr.mxu0 0.0
    %1105 = vmatpush1.msra.mxu0 0.0
    %1106 = vmatprep.subr.mxu0 0.0
    %1107 = vmatpush1.msra.mxu0 0.0
    %1108 = vmatprep.subr.mxu0 0.0
    %1109 = vmatpush1.msra.mxu0 0.0
    %1110 = vmatprep.subr.mxu0 0.0
    %1111 = vmatpush1.msra.mxu0 0.0
    %1112 = vmatprep.subr.mxu0 0.0
    %1113 = vmatpush1.msra.mxu0 0.0
    %1114 = vmatprep.subr.mxu0 0.0
    %1115 = vmatpush1.msra.mxu0 0.0
    %1116 = vmatprep.subr.mxu0 0.0
    %1117 = vmatpush1.msra.mxu0 0.0
    %1118 = vmatprep.subr.mxu0 0.0
    %1119 = vmatpush1.msra.mxu0 0.0
    %1120 = vmatprep.subr.mxu0 0.0
    %1121 = vmatpush1.msra.mxu0 0.0
    %1122 = vmatprep.subr.mxu0 0.0
    %1123 = vmatpush1.msra.mxu0 0.0
    %1124 = vmatprep.subr.mxu0 0.0
    %1125 = vmatpush1.msra.mxu0 0.0
    %1126 = vmatprep.mubr.f32.mxu0 0.0
    %1127 = vmatmul.mubr.f32.gmra.mrb[0].mxu0 %v1057
    %v1128 = vpop.f32.mrb[0].mxu0
    %v1129 = vadd.f32 0.0, %v1128
    %v1130 = vpop.f32.mrb[0].mxu0
    %v1131 = vadd.f32 0.0, %v1130
    %1132 = vdwg.mxu0
    %1133 = vmatprep.subr.mxu0 0.0
    %1134 = vmatpush1.msra.mxu0 %v305
    %1135 = vmatprep.subr.mxu0 0.0
    %1136 = vmatpush1.msra.mxu0 %v308
    %1137 = vmatprep.subr.mxu0 0.0
    %1138 = vmatpush1.msra.mxu0 %v311
    %1139 = vmatprep.subr.mxu0 0.0
    %1140 = vmatpush1.msra.mxu0 %v314
    %1141 = vmatprep.subr.mxu0 0.0
    %1142 = vmatpush1.msra.mxu0 %v317
    %1143 = vmatprep.subr.mxu0 0.0
    %1144 = vmatpush1.msra.mxu0 %v320
    %1145 = vmatprep.subr.mxu0 0.0
    %1146 = vmatpush1.msra.mxu0 %v323
    %1147 = vmatprep.subr.mxu0 0.0
    %1148 = vmatpush1.msra.mxu0 %v326
    %1149 = vmatprep.subr.mxu0 0.0
    %1150 = vmatpush1.msra.mxu0 %v329
    %1151 = vmatprep.subr.mxu0 0.0
    %1152 = vmatpush1.msra.mxu0 %v332
    %1153 = vmatprep.subr.mxu0 0.0
    %1154 = vmatpush1.msra.mxu0 %v335
    %1155 = vmatprep.subr.mxu0 0.0
    %1156 = vmatpush1.msra.mxu0 %v338
    %1157 = vmatprep.subr.mxu0 0.0
    %1158 = vmatpush1.msra.mxu0 %v341
    %1159 = vmatprep.subr.mxu0 0.0
    %1160 = vmatpush1.msra.mxu0 %v344
    %1161 = vmatprep.subr.mxu0 0.0
    %1162 = vmatpush1.msra.mxu0 %v347
    %1163 = vmatprep.subr.mxu0 0.0
    %1164 = vmatpush1.msra.mxu0 %v350
    %1165 = vmatprep.subr.mxu0 0.0
    %1166 = vmatpush1.msra.mxu0 0.0
    %1167 = vmatprep.subr.mxu0 0.0
    %1168 = vmatpush1.msra.mxu0 0.0
    %1169 = vmatprep.subr.mxu0 0.0
    %1170 = vmatpush1.msra.mxu0 0.0
    %1171 = vmatprep.subr.mxu0 0.0
    %1172 = vmatpush1.msra.mxu0 0.0
    %1173 = vmatprep.subr.mxu0 0.0
    %1174 = vmatpush1.msra.mxu0 0.0
    %1175 = vmatprep.subr.mxu0 0.0
    %1176 = vmatpush1.msra.mxu0 0.0
    %1177 = vmatprep.subr.mxu0 0.0
    %1178 = vmatpush1.msra.mxu0 0.0
    %1179 = vmatprep.subr.mxu0 0.0
    %1180 = vmatpush1.msra.mxu0 0.0
    %1181 = vmatprep.subr.mxu0 0.0
    %1182 = vmatpush1.msra.mxu0 0.0
    %1183 = vmatprep.subr.mxu0 0.0
    %1184 = vmatpush1.msra.mxu0 0.0
    %1185 = vmatprep.subr.mxu0 0.0
    %1186 = vmatpush1.msra.mxu0 0.0
    %1187 = vmatprep.subr.mxu0 0.0
    %1188 = vmatpush1.msra.mxu0 0.0
    %1189 = vmatprep.subr.mxu0 0.0
    %1190 = vmatpush1.msra.mxu0 0.0
    %1191 = vmatprep.subr.mxu0 0.0
    %1192 = vmatpush1.msra.mxu0 0.0
    %1193 = vmatprep.subr.mxu0 0.0
    %1194 = vmatpush1.msra.mxu0 0.0
    %1195 = vmatprep.subr.mxu0 0.0
    %1196 = vmatpush1.msra.mxu0 0.0
    %1197 = vmatprep.mubr.f32.mxu0 0.0
    %1198 = vmatmul.mubr.f32.gmra.mrb[0].mxu0 %v1057
    %v1199 = vpop.f32.mrb[0].mxu0
    %v1200 = vadd.f32 0.0, %v1199
    %v1201 = vpop.f32.mrb[0].mxu0
    %1202 = vdwg.mxu0
    %v1206 = vcombine.low %v1129, %v1131
    %v1208 = vunpack.c.l.s4 1966171168
    %v1209 = vunpack.c.0.s8 %v1208
    %v1210 = vlaneseq
    %v1211 = vshrl.u32 %v1210, 7
    %v1212 = vsub.s32 %v1209, %v1211
    %v1213 = vrot.slane %v1206, %v1212
    %v1215 = vunpack.c.l.s4 1966171168
    %v1216 = vunpack.c.0.s8 %v1215
    %v1217 = vlaneseq
    %v1218 = vshrl.u32 %v1217, 7
    %v1219 = vsub.s32 %v1216, %v1218
    %v1220 = vrot.slane %v1200, %v1219
    %v1221 = vcombine.low %v1213, %v1220
    %v1223 = vunpack.c.l.s4 1966171168
    %v1224 = vunpack.c.0.s8 %v1223
    %v1225 = vlaneseq
    %v1226 = vshrl.u32 %v1225, 7
    %v1227 = vsub.s32 %v1224, %v1226
    %v1228 = vrot.slane %v1221, %v1227
    %v1230 = vadd.f32 %v1061, %v1228
    %1231 = vmatprep.subr.mxu0 0.0
    %1232 = vmatpush1.msra.mxu0 %v351
    %1233 = vmatprep.subr.mxu0 0.0
    %1234 = vmatpush1.msra.mxu0 %v352
    %1235 = vmatprep.subr.mxu0 0.0
    %1236 = vmatpush1.msra.mxu0 %v353
    %1237 = vmatprep.subr.mxu0 0.0
    %1238 = vmatpush1.msra.mxu0 %v354
    %1239 = vmatprep.subr.mxu0 0.0
    %1240 = vmatpush1.msra.mxu0 %v355
    %1241 = vmatprep.subr.mxu0 0.0
    %1242 = vmatpush1.msra.mxu0 %v356
    %1243 = vmatprep.subr.mxu0 0.0
    %1244 = vmatpush1.msra.mxu0 %v357
    %1245 = vmatprep.subr.mxu0 0.0
    %1246 = vmatpush1.msra.mxu0 %v358
    %1247 = vmatprep.subr.mxu0 0.0
    %1248 = vmatpush1.msra.mxu0 %v359
    %1249 = vmatprep.subr.mxu0 0.0
    %1250 = vmatpush1.msra.mxu0 %v360
    %1251 = vmatprep.subr.mxu0 0.0
    %1252 = vmatpush1.msra.mxu0 %v361
    %1253 = vmatprep.subr.mxu0 0.0
    %1254 = vmatpush1.msra.mxu0 %v362
    %1255 = vmatprep.subr.mxu0 0.0
    %1256 = vmatpush1.msra.mxu0 %v363
    %1257 = vmatprep.subr.mxu0 0.0
    %1258 = vmatpush1.msra.mxu0 %v364
    %1259 = vmatprep.subr.mxu0 0.0
    %1260 = vmatpush1.msra.mxu0 %v365
    %1261 = vmatprep.subr.mxu0 0.0
    %1262 = vmatpush1.msra.mxu0 %v366
    %1263 = vmatprep.subr.mxu0 0.0
    %1264 = vmatpush1.msra.mxu0 0.0
    %1265 = vmatprep.subr.mxu0 0.0
    %1266 = vmatpush1.msra.mxu0 0.0
    %1267 = vmatprep.subr.mxu0 0.0
    %1268 = vmatpush1.msra.mxu0 0.0
    %1269 = vmatprep.subr.mxu0 0.0
    %1270 = vmatpush1.msra.mxu0 0.0
    %1271 = vmatprep.subr.mxu0 0.0
    %1272 = vmatpush1.msra.mxu0 0.0
    %1273 = vmatprep.subr.mxu0 0.0
    %1274 = vmatpush1.msra.mxu0 0.0
    %1275 = vmatprep.subr.mxu0 0.0
    %1276 = vmatpush1.msra.mxu0 0.0
    %1277 = vmatprep.subr.mxu0 0.0
    %1278 = vmatpush1.msra.mxu0 0.0
    %1279 = vmatprep.subr.mxu0 0.0
    %1280 = vmatpush1.msra.mxu0 0.0
    %1281 = vmatprep.subr.mxu0 0.0
    %1282 = vmatpush1.msra.mxu0 0.0
    %1283 = vmatprep.subr.mxu0 0.0
    %1284 = vmatpush1.msra.mxu0 0.0
    %1285 = vmatprep.subr.mxu0 0.0
    %1286 = vmatpush1.msra.mxu0 0.0
    %1287 = vmatprep.subr.mxu0 0.0
    %1288 = vmatpush1.msra.mxu0 0.0
    %1289 = vmatprep.subr.mxu0 0.0
    %1290 = vmatpush1.msra.mxu0 0.0
    %1291 = vmatprep.subr.mxu0 0.0
    %1292 = vmatpush1.msra.mxu0 0.0
    %1293 = vmatprep.subr.mxu0 0.0
    %1294 = vmatpush1.msra.mxu0 0.0
    %1295 = vmatprep.mubr.f32.mxu0 0.0
    %1296 = vmatmul.mubr.f32.gmra.mrb[0].mxu0 %v976
    %v1297 = vpop.f32.mrb[0].mxu0
    %v1298 = vadd.f32 0.0, %v1297
    %v1299 = vpop.f32.mrb[0].mxu0
    %1300 = vdwg.mxu0
    %v1301 = vadd.f32 %v1230, %v1298
    %v1302 = vxor.u32 %v1301, 2147483648
    %v1303 = vmul.f32 %v1302, 1.442695
    %v1304 = vpow.pop %v1303
    %v1305 = vadd.f32 %v1304, 1.0
    %v1306 = vrcp.pop %v1305
    %v1307 = vmul.f32 1.0, %v1306
    %v1308 = vsub.f32 1.0, %v1307
    %v1310 = vrot.slane %v1230, 2
    %v1312 = vtanh.pop %v1310
    %v1313 = vmul.f32 %v1307, %v1312
    %v1314 = vmul.f32 %v1308, %v976
    %v1315 = vadd.f32 %v1313, %v1314
    %1316 = vmatprep.subr.mxu0 0.0
    %1317 = vmatpush1.msra.mxu0 %v367
    %1318 = vmatprep.subr.mxu0 0.0
    %1319 = vmatpush1.msra.mxu0 %v368
    %1320 = vmatprep.subr.mxu0 0.0
    %1321 = vmatpush1.msra.mxu0 %v369
    %1322 = vmatprep.subr.mxu0 0.0
    %1323 = vmatpush1.msra.mxu0 %v370
    %1324 = vmatprep.subr.mxu0 0.0
    %1325 = vmatpush1.msra.mxu0 %v371
    %1326 = vmatprep.subr.mxu0 0.0
    %1327 = vmatpush1.msra.mxu0 %v372
    %1328 = vmatprep.subr.mxu0 0.0
    %1329 = vmatpush1.msra.mxu0 %v373
    %1330 = vmatprep.subr.mxu0 0.0
    %1331 = vmatpush1.msra.mxu0 %v374
    %1332 = vmatprep.subr.mxu0 0.0
    %1333 = vmatpush1.msra.mxu0 %v375
    %1334 = vmatprep.subr.mxu0 0.0
    %1335 = vmatpush1.msra.mxu0 %v376
    %1336 = vmatprep.subr.mxu0 0.0
    %1337 = vmatpush1.msra.mxu0 %v377
    %1338 = vmatprep.subr.mxu0 0.0
    %1339 = vmatpush1.msra.mxu0 %v378
    %1340 = vmatprep.subr.mxu0 0.0
    %1341 = vmatpush1.msra.mxu0 %v379
    %1342 = vmatprep.subr.mxu0 0.0
    %1343 = vmatpush1.msra.mxu0 %v380
    %1344 = vmatprep.subr.mxu0 0.0
    %1345 = vmatpush1.msra.mxu0 %v381
    %1346 = vmatprep.subr.mxu0 0.0
    %1347 = vmatpush1.msra.mxu0 %v382
    %1348 = vmatprep.subr.mxu0 0.0
    %1349 = vmatpush1.msra.mxu0 0.0
    %1350 = vmatprep.subr.mxu0 0.0
    %1351 = vmatpush1.msra.mxu0 0.0
    %1352 = vmatprep.subr.mxu0 0.0
    %1353 = vmatpush1.msra.mxu0 0.0
    %1354 = vmatprep.subr.mxu0 0.0
    %1355 = vmatpush1.msra.mxu0 0.0
    %1356 = vmatprep.subr.mxu0 0.0
    %1357 = vmatpush1.msra.mxu0 0.0
    %1358 = vmatprep.subr.mxu0 0.0
    %1359 = vmatpush1.msra.mxu0 0.0
    %1360 = vmatprep.subr.mxu0 0.0
    %1361 = vmatpush1.msra.mxu0 0.0
    %1362 = vmatprep.subr.mxu0 0.0
    %1363 = vmatpush1.msra.mxu0 0.0
    %1364 = vmatprep.subr.mxu0 0.0
    %1365 = vmatpush1.msra.mxu0 0.0
    %1366 = vmatprep.subr.mxu0 0.0
    %1367 = vmatpush1.msra.mxu0 0.0
    %1368 = vmatprep.subr.mxu0 0.0
    %1369 = vmatpush1.msra.mxu0 0.0
    %1370 = vmatprep.subr.mxu0 0.0
    %1371 = vmatpush1.msra.mxu0 0.0
    %1372 = vmatprep.subr.mxu0 0.0
    %1373 = vmatpush1.msra.mxu0 0.0
    %1374 = vmatprep.subr.mxu0 0.0
    %1375 = vmatpush1.msra.mxu0 0.0
    %1376 = vmatprep.subr.mxu0 0.0
    %1377 = vmatpush1.msra.mxu0 0.0
    %1378 = vmatprep.subr.mxu0 0.0
    %1379 = vmatpush1.msra.mxu0 0.0
    %1380 = vmatprep.mubr.f32.mxu0 0.0
    %1381 = vmatmul.mubr.f32.gmra.mrb[0].mxu0 %v1315
    %v1382 = vpop.f32.mrb[0].mxu0
    %v1383 = vadd.f32 0.0, %v1382
    %v1384 = vpop.f32.mrb[0].mxu0
    %1385 = vdwg.mxu0
    %v1386 = vrot.slane %v1230, 1
    %v1388 = vadd.f32 %v1386, %v1383
    %v1389 = vxor.u32 %v1388, 2147483648
    %v1390 = vmul.f32 %v1389, 1.442695
    %v1391 = vpow.pop %v1390
    %v1392 = vadd.f32 %v1391, 1.0
    %v1393 = vrcp.pop %v1392
    %v1394 = vmul.f32 1.0, %v1393
    %v1395 = vtanh.pop %v1315
    %v1396 = vmul.f32 %v1394, %v1395
    %1397 = vst [vmem:[#allocation12 + $0x2] sm:$0x1] %v1396
    %1398 = vst [vmem:[#allocation13 + $0x2] sm:$0x1] %v1315
    %s1399 = scalar_lea.vmem [#allocation2], 3
    %v1400 = vld [vmem:[%s1399] ss:$8 sm:$0x7]
    %1401 = vmatprep.subr.mxu0 %v304
    %1402 = vmatpush1.msra.mxu0 %v303
    %1403 = vmatprep.subr.mxu0 %v307
    %1404 = vmatpush1.msra.mxu0 %v306
    %1405 = vmatprep.subr.mxu0 %v310
    %1406 = vmatpush1.msra.mxu0 %v309
    %1407 = vmatprep.subr.mxu0 %v313
    %1408 = vmatpush1.msra.mxu0 %v312
    %1409 = vmatprep.subr.mxu0 %v316
    %1410 = vmatpush1.msra.mxu0 %v315
    %1411 = vmatprep.subr.mxu0 %v319
    %1412 = vmatpush1.msra.mxu0 %v318
    %1413 = vmatprep.subr.mxu0 %v322
    %1414 = vmatpush1.msra.mxu0 %v321
    %1415 = vmatprep.subr.mxu0 %v325
    %1416 = vmatpush1.msra.mxu0 %v324
    %1417 = vmatprep.subr.mxu0 %v328
    %1418 = vmatpush1.msra.mxu0 %v327
    %1419 = vmatprep.subr.mxu0 %v331
    %1420 = vmatpush1.msra.mxu0 %v330
    %1421 = vmatprep.subr.mxu0 %v334
    %1422 = vmatpush1.msra.mxu0 %v333
    %1423 = vmatprep.subr.mxu0 %v337
    %1424 = vmatpush1.msra.mxu0 %v336
    %1425 = vmatprep.subr.mxu0 %v340
    %1426 = vmatpush1.msra.mxu0 %v339
    %1427 = vmatprep.subr.mxu0 %v343
    %1428 = vmatpush1.msra.mxu0 %v342
    %1429 = vmatprep.subr.mxu0 %v346
    %1430 = vmatpush1.msra.mxu0 %v345
    %1431 = vmatprep.subr.mxu0 %v349
    %1432 = vmatpush1.msra.mxu0 %v348
    %1433 = vmatprep.subr.mxu0 0.0
    %1434 = vmatpush1.msra.mxu0 0.0
    %1435 = vmatprep.subr.mxu0 0.0
    %1436 = vmatpush1.msra.mxu0 0.0
    %1437 = vmatprep.subr.mxu0 0.0
    %1438 = vmatpush1.msra.mxu0 0.0
    %1439 = vmatprep.subr.mxu0 0.0
    %1440 = vmatpush1.msra.mxu0 0.0
    %1441 = vmatprep.subr.mxu0 0.0
    %1442 = vmatpush1.msra.mxu0 0.0
    %1443 = vmatprep.subr.mxu0 0.0
    %1444 = vmatpush1.msra.mxu0 0.0
    %1445 = vmatprep.subr.mxu0 0.0
    %1446 = vmatpush1.msra.mxu0 0.0
    %1447 = vmatprep.subr.mxu0 0.0
    %1448 = vmatpush1.msra.mxu0 0.0
    %1449 = vmatprep.subr.mxu0 0.0
    %1450 = vmatpush1.msra.mxu0 0.0
    %1451 = vmatprep.subr.mxu0 0.0
    %1452 = vmatpush1.msra.mxu0 0.0
    %1453 = vmatprep.subr.mxu0 0.0
    %1454 = vmatpush1.msra.mxu0 0.0
    %1455 = vmatprep.subr.mxu0 0.0
    %1456 = vmatpush1.msra.mxu0 0.0
    %1457 = vmatprep.subr.mxu0 0.0
    %1458 = vmatpush1.msra.mxu0 0.0
    %1459 = vmatprep.subr.mxu0 0.0
    %1460 = vmatpush1.msra.mxu0 0.0
    %1461 = vmatprep.subr.mxu0 0.0
    %1462 = vmatpush1.msra.mxu0 0.0
    %1463 = vmatprep.subr.mxu0 0.0
    %1464 = vmatpush1.msra.mxu0 0.0
    %1465 = vmatprep.mubr.f32.mxu0 0.0
    %1466 = vmatmul.mubr.f32.gmra.mrb[0].mxu0 %v1396
    %v1467 = vpop.f32.mrb[0].mxu0
    %v1468 = vadd.f32 0.0, %v1467
    %v1469 = vpop.f32.mrb[0].mxu0
    %v1470 = vadd.f32 0.0, %v1469
    %1471 = vdwg.mxu0
    %1472 = vmatprep.subr.mxu0 0.0
    %1473 = vmatpush1.msra.mxu0 %v305
    %1474 = vmatprep.subr.mxu0 0.0
    %1475 = vmatpush1.msra.mxu0 %v308
    %1476 = vmatprep.subr.mxu0 0.0
    %1477 = vmatpush1.msra.mxu0 %v311
    %1478 = vmatprep.subr.mxu0 0.0
    %1479 = vmatpush1.msra.mxu0 %v314
    %1480 = vmatprep.subr.mxu0 0.0
    %1481 = vmatpush1.msra.mxu0 %v317
    %1482 = vmatprep.subr.mxu0 0.0
    %1483 = vmatpush1.msra.mxu0 %v320
    %1484 = vmatprep.subr.mxu0 0.0
    %1485 = vmatpush1.msra.mxu0 %v323
    %1486 = vmatprep.subr.mxu0 0.0
    %1487 = vmatpush1.msra.mxu0 %v326
    %1488 = vmatprep.subr.mxu0 0.0
    %1489 = vmatpush1.msra.mxu0 %v329
    %1490 = vmatprep.subr.mxu0 0.0
    %1491 = vmatpush1.msra.mxu0 %v332
    %1492 = vmatprep.subr.mxu0 0.0
    %1493 = vmatpush1.msra.mxu0 %v335
    %1494 = vmatprep.subr.mxu0 0.0
    %1495 = vmatpush1.msra.mxu0 %v338
    %1496 = vmatprep.subr.mxu0 0.0
    %1497 = vmatpush1.msra.mxu0 %v341
    %1498 = vmatprep.subr.mxu0 0.0
    %1499 = vmatpush1.msra.mxu0 %v344
    %1500 = vmatprep.subr.mxu0 0.0
    %1501 = vmatpush1.msra.mxu0 %v347
    %1502 = vmatprep.subr.mxu0 0.0
    %1503 = vmatpush1.msra.mxu0 %v350
    %1504 = vmatprep.subr.mxu0 0.0
    %1505 = vmatpush1.msra.mxu0 0.0
    %1506 = vmatprep.subr.mxu0 0.0
    %1507 = vmatpush1.msra.mxu0 0.0
    %1508 = vmatprep.subr.mxu0 0.0
    %1509 = vmatpush1.msra.mxu0 0.0
    %1510 = vmatprep.subr.mxu0 0.0
    %1511 = vmatpush1.msra.mxu0 0.0
    %1512 = vmatprep.subr.mxu0 0.0
    %1513 = vmatpush1.msra.mxu0 0.0
    %1514 = vmatprep.subr.mxu0 0.0
    %1515 = vmatpush1.msra.mxu0 0.0
    %1516 = vmatprep.subr.mxu0 0.0
    %1517 = vmatpush1.msra.mxu0 0.0
    %1518 = vmatprep.subr.mxu0 0.0
    %1519 = vmatpush1.msra.mxu0 0.0
    %1520 = vmatprep.subr.mxu0 0.0
    %1521 = vmatpush1.msra.mxu0 0.0
    %1522 = vmatprep.subr.mxu0 0.0
    %1523 = vmatpush1.msra.mxu0 0.0
    %1524 = vmatprep.subr.mxu0 0.0
    %1525 = vmatpush1.msra.mxu0 0.0
    %1526 = vmatprep.subr.mxu0 0.0
    %1527 = vmatpush1.msra.mxu0 0.0
    %1528 = vmatprep.subr.mxu0 0.0
    %1529 = vmatpush1.msra.mxu0 0.0
    %1530 = vmatprep.subr.mxu0 0.0
    %1531 = vmatpush1.msra.mxu0 0.0
    %1532 = vmatprep.subr.mxu0 0.0
    %1533 = vmatpush1.msra.mxu0 0.0
    %1534 = vmatprep.subr.mxu0 0.0
    %1535 = vmatpush1.msra.mxu0 0.0
    %1536 = vmatprep.mubr.f32.mxu0 0.0
    %1537 = vmatmul.mubr.f32.gmra.mrb[0].mxu0 %v1396
    %v1538 = vpop.f32.mrb[0].mxu0
    %v1539 = vadd.f32 0.0, %v1538
    %v1540 = vpop.f32.mrb[0].mxu0
    %1541 = vdwg.mxu0
    %v1545 = vcombine.low %v1468, %v1470
    %v1547 = vunpack.c.l.s4 1966171168
    %v1548 = vunpack.c.0.s8 %v1547
    %v1549 = vlaneseq
    %v1550 = vshrl.u32 %v1549, 7
    %v1551 = vsub.s32 %v1548, %v1550
    %v1552 = vrot.slane %v1545, %v1551
    %v1554 = vunpack.c.l.s4 1966171168
    %v1555 = vunpack.c.0.s8 %v1554
    %v1556 = vlaneseq
    %v1557 = vshrl.u32 %v1556, 7
    %v1558 = vsub.s32 %v1555, %v1557
    %v1559 = vrot.slane %v1539, %v1558
    %v1560 = vcombine.low %v1552, %v1559
    %v1562 = vunpack.c.l.s4 1966171168
    %v1563 = vunpack.c.0.s8 %v1562
    %v1564 = vlaneseq
    %v1565 = vshrl.u32 %v1564, 7
    %v1566 = vsub.s32 %v1563, %v1565
    %v1567 = vrot.slane %v1560, %v1566
    %v1569 = vadd.f32 %v1400, %v1567
    %1570 = vmatprep.subr.mxu0 0.0
    %1571 = vmatpush1.msra.mxu0 %v351
    %1572 = vmatprep.subr.mxu0 0.0
    %1573 = vmatpush1.msra.mxu0 %v352
    %1574 = vmatprep.subr.mxu0 0.0
    %1575 = vmatpush1.msra.mxu0 %v353
    %1576 = vmatprep.subr.mxu0 0.0
    %1577 = vmatpush1.msra.mxu0 %v354
    %1578 = vmatprep.subr.mxu0 0.0
    %1579 = vmatpush1.msra.mxu0 %v355
    %1580 = vmatprep.subr.mxu0 0.0
    %1581 = vmatpush1.msra.mxu0 %v356
    %1582 = vmatprep.subr.mxu0 0.0
    %1583 = vmatpush1.msra.mxu0 %v357
    %1584 = vmatprep.subr.mxu0 0.0
    %1585 = vmatpush1.msra.mxu0 %v358
    %1586 = vmatprep.subr.mxu0 0.0
    %1587 = vmatpush1.msra.mxu0 %v359
    %1588 = vmatprep.subr.mxu0 0.0
    %1589 = vmatpush1.msra.mxu0 %v360
    %1590 = vmatprep.subr.mxu0 0.0
    %1591 = vmatpush1.msra.mxu0 %v361
    %1592 = vmatprep.subr.mxu0 0.0
    %1593 = vmatpush1.msra.mxu0 %v362
    %1594 = vmatprep.subr.mxu0 0.0
    %1595 = vmatpush1.msra.mxu0 %v363
    %1596 = vmatprep.subr.mxu0 0.0
    %1597 = vmatpush1.msra.mxu0 %v364
    %1598 = vmatprep.subr.mxu0 0.0
    %1599 = vmatpush1.msra.mxu0 %v365
    %1600 = vmatprep.subr.mxu0 0.0
    %1601 = vmatpush1.msra.mxu0 %v366
    %1602 = vmatprep.subr.mxu0 0.0
    %1603 = vmatpush1.msra.mxu0 0.0
    %1604 = vmatprep.subr.mxu0 0.0
    %1605 = vmatpush1.msra.mxu0 0.0
    %1606 = vmatprep.subr.mxu0 0.0
    %1607 = vmatpush1.msra.mxu0 0.0
    %1608 = vmatprep.subr.mxu0 0.0
    %1609 = vmatpush1.msra.mxu0 0.0
    %1610 = vmatprep.subr.mxu0 0.0
    %1611 = vmatpush1.msra.mxu0 0.0
    %1612 = vmatprep.subr.mxu0 0.0
    %1613 = vmatpush1.msra.mxu0 0.0
    %1614 = vmatprep.subr.mxu0 0.0
    %1615 = vmatpush1.msra.mxu0 0.0
    %1616 = vmatprep.subr.mxu0 0.0
    %1617 = vmatpush1.msra.mxu0 0.0
    %1618 = vmatprep.subr.mxu0 0.0
    %1619 = vmatpush1.msra.mxu0 0.0
    %1620 = vmatprep.subr.mxu0 0.0
    %1621 = vmatpush1.msra.mxu0 0.0
    %1622 = vmatprep.subr.mxu0 0.0
    %1623 = vmatpush1.msra.mxu0 0.0
    %1624 = vmatprep.subr.mxu0 0.0
    %1625 = vmatpush1.msra.mxu0 0.0
    %1626 = vmatprep.subr.mxu0 0.0
    %1627 = vmatpush1.msra.mxu0 0.0
    %1628 = vmatprep.subr.mxu0 0.0
    %1629 = vmatpush1.msra.mxu0 0.0
    %1630 = vmatprep.subr.mxu0 0.0
    %1631 = vmatpush1.msra.mxu0 0.0
    %1632 = vmatprep.subr.mxu0 0.0
    %1633 = vmatpush1.msra.mxu0 0.0
    %1634 = vmatprep.mubr.f32.mxu0 0.0
    %1635 = vmatmul.mubr.f32.gmra.mrb[0].mxu0 %v1315
    %v1636 = vpop.f32.mrb[0].mxu0
    %v1637 = vadd.f32 0.0, %v1636
    %v1638 = vpop.f32.mrb[0].mxu0
    %1639 = vdwg.mxu0
    %v1640 = vadd.f32 %v1569, %v1637
    %v1641 = vxor.u32 %v1640, 2147483648
    %v1642 = vmul.f32 %v1641, 1.442695
    %v1643 = vpow.pop %v1642
    %v1644 = vadd.f32 %v1643, 1.0
    %v1645 = vrcp.pop %v1644
    %v1646 = vmul.f32 1.0, %v1645
    %v1647 = vsub.f32 1.0, %v1646
    %v1649 = vrot.slane %v1569, 2
    %v1651 = vtanh.pop %v1649
    %v1652 = vmul.f32 %v1646, %v1651
    %v1653 = vmul.f32 %v1647, %v1315
    %v1654 = vadd.f32 %v1652, %v1653
    %1655 = vmatprep.subr.mxu0 0.0
    %1656 = vmatpush1.msra.mxu0 %v367
    %1657 = vmatprep.subr.mxu0 0.0
    %1658 = vmatpush1.msra.mxu0 %v368
    %1659 = vmatprep.subr.mxu0 0.0
    %1660 = vmatpush1.msra.mxu0 %v369
    %1661 = vmatprep.subr.mxu0 0.0
    %1662 = vmatpush1.msra.mxu0 %v370
    %1663 = vmatprep.subr.mxu0 0.0
    %1664 = vmatpush1.msra.mxu0 %v371
    %1665 = vmatprep.subr.mxu0 0.0
    %1666 = vmatpush1.msra.mxu0 %v372
    %1667 = vmatprep.subr.mxu0 0.0
    %1668 = vmatpush1.msra.mxu0 %v373
    %1669 = vmatprep.subr.mxu0 0.0
    %1670 = vmatpush1.msra.mxu0 %v374
    %1671 = vmatprep.subr.mxu0 0.0
    %1672 = vmatpush1.msra.mxu0 %v375
    %1673 = vmatprep.subr.mxu0 0.0
    %1674 = vmatpush1.msra.mxu0 %v376
    %1675 = vmatprep.subr.mxu0 0.0
    %1676 = vmatpush1.msra.mxu0 %v377
    %1677 = vmatprep.subr.mxu0 0.0
    %1678 = vmatpush1.msra.mxu0 %v378
    %1679 = vmatprep.subr.mxu0 0.0
    %1680 = vmatpush1.msra.mxu0 %v379
    %1681 = vmatprep.subr.mxu0 0.0
    %1682 = vmatpush1.msra.mxu0 %v380
    %1683 = vmatprep.subr.mxu0 0.0
    %1684 = vmatpush1.msra.mxu0 %v381
    %1685 = vmatprep.subr.mxu0 0.0
    %1686 = vmatpush1.msra.mxu0 %v382
    %1687 = vmatprep.subr.mxu0 0.0
    %1688 = vmatpush1.msra.mxu0 0.0
    %1689 = vmatprep.subr.mxu0 0.0
    %1690 = vmatpush1.msra.mxu0 0.0
    %1691 = vmatprep.subr.mxu0 0.0
    %1692 = vmatpush1.msra.mxu0 0.0
    %1693 = vmatprep.subr.mxu0 0.0
    %1694 = vmatpush1.msra.mxu0 0.0
    %1695 = vmatprep.subr.mxu0 0.0
    %1696 = vmatpush1.msra.mxu0 0.0
    %1697 = vmatprep.subr.mxu0 0.0
    %1698 = vmatpush1.msra.mxu0 0.0
    %1699 = vmatprep.subr.mxu0 0.0
    %1700 = vmatpush1.msra.mxu0 0.0
    %1701 = vmatprep.subr.mxu0 0.0
    %1702 = vmatpush1.msra.mxu0 0.0
    %1703 = vmatprep.subr.mxu0 0.0
    %1704 = vmatpush1.msra.mxu0 0.0
    %1705 = vmatprep.subr.mxu0 0.0
    %1706 = vmatpush1.msra.mxu0 0.0
    %1707 = vmatprep.subr.mxu0 0.0
    %1708 = vmatpush1.msra.mxu0 0.0
    %1709 = vmatprep.subr.mxu0 0.0
    %1710 = vmatpush1.msra.mxu0 0.0
    %1711 = vmatprep.subr.mxu0 0.0
    %1712 = vmatpush1.msra.mxu0 0.0
    %1713 = vmatprep.subr.mxu0 0.0
    %1714 = vmatpush1.msra.mxu0 0.0
    %1715 = vmatprep.subr.mxu0 0.0
    %1716 = vmatpush1.msra.mxu0 0.0
    %1717 = vmatprep.subr.mxu0 0.0
    %1718 = vmatpush1.msra.mxu0 0.0
    %1719 = vmatprep.mubr.f32.mxu0 0.0
    %1720 = vmatmul.mubr.f32.gmra.mrb[0].mxu0 %v1654
    %v1721 = vpop.f32.mrb[0].mxu0
    %v1722 = vadd.f32 0.0, %v1721
    %v1723 = vpop.f32.mrb[0].mxu0
    %1724 = vdwg.mxu0
    %v1725 = vrot.slane %v1569, 1
    %v1727 = vadd.f32 %v1725, %v1722
    %v1728 = vxor.u32 %v1727, 2147483648
    %v1729 = vmul.f32 %v1728, 1.442695
    %v1730 = vpow.pop %v1729
    %v1731 = vadd.f32 %v1730, 1.0
    %v1732 = vrcp.pop %v1731
    %v1733 = vmul.f32 1.0, %v1732
    %v1734 = vtanh.pop %v1654
    %v1735 = vmul.f32 %v1733, %v1734
    %1736 = vst [vmem:[#allocation12 + $0x3] sm:$0x1] %v1735
    %1737 = vst [vmem:[#allocation13 + $0x3] sm:$0x1] %v1654
    %s1738 = scalar_lea.vmem [#allocation2], 4
    %v1739 = vld [vmem:[%s1738] ss:$8 sm:$0x7]
    %1740 = vmatprep.subr.mxu0 %v304
    %1741 = vmatpush1.msra.mxu0 %v303
    %1742 = vmatprep.subr.mxu0 %v307
    %1743 = vmatpush1.msra.mxu0 %v306
    %1744 = vmatprep.subr.mxu0 %v310
    %1745 = vmatpush1.msra.mxu0 %v309
    %1746 = vmatprep.subr.mxu0 %v313
    %1747 = vmatpush1.msra.mxu0 %v312
    %1748 = vmatprep.subr.mxu0 %v316
    %1749 = vmatpush1.msra.mxu0 %v315
    %1750 = vmatprep.subr.mxu0 %v319
    %1751 = vmatpush1.msra.mxu0 %v318
    %1752 = vmatprep.subr.mxu0 %v322
    %1753 = vmatpush1.msra.mxu0 %v321
    %1754 = vmatprep.subr.mxu0 %v325
    %1755 = vmatpush1.msra.mxu0 %v324
    %1756 = vmatprep.subr.mxu0 %v328
    %1757 = vmatpush1.msra.mxu0 %v327
    %1758 = vmatprep.subr.mxu0 %v331
    %1759 = vmatpush1.msra.mxu0 %v330
    %1760 = vmatprep.subr.mxu0 %v334
    %1761 = vmatpush1.msra.mxu0 %v333
    %1762 = vmatprep.subr.mxu0 %v337
    %1763 = vmatpush1.msra.mxu0 %v336
    %1764 = vmatprep.subr.mxu0 %v340
    %1765 = vmatpush1.msra.mxu0 %v339
    %1766 = vmatprep.subr.mxu0 %v343
    %1767 = vmatpush1.msra.mxu0 %v342
    %1768 = vmatprep.subr.mxu0 %v346
    %1769 = vmatpush1.msra.mxu0 %v345
    %1770 = vmatprep.subr.mxu0 %v349
    %1771 = vmatpush1.msra.mxu0 %v348
    %1772 = vmatprep.subr.mxu0 0.0
    %1773 = vmatpush1.msra.mxu0 0.0
    %1774 = vmatprep.subr.mxu0 0.0
    %1775 = vmatpush1.msra.mxu0 0.0
    %1776 = vmatprep.subr.mxu0 0.0
    %1777 = vmatpush1.msra.mxu0 0.0
    %1778 = vmatprep.subr.mxu0 0.0
    %1779 = vmatpush1.msra.mxu0 0.0
    %1780 = vmatprep.subr.mxu0 0.0
    %1781 = vmatpush1.msra.mxu0 0.0
    %1782 = vmatprep.subr.mxu0 0.0
    %1783 = vmatpush1.msra.mxu0 0.0
    %1784 = vmatprep.subr.mxu0 0.0
    %1785 = vmatpush1.msra.mxu0 0.0
    %1786 = vmatprep.subr.mxu0 0.0
    %1787 = vmatpush1.msra.mxu0 0.0
    %1788 = vmatprep.subr.mxu0 0.0
    %1789 = vmatpush1.msra.mxu0 0.0
    %1790 = vmatprep.subr.mxu0 0.0
    %1791 = vmatpush1.msra.mxu0 0.0
    %1792 = vmatprep.subr.mxu0 0.0
    %1793 = vmatpush1.msra.mxu0 0.0
    %1794 = vmatprep.subr.mxu0 0.0
    %1795 = vmatpush1.msra.mxu0 0.0
    %1796 = vmatprep.subr.mxu0 0.0
    %1797 = vmatpush1.msra.mxu0 0.0
    %1798 = vmatprep.subr.mxu0 0.0
    %1799 = vmatpush1.msra.mxu0 0.0
    %1800 = vmatprep.subr.mxu0 0.0
    %1801 = vmatpush1.msra.mxu0 0.0
    %1802 = vmatprep.subr.mxu0 0.0
    %1803 = vmatpush1.msra.mxu0 0.0
    %1804 = vmatprep.mubr.f32.mxu0 0.0
    %1805 = vmatmul.mubr.f32.gmra.mrb[0].mxu0 %v1735
    %v1806 = vpop.f32.mrb[0].mxu0
    %v1807 = vadd.f32 0.0, %v1806
    %v1808 = vpop.f32.mrb[0].mxu0
    %v1809 = vadd.f32 0.0, %v1808
    %1810 = vdwg.mxu0
    %1811 = vmatprep.subr.mxu0 0.0
    %1812 = vmatpush1.msra.mxu0 %v305
    %1813 = vmatprep.subr.mxu0 0.0
    %1814 = vmatpush1.msra.mxu0 %v308
    %1815 = vmatprep.subr.mxu0 0.0
    %1816 = vmatpush1.msra.mxu0 %v311
    %1817 = vmatprep.subr.mxu0 0.0
    %1818 = vmatpush1.msra.mxu0 %v314
    %1819 = vmatprep.subr.mxu0 0.0
    %1820 = vmatpush1.msra.mxu0 %v317
    %1821 = vmatprep.subr.mxu0 0.0
    %1822 = vmatpush1.msra.mxu0 %v320
    %1823 = vmatprep.subr.mxu0 0.0
    %1824 = vmatpush1.msra.mxu0 %v323
    %1825 = vmatprep.subr.mxu0 0.0
    %1826 = vmatpush1.msra.mxu0 %v326
    %1827 = vmatprep.subr.mxu0 0.0
    %1828 = vmatpush1.msra.mxu0 %v329
    %1829 = vmatprep.subr.mxu0 0.0
    %1830 = vmatpush1.msra.mxu0 %v332
    %1831 = vmatprep.subr.mxu0 0.0
    %1832 = vmatpush1.msra.mxu0 %v335
    %1833 = vmatprep.subr.mxu0 0.0
    %1834 = vmatpush1.msra.mxu0 %v338
    %1835 = vmatprep.subr.mxu0 0.0
    %1836 = vmatpush1.msra.mxu0 %v341
    %1837 = vmatprep.subr.mxu0 0.0
    %1838 = vmatpush1.msra.mxu0 %v344
    %1839 = vmatprep.subr.mxu0 0.0
    %1840 = vmatpush1.msra.mxu0 %v347
    %1841 = vmatprep.subr.mxu0 0.0
    %1842 = vmatpush1.msra.mxu0 %v350
    %1843 = vmatprep.subr.mxu0 0.0
    %1844 = vmatpush1.msra.mxu0 0.0
    %1845 = vmatprep.subr.mxu0 0.0
    %1846 = vmatpush1.msra.mxu0 0.0
    %1847 = vmatprep.subr.mxu0 0.0
    %1848 = vmatpush1.msra.mxu0 0.0
    %1849 = vmatprep.subr.mxu0 0.0
    %1850 = vmatpush1.msra.mxu0 0.0
    %1851 = vmatprep.subr.mxu0 0.0
    %1852 = vmatpush1.msra.mxu0 0.0
    %1853 = vmatprep.subr.mxu0 0.0
    %1854 = vmatpush1.msra.mxu0 0.0
    %1855 = vmatprep.subr.mxu0 0.0
    %1856 = vmatpush1.msra.mxu0 0.0
    %1857 = vmatprep.subr.mxu0 0.0
    %1858 = vmatpush1.msra.mxu0 0.0
    %1859 = vmatprep.subr.mxu0 0.0
    %1860 = vmatpush1.msra.mxu0 0.0
    %1861 = vmatprep.subr.mxu0 0.0
    %1862 = vmatpush1.msra.mxu0 0.0
    %1863 = vmatprep.subr.mxu0 0.0
    %1864 = vmatpush1.msra.mxu0 0.0
    %1865 = vmatprep.subr.mxu0 0.0
    %1866 = vmatpush1.msra.mxu0 0.0
    %1867 = vmatprep.subr.mxu0 0.0
    %1868 = vmatpush1.msra.mxu0 0.0
    %1869 = vmatprep.subr.mxu0 0.0
    %1870 = vmatpush1.msra.mxu0 0.0
    %1871 = vmatprep.subr.mxu0 0.0
    %1872 = vmatpush1.msra.mxu0 0.0
    %1873 = vmatprep.subr.mxu0 0.0
    %1874 = vmatpush1.msra.mxu0 0.0
    %1875 = vmatprep.mubr.f32.mxu0 0.0
    %1876 = vmatmul.mubr.f32.gmra.mrb[0].mxu0 %v1735
    %v1877 = vpop.f32.mrb[0].mxu0
    %v1878 = vadd.f32 0.0, %v1877
    %v1879 = vpop.f32.mrb[0].mxu0
    %1880 = vdwg.mxu0
    %v1884 = vcombine.low %v1807, %v1809
    %v1886 = vunpack.c.l.s4 1966171168
    %v1887 = vunpack.c.0.s8 %v1886
    %v1888 = vlaneseq
    %v1889 = vshrl.u32 %v1888, 7
    %v1890 = vsub.s32 %v1887, %v1889
    %v1891 = vrot.slane %v1884, %v1890
    %v1893 = vunpack.c.l.s4 1966171168
    %v1894 = vunpack.c.0.s8 %v1893
    %v1895 = vlaneseq
    %v1896 = vshrl.u32 %v1895, 7
    %v1897 = vsub.s32 %v1894, %v1896
    %v1898 = vrot.slane %v1878, %v1897
    %v1899 = vcombine.low %v1891, %v1898
    %v1901 = vunpack.c.l.s4 1966171168
    %v1902 = vunpack.c.0.s8 %v1901
    %v1903 = vlaneseq
    %v1904 = vshrl.u32 %v1903, 7
    %v1905 = vsub.s32 %v1902, %v1904
    %v1906 = vrot.slane %v1899, %v1905
    %v1908 = vadd.f32 %v1739, %v1906
    %1909 = vmatprep.subr.mxu0 0.0
    %1910 = vmatpush1.msra.mxu0 %v351
    %1911 = vmatprep.subr.mxu0 0.0
    %1912 = vmatpush1.msra.mxu0 %v352
    %1913 = vmatprep.subr.mxu0 0.0
    %1914 = vmatpush1.msra.mxu0 %v353
    %1915 = vmatprep.subr.mxu0 0.0
    %1916 = vmatpush1.msra.mxu0 %v354
    %1917 = vmatprep.subr.mxu0 0.0
    %1918 = vmatpush1.msra.mxu0 %v355
    %1919 = vmatprep.subr.mxu0 0.0
    %1920 = vmatpush1.msra.mxu0 %v356
    %1921 = vmatprep.subr.mxu0 0.0
    %1922 = vmatpush1.msra.mxu0 %v357
    %1923 = vmatprep.subr.mxu0 0.0
    %1924 = vmatpush1.msra.mxu0 %v358
    %1925 = vmatprep.subr.mxu0 0.0
    %1926 = vmatpush1.msra.mxu0 %v359
    %1927 = vmatprep.subr.mxu0 0.0
    %1928 = vmatpush1.msra.mxu0 %v360
    %1929 = vmatprep.subr.mxu0 0.0
    %1930 = vmatpush1.msra.mxu0 %v361
    %1931 = vmatprep.subr.mxu0 0.0
    %1932 = vmatpush1.msra.mxu0 %v362
    %1933 = vmatprep.subr.mxu0 0.0
    %1934 = vmatpush1.msra.mxu0 %v363
    %1935 = vmatprep.subr.mxu0 0.0
    %1936 = vmatpush1.msra.mxu0 %v364
    %1937 = vmatprep.subr.mxu0 0.0
    %1938 = vmatpush1.msra.mxu0 %v365
    %1939 = vmatprep.subr.mxu0 0.0
    %1940 = vmatpush1.msra.mxu0 %v366
    %1941 = vmatprep.subr.mxu0 0.0
    %1942 = vmatpush1.msra.mxu0 0.0
    %1943 = vmatprep.subr.mxu0 0.0
    %1944 = vmatpush1.msra.mxu0 0.0
    %1945 = vmatprep.subr.mxu0 0.0
    %1946 = vmatpush1.msra.mxu0 0.0
    %1947 = vmatprep.subr.mxu0 0.0
    %1948 = vmatpush1.msra.mxu0 0.0
    %1949 = vmatprep.subr.mxu0 0.0
    %1950 = vmatpush1.msra.mxu0 0.0
    %1951 = vmatprep.subr.mxu0 0.0
    %1952 = vmatpush1.msra.mxu0 0.0
    %1953 = vmatprep.subr.mxu0 0.0
    %1954 = vmatpush1.msra.mxu0 0.0
    %1955 = vmatprep.subr.mxu0 0.0
    %1956 = vmatpush1.msra.mxu0 0.0
    %1957 = vmatprep.subr.mxu0 0.0
    %1958 = vmatpush1.msra.mxu0 0.0
    %1959 = vmatprep.subr.mxu0 0.0
    %1960 = vmatpush1.msra.mxu0 0.0
    %1961 = vmatprep.subr.mxu0 0.0
    %1962 = vmatpush1.msra.mxu0 0.0
    %1963 = vmatprep.subr.mxu0 0.0
    %1964 = vmatpush1.msra.mxu0 0.0
    %1965 = vmatprep.subr.mxu0 0.0
    %1966 = vmatpush1.msra.mxu0 0.0
    %1967 = vmatprep.subr.mxu0 0.0
    %1968 = vmatpush1.msra.mxu0 0.0
    %1969 = vmatprep.subr.mxu0 0.0
    %1970 = vmatpush1.msra.mxu0 0.0
    %1971 = vmatprep.subr.mxu0 0.0
    %1972 = vmatpush1.msra.mxu0 0.0
    %1973 = vmatprep.mubr.f32.mxu0 0.0
    %1974 = vmatmul.mubr.f32.gmra.mrb[0].mxu0 %v1654
    %v1975 = vpop.f32.mrb[0].mxu0
    %v1976 = vadd.f32 0.0, %v1975
    %v1977 = vpop.f32.mrb[0].mxu0
    %1978 = vdwg.mxu0
    %v1979 = vadd.f32 %v1908, %v1976
    %v1980 = vxor.u32 %v1979, 2147483648
    %v1981 = vmul.f32 %v1980, 1.442695
    %v1982 = vpow.pop %v1981
    %v1983 = vadd.f32 %v1982, 1.0
    %v1984 = vrcp.pop %v1983
    %v1985 = vmul.f32 1.0, %v1984
    %v1986 = vsub.f32 1.0, %v1985
    %v1988 = vrot.slane %v1908, 2
    %v1990 = vtanh.pop %v1988
    %v1991 = vmul.f32 %v1985, %v1990
    %v1992 = vmul.f32 %v1986, %v1654
    %v1993 = vadd.f32 %v1991, %v1992
    %1994 = vmatprep.subr.mxu0 0.0
    %1995 = vmatpush1.msra.mxu0 %v367
    %1996 = vmatprep.subr.mxu0 0.0
    %1997 = vmatpush1.msra.mxu0 %v368
    %1998 = vmatprep.subr.mxu0 0.0
    %1999 = vmatpush1.msra.mxu0 %v369
    %2000 = vmatprep.subr.mxu0 0.0
    %2001 = vmatpush1.msra.mxu0 %v370
    %2002 = vmatprep.subr.mxu0 0.0
    %2003 = vmatpush1.msra.mxu0 %v371
    %2004 = vmatprep.subr.mxu0 0.0
    %2005 = vmatpush1.msra.mxu0 %v372
    %2006 = vmatprep.subr.mxu0 0.0
    %2007 = vmatpush1.msra.mxu0 %v373
    %2008 = vmatprep.subr.mxu0 0.0
    %2009 = vmatpush1.msra.mxu0 %v374
    %2010 = vmatprep.subr.mxu0 0.0
    %2011 = vmatpush1.msra.mxu0 %v375
    %2012 = vmatprep.subr.mxu0 0.0
    %2013 = vmatpush1.msra.mxu0 %v376
    %2014 = vmatprep.subr.mxu0 0.0
    %2015 = vmatpush1.msra.mxu0 %v377
    %2016 = vmatprep.subr.mxu0 0.0
    %2017 = vmatpush1.msra.mxu0 %v378
    %2018 = vmatprep.subr.mxu0 0.0
    %2019 = vmatpush1.msra.mxu0 %v379
    %2020 = vmatprep.subr.mxu0 0.0
    %2021 = vmatpush1.msra.mxu0 %v380
    %2022 = vmatprep.subr.mxu0 0.0
    %2023 = vmatpush1.msra.mxu0 %v381
    %2024 = vmatprep.subr.mxu0 0.0
    %2025 = vmatpush1.msra.mxu0 %v382
    %2026 = vmatprep.subr.mxu0 0.0
    %2027 = vmatpush1.msra.mxu0 0.0
    %2028 = vmatprep.subr.mxu0 0.0
    %2029 = vmatpush1.msra.mxu0 0.0
    %2030 = vmatprep.subr.mxu0 0.0
    %2031 = vmatpush1.msra.mxu0 0.0
    %2032 = vmatprep.subr.mxu0 0.0
    %2033 = vmatpush1.msra.mxu0 0.0
    %2034 = vmatprep.subr.mxu0 0.0
    %2035 = vmatpush1.msra.mxu0 0.0
    %2036 = vmatprep.subr.mxu0 0.0
    %2037 = vmatpush1.msra.mxu0 0.0
    %2038 = vmatprep.subr.mxu0 0.0
    %2039 = vmatpush1.msra.mxu0 0.0
    %2040 = vmatprep.subr.mxu0 0.0
    %2041 = vmatpush1.msra.mxu0 0.0
    %2042 = vmatprep.subr.mxu0 0.0
    %2043 = vmatpush1.msra.mxu0 0.0
    %2044 = vmatprep.subr.mxu0 0.0
    %2045 = vmatpush1.msra.mxu0 0.0
    %2046 = vmatprep.subr.mxu0 0.0
    %2047 = vmatpush1.msra.mxu0 0.0
    %2048 = vmatprep.subr.mxu0 0.0
    %2049 = vmatpush1.msra.mxu0 0.0
    %2050 = vmatprep.subr.mxu0 0.0
    %2051 = vmatpush1.msra.mxu0 0.0
    %2052 = vmatprep.subr.mxu0 0.0
    %2053 = vmatpush1.msra.mxu0 0.0
    %2054 = vmatprep.subr.mxu0 0.0
    %2055 = vmatpush1.msra.mxu0 0.0
    %2056 = vmatprep.subr.mxu0 0.0
    %2057 = vmatpush1.msra.mxu0 0.0
    %2058 = vmatprep.mubr.f32.mxu0 0.0
    %2059 = vmatmul.mubr.f32.gmra.mrb[0].mxu0 %v1993
    %v2060 = vpop.f32.mrb[0].mxu0
    %v2061 = vadd.f32 0.0, %v2060
    %v2062 = vpop.f32.mrb[0].mxu0
    %2063 = vdwg.mxu0
    %v2064 = vrot.slane %v1908, 1
    %v2066 = vadd.f32 %v2064, %v2061
    %v2067 = vxor.u32 %v2066, 2147483648
    %v2068 = vmul.f32 %v2067, 1.442695
    %v2069 = vpow.pop %v2068
    %v2070 = vadd.f32 %v2069, 1.0
    %v2071 = vrcp.pop %v2070
    %v2072 = vmul.f32 1.0, %v2071
    %v2073 = vtanh.pop %v1993
    %v2074 = vmul.f32 %v2072, %v2073
    %2075 = vst [vmem:[#allocation12 + $0x4] sm:$0x1] %v2074
    %2076 = vst [vmem:[#allocation13 + $0x4] sm:$0x1] %v1993
    %s2077 = scalar_lea.vmem [#allocation2], 5
    %v2078 = vld [vmem:[%s2077] ss:$8 sm:$0x7]
    %2079 = vmatprep.subr.mxu0 %v304
    %2080 = vmatpush1.msra.mxu0 %v303
    %2081 = vmatprep.subr.mxu0 %v307
    %2082 = vmatpush1.msra.mxu0 %v306
    %2083 = vmatprep.subr.mxu0 %v310
    %2084 = vmatpush1.msra.mxu0 %v309
    %2085 = vmatprep.subr.mxu0 %v313
    %2086 = vmatpush1.msra.mxu0 %v312
    %2087 = vmatprep.subr.mxu0 %v316
    %2088 = vmatpush1.msra.mxu0 %v315
    %2089 = vmatprep.subr.mxu0 %v319
    %2090 = vmatpush1.msra.mxu0 %v318
    %2091 = vmatprep.subr.mxu0 %v322
    %2092 = vmatpush1.msra.mxu0 %v321
    %2093 = vmatprep.subr.mxu0 %v325
    %2094 = vmatpush1.msra.mxu0 %v324
    %2095 = vmatprep.subr.mxu0 %v328
    %2096 = vmatpush1.msra.mxu0 %v327
    %2097 = vmatprep.subr.mxu0 %v331
    %2098 = vmatpush1.msra.mxu0 %v330
    %2099 = vmatprep.subr.mxu0 %v334
    %2100 = vmatpush1.msra.mxu0 %v333
    %2101 = vmatprep.subr.mxu0 %v337
    %2102 = vmatpush1.msra.mxu0 %v336
    %2103 = vmatprep.subr.mxu0 %v340
    %2104 = vmatpush1.msra.mxu0 %v339
    %2105 = vmatprep.subr.mxu0 %v343
    %2106 = vmatpush1.msra.mxu0 %v342
    %2107 = vmatprep.subr.mxu0 %v346
    %2108 = vmatpush1.msra.mxu0 %v345
    %2109 = vmatprep.subr.mxu0 %v349
    %2110 = vmatpush1.msra.mxu0 %v348
    %2111 = vmatprep.subr.mxu0 0.0
    %2112 = vmatpush1.msra.mxu0 0.0
    %2113 = vmatprep.subr.mxu0 0.0
    %2114 = vmatpush1.msra.mxu0 0.0
    %2115 = vmatprep.subr.mxu0 0.0
    %2116 = vmatpush1.msra.mxu0 0.0
    %2117 = vmatprep.subr.mxu0 0.0
    %2118 = vmatpush1.msra.mxu0 0.0
    %2119 = vmatprep.subr.mxu0 0.0
    %2120 = vmatpush1.msra.mxu0 0.0
    %2121 = vmatprep.subr.mxu0 0.0
    %2122 = vmatpush1.msra.mxu0 0.0
    %2123 = vmatprep.subr.mxu0 0.0
    %2124 = vmatpush1.msra.mxu0 0.0
    %2125 = vmatprep.subr.mxu0 0.0
    %2126 = vmatpush1.msra.mxu0 0.0
    %2127 = vmatprep.subr.mxu0 0.0
    %2128 = vmatpush1.msra.mxu0 0.0
    %2129 = vmatprep.subr.mxu0 0.0
    %2130 = vmatpush1.msra.mxu0 0.0
    %2131 = vmatprep.subr.mxu0 0.0
    %2132 = vmatpush1.msra.mxu0 0.0
    %2133 = vmatprep.subr.mxu0 0.0
    %2134 = vmatpush1.msra.mxu0 0.0
    %2135 = vmatprep.subr.mxu0 0.0
    %2136 = vmatpush1.msra.mxu0 0.0
    %2137 = vmatprep.subr.mxu0 0.0
    %2138 = vmatpush1.msra.mxu0 0.0
    %2139 = vmatprep.subr.mxu0 0.0
    %2140 = vmatpush1.msra.mxu0 0.0
    %2141 = vmatprep.subr.mxu0 0.0
    %2142 = vmatpush1.msra.mxu0 0.0
    %2143 = vmatprep.mubr.f32.mxu0 0.0
    %2144 = vmatmul.mubr.f32.gmra.mrb[0].mxu0 %v2074
    %v2145 = vpop.f32.mrb[0].mxu0
    %v2146 = vadd.f32 0.0, %v2145
    %v2147 = vpop.f32.mrb[0].mxu0
    %v2148 = vadd.f32 0.0, %v2147
    %2149 = vdwg.mxu0
    %2150 = vmatprep.subr.mxu0 0.0
    %2151 = vmatpush1.msra.mxu0 %v305
    %2152 = vmatprep.subr.mxu0 0.0
    %2153 = vmatpush1.msra.mxu0 %v308
    %2154 = vmatprep.subr.mxu0 0.0
    %2155 = vmatpush1.msra.mxu0 %v311
    %2156 = vmatprep.subr.mxu0 0.0
    %2157 = vmatpush1.msra.mxu0 %v314
    %2158 = vmatprep.subr.mxu0 0.0
    %2159 = vmatpush1.msra.mxu0 %v317
    %2160 = vmatprep.subr.mxu0 0.0
    %2161 = vmatpush1.msra.mxu0 %v320
    %2162 = vmatprep.subr.mxu0 0.0
    %2163 = vmatpush1.msra.mxu0 %v323
    %2164 = vmatprep.subr.mxu0 0.0
    %2165 = vmatpush1.msra.mxu0 %v326
    %2166 = vmatprep.subr.mxu0 0.0
    %2167 = vmatpush1.msra.mxu0 %v329
    %2168 = vmatprep.subr.mxu0 0.0
    %2169 = vmatpush1.msra.mxu0 %v332
    %2170 = vmatprep.subr.mxu0 0.0
    %2171 = vmatpush1.msra.mxu0 %v335
    %2172 = vmatprep.subr.mxu0 0.0
    %2173 = vmatpush1.msra.mxu0 %v338
    %2174 = vmatprep.subr.mxu0 0.0
    %2175 = vmatpush1.msra.mxu0 %v341
    %2176 = vmatprep.subr.mxu0 0.0
    %2177 = vmatpush1.msra.mxu0 %v344
    %2178 = vmatprep.subr.mxu0 0.0
    %2179 = vmatpush1.msra.mxu0 %v347
    %2180 = vmatprep.subr.mxu0 0.0
    %2181 = vmatpush1.msra.mxu0 %v350
    %2182 = vmatprep.subr.mxu0 0.0
    %2183 = vmatpush1.msra.mxu0 0.0
    %2184 = vmatprep.subr.mxu0 0.0
    %2185 = vmatpush1.msra.mxu0 0.0
    %2186 = vmatprep.subr.mxu0 0.0
    %2187 = vmatpush1.msra.mxu0 0.0
    %2188 = vmatprep.subr.mxu0 0.0
    %2189 = vmatpush1.msra.mxu0 0.0
    %2190 = vmatprep.subr.mxu0 0.0
    %2191 = vmatpush1.msra.mxu0 0.0
    %2192 = vmatprep.subr.mxu0 0.0
    %2193 = vmatpush1.msra.mxu0 0.0
    %2194 = vmatprep.subr.mxu0 0.0
    %2195 = vmatpush1.msra.mxu0 0.0
    %2196 = vmatprep.subr.mxu0 0.0
    %2197 = vmatpush1.msra.mxu0 0.0
    %2198 = vmatprep.subr.mxu0 0.0
    %2199 = vmatpush1.msra.mxu0 0.0
    %2200 = vmatprep.subr.mxu0 0.0
    %2201 = vmatpush1.msra.mxu0 0.0
    %2202 = vmatprep.subr.mxu0 0.0
    %2203 = vmatpush1.msra.mxu0 0.0
    %2204 = vmatprep.subr.mxu0 0.0
    %2205 = vmatpush1.msra.mxu0 0.0
    %2206 = vmatprep.subr.mxu0 0.0
    %2207 = vmatpush1.msra.mxu0 0.0
    %2208 = vmatprep.subr.mxu0 0.0
    %2209 = vmatpush1.msra.mxu0 0.0
    %2210 = vmatprep.subr.mxu0 0.0
    %2211 = vmatpush1.msra.mxu0 0.0
    %2212 = vmatprep.subr.mxu0 0.0
    %2213 = vmatpush1.msra.mxu0 0.0
    %2214 = vmatprep.mubr.f32.mxu0 0.0
    %2215 = vmatmul.mubr.f32.gmra.mrb[0].mxu0 %v2074
    %v2216 = vpop.f32.mrb[0].mxu0
    %v2217 = vadd.f32 0.0, %v2216
    %v2218 = vpop.f32.mrb[0].mxu0
    %2219 = vdwg.mxu0
    %v2223 = vcombine.low %v2146, %v2148
    %v2225 = vunpack.c.l.s4 1966171168
    %v2226 = vunpack.c.0.s8 %v2225
    %v2227 = vlaneseq
    %v2228 = vshrl.u32 %v2227, 7
    %v2229 = vsub.s32 %v2226, %v2228
    %v2230 = vrot.slane %v2223, %v2229
    %v2232 = vunpack.c.l.s4 1966171168
    %v2233 = vunpack.c.0.s8 %v2232
    %v2234 = vlaneseq
    %v2235 = vshrl.u32 %v2234, 7
    %v2236 = vsub.s32 %v2233, %v2235
    %v2237 = vrot.slane %v2217, %v2236
    %v2238 = vcombine.low %v2230, %v2237
    %v2240 = vunpack.c.l.s4 1966171168
    %v2241 = vunpack.c.0.s8 %v2240
    %v2242 = vlaneseq
    %v2243 = vshrl.u32 %v2242, 7
    %v2244 = vsub.s32 %v2241, %v2243
    %v2245 = vrot.slane %v2238, %v2244
    %v2247 = vadd.f32 %v2078, %v2245
    %2248 = vmatprep.subr.mxu0 0.0
    %2249 = vmatpush1.msra.mxu0 %v351
    %2250 = vmatprep.subr.mxu0 0.0
    %2251 = vmatpush1.msra.mxu0 %v352
    %2252 = vmatprep.subr.mxu0 0.0
    %2253 = vmatpush1.msra.mxu0 %v353
    %2254 = vmatprep.subr.mxu0 0.0
    %2255 = vmatpush1.msra.mxu0 %v354
    %2256 = vmatprep.subr.mxu0 0.0
    %2257 = vmatpush1.msra.mxu0 %v355
    %2258 = vmatprep.subr.mxu0 0.0
    %2259 = vmatpush1.msra.mxu0 %v356
    %2260 = vmatprep.subr.mxu0 0.0
    %2261 = vmatpush1.msra.mxu0 %v357
    %2262 = vmatprep.subr.mxu0 0.0
    %2263 = vmatpush1.msra.mxu0 %v358
    %2264 = vmatprep.subr.mxu0 0.0
    %2265 = vmatpush1.msra.mxu0 %v359
    %2266 = vmatprep.subr.mxu0 0.0
    %2267 = vmatpush1.msra.mxu0 %v360
    %2268 = vmatprep.subr.mxu0 0.0
    %2269 = vmatpush1.msra.mxu0 %v361
    %2270 = vmatprep.subr.mxu0 0.0
    %2271 = vmatpush1.msra.mxu0 %v362
    %2272 = vmatprep.subr.mxu0 0.0
    %2273 = vmatpush1.msra.mxu0 %v363
    %2274 = vmatprep.subr.mxu0 0.0
    %2275 = vmatpush1.msra.mxu0 %v364
    %2276 = vmatprep.subr.mxu0 0.0
    %2277 = vmatpush1.msra.mxu0 %v365
    %2278 = vmatprep.subr.mxu0 0.0
    %2279 = vmatpush1.msra.mxu0 %v366
    %2280 = vmatprep.subr.mxu0 0.0
    %2281 = vmatpush1.msra.mxu0 0.0
    %2282 = vmatprep.subr.mxu0 0.0
    %2283 = vmatpush1.msra.mxu0 0.0
    %2284 = vmatprep.subr.mxu0 0.0
    %2285 = vmatpush1.msra.mxu0 0.0
    %2286 = vmatprep.subr.mxu0 0.0
    %2287 = vmatpush1.msra.mxu0 0.0
    %2288 = vmatprep.subr.mxu0 0.0
    %2289 = vmatpush1.msra.mxu0 0.0
    %2290 = vmatprep.subr.mxu0 0.0
    %2291 = vmatpush1.msra.mxu0 0.0
    %2292 = vmatprep.subr.mxu0 0.0
    %2293 = vmatpush1.msra.mxu0 0.0
    %2294 = vmatprep.subr.mxu0 0.0
    %2295 = vmatpush1.msra.mxu0 0.0
    %2296 = vmatprep.subr.mxu0 0.0
    %2297 = vmatpush1.msra.mxu0 0.0
    %2298 = vmatprep.subr.mxu0 0.0
    %2299 = vmatpush1.msra.mxu0 0.0
    %2300 = vmatprep.subr.mxu0 0.0
    %2301 = vmatpush1.msra.mxu0 0.0
    %2302 = vmatprep.subr.mxu0 0.0
    %2303 = vmatpush1.msra.mxu0 0.0
    %2304 = vmatprep.subr.mxu0 0.0
    %2305 = vmatpush1.msra.mxu0 0.0
    %2306 = vmatprep.subr.mxu0 0.0
    %2307 = vmatpush1.msra.mxu0 0.0
    %2308 = vmatprep.subr.mxu0 0.0
    %2309 = vmatpush1.msra.mxu0 0.0
    %2310 = vmatprep.subr.mxu0 0.0
    %2311 = vmatpush1.msra.mxu0 0.0
    %2312 = vmatprep.mubr.f32.mxu0 0.0
    %2313 = vmatmul.mubr.f32.gmra.mrb[0].mxu0 %v1993
    %v2314 = vpop.f32.mrb[0].mxu0
    %v2315 = vadd.f32 0.0, %v2314
    %v2316 = vpop.f32.mrb[0].mxu0
    %2317 = vdwg.mxu0
    %v2318 = vadd.f32 %v2247, %v2315
    %v2319 = vxor.u32 %v2318, 2147483648
    %v2320 = vmul.f32 %v2319, 1.442695
    %v2321 = vpow.pop %v2320
    %v2322 = vadd.f32 %v2321, 1.0
    %v2323 = vrcp.pop %v2322
    %v2324 = vmul.f32 1.0, %v2323
    %v2325 = vsub.f32 1.0, %v2324
    %v2327 = vrot.slane %v2247, 2
    %v2329 = vtanh.pop %v2327
    %v2330 = vmul.f32 %v2324, %v2329
    %v2331 = vmul.f32 %v2325, %v1993
    %v2332 = vadd.f32 %v2330, %v2331
    %2333 = vmatprep.subr.mxu0 0.0
    %2334 = vmatpush1.msra.mxu0 %v367
    %2335 = vmatprep.subr.mxu0 0.0
    %2336 = vmatpush1.msra.mxu0 %v368
    %2337 = vmatprep.subr.mxu0 0.0
    %2338 = vmatpush1.msra.mxu0 %v369
    %2339 = vmatprep.subr.mxu0 0.0
    %2340 = vmatpush1.msra.mxu0 %v370
    %2341 = vmatprep.subr.mxu0 0.0
    %2342 = vmatpush1.msra.mxu0 %v371
    %2343 = vmatprep.subr.mxu0 0.0
    %2344 = vmatpush1.msra.mxu0 %v372
    %2345 = vmatprep.subr.mxu0 0.0
    %2346 = vmatpush1.msra.mxu0 %v373
    %2347 = vmatprep.subr.mxu0 0.0
    %2348 = vmatpush1.msra.mxu0 %v374
    %2349 = vmatprep.subr.mxu0 0.0
    %2350 = vmatpush1.msra.mxu0 %v375
    %2351 = vmatprep.subr.mxu0 0.0
    %2352 = vmatpush1.msra.mxu0 %v376
    %2353 = vmatprep.subr.mxu0 0.0
    %2354 = vmatpush1.msra.mxu0 %v377
    %2355 = vmatprep.subr.mxu0 0.0
    %2356 = vmatpush1.msra.mxu0 %v378
    %2357 = vmatprep.subr.mxu0 0.0
    %2358 = vmatpush1.msra.mxu0 %v379
    %2359 = vmatprep.subr.mxu0 0.0
    %2360 = vmatpush1.msra.mxu0 %v380
    %2361 = vmatprep.subr.mxu0 0.0
    %2362 = vmatpush1.msra.mxu0 %v381
    %2363 = vmatprep.subr.mxu0 0.0
    %2364 = vmatpush1.msra.mxu0 %v382
    %2365 = vmatprep.subr.mxu0 0.0
    %2366 = vmatpush1.msra.mxu0 0.0
    %2367 = vmatprep.subr.mxu0 0.0
    %2368 = vmatpush1.msra.mxu0 0.0
    %2369 = vmatprep.subr.mxu0 0.0
    %2370 = vmatpush1.msra.mxu0 0.0
    %2371 = vmatprep.subr.mxu0 0.0
    %2372 = vmatpush1.msra.mxu0 0.0
    %2373 = vmatprep.subr.mxu0 0.0
    %2374 = vmatpush1.msra.mxu0 0.0
    %2375 = vmatprep.subr.mxu0 0.0
    %2376 = vmatpush1.msra.mxu0 0.0
    %2377 = vmatprep.subr.mxu0 0.0
    %2378 = vmatpush1.msra.mxu0 0.0
    %2379 = vmatprep.subr.mxu0 0.0
    %2380 = vmatpush1.msra.mxu0 0.0
    %2381 = vmatprep.subr.mxu0 0.0
    %2382 = vmatpush1.msra.mxu0 0.0
    %2383 = vmatprep.subr.mxu0 0.0
    %2384 = vmatpush1.msra.mxu0 0.0
    %2385 = vmatprep.subr.mxu0 0.0
    %2386 = vmatpush1.msra.mxu0 0.0
    %2387 = vmatprep.subr.mxu0 0.0
    %2388 = vmatpush1.msra.mxu0 0.0
    %2389 = vmatprep.subr.mxu0 0.0
    %2390 = vmatpush1.msra.mxu0 0.0
    %2391 = vmatprep.subr.mxu0 0.0
    %2392 = vmatpush1.msra.mxu0 0.0
    %2393 = vmatprep.subr.mxu0 0.0
    %2394 = vmatpush1.msra.mxu0 0.0
    %2395 = vmatprep.subr.mxu0 0.0
    %2396 = vmatpush1.msra.mxu0 0.0
    %2397 = vmatprep.mubr.f32.mxu0 0.0
    %2398 = vmatmul.mubr.f32.gmra.mrb[0].mxu0 %v2332
    %v2399 = vpop.f32.mrb[0].mxu0
    %v2400 = vadd.f32 0.0, %v2399
    %v2401 = vpop.f32.mrb[0].mxu0
    %2402 = vdwg.mxu0
    %v2403 = vrot.slane %v2247, 1
    %v2405 = vadd.f32 %v2403, %v2400
    %v2406 = vxor.u32 %v2405, 2147483648
    %v2407 = vmul.f32 %v2406, 1.442695
    %v2408 = vpow.pop %v2407
    %v2409 = vadd.f32 %v2408, 1.0
    %v2410 = vrcp.pop %v2409
    %v2411 = vmul.f32 1.0, %v2410
    %v2412 = vtanh.pop %v2332
    %v2413 = vmul.f32 %v2411, %v2412
    %2414 = vst [vmem:[#allocation12 + $0x5] sm:$0x1] %v2413
    %2415 = vst [vmem:[#allocation13 + $0x5] sm:$0x1] %v2332
    %s2416 = scalar_lea.vmem [#allocation2], 6
    %v2417 = vld [vmem:[%s2416] ss:$8 sm:$0x7]
    %2418 = vmatprep.subr.mxu0 %v304
    %2419 = vmatpush1.msra.mxu0 %v303
    %2420 = vmatprep.subr.mxu0 %v307
    %2421 = vmatpush1.msra.mxu0 %v306
    %2422 = vmatprep.subr.mxu0 %v310
    %2423 = vmatpush1.msra.mxu0 %v309
    %2424 = vmatprep.subr.mxu0 %v313
    %2425 = vmatpush1.msra.mxu0 %v312
    %2426 = vmatprep.subr.mxu0 %v316
    %2427 = vmatpush1.msra.mxu0 %v315
    %2428 = vmatprep.subr.mxu0 %v319
    %2429 = vmatpush1.msra.mxu0 %v318
    %2430 = vmatprep.subr.mxu0 %v322
    %2431 = vmatpush1.msra.mxu0 %v321
    %2432 = vmatprep.subr.mxu0 %v325
    %2433 = vmatpush1.msra.mxu0 %v324
    %2434 = vmatprep.subr.mxu0 %v328
    %2435 = vmatpush1.msra.mxu0 %v327
    %2436 = vmatprep.subr.mxu0 %v331
    %2437 = vmatpush1.msra.mxu0 %v330
    %2438 = vmatprep.subr.mxu0 %v334
    %2439 = vmatpush1.msra.mxu0 %v333
    %2440 = vmatprep.subr.mxu0 %v337
    %2441 = vmatpush1.msra.mxu0 %v336
    %2442 = vmatprep.subr.mxu0 %v340
    %2443 = vmatpush1.msra.mxu0 %v339
    %2444 = vmatprep.subr.mxu0 %v343
    %2445 = vmatpush1.msra.mxu0 %v342
    %2446 = vmatprep.subr.mxu0 %v346
    %2447 = vmatpush1.msra.mxu0 %v345
    %2448 = vmatprep.subr.mxu0 %v349
    %2449 = vmatpush1.msra.mxu0 %v348
    %2450 = vmatprep.subr.mxu0 0.0
    %2451 = vmatpush1.msra.mxu0 0.0
    %2452 = vmatprep.subr.mxu0 0.0
    %2453 = vmatpush1.msra.mxu0 0.0
    %2454 = vmatprep.subr.mxu0 0.0
    %2455 = vmatpush1.msra.mxu0 0.0
    %2456 = vmatprep.subr.mxu0 0.0
    %2457 = vmatpush1.msra.mxu0 0.0
    %2458 = vmatprep.subr.mxu0 0.0
    %2459 = vmatpush1.msra.mxu0 0.0
    %2460 = vmatprep.subr.mxu0 0.0
    %2461 = vmatpush1.msra.mxu0 0.0
    %2462 = vmatprep.subr.mxu0 0.0
    %2463 = vmatpush1.msra.mxu0 0.0
    %2464 = vmatprep.subr.mxu0 0.0
    %2465 = vmatpush1.msra.mxu0 0.0
    %2466 = vmatprep.subr.mxu0 0.0
    %2467 = vmatpush1.msra.mxu0 0.0
    %2468 = vmatprep.subr.mxu0 0.0
    %2469 = vmatpush1.msra.mxu0 0.0
    %2470 = vmatprep.subr.mxu0 0.0
    %2471 = vmatpush1.msra.mxu0 0.0
    %2472 = vmatprep.subr.mxu0 0.0
    %2473 = vmatpush1.msra.mxu0 0.0
    %2474 = vmatprep.subr.mxu0 0.0
    %2475 = vmatpush1.msra.mxu0 0.0
    %2476 = vmatprep.subr.mxu0 0.0
    %2477 = vmatpush1.msra.mxu0 0.0
    %2478 = vmatprep.subr.mxu0 0.0
    %2479 = vmatpush1.msra.mxu0 0.0
    %2480 = vmatprep.subr.mxu0 0.0
    %2481 = vmatpush1.msra.mxu0 0.0
    %2482 = vmatprep.mubr.f32.mxu0 0.0
    %2483 = vmatmul.mubr.f32.gmra.mrb[0].mxu0 %v2413
    %v2484 = vpop.f32.mrb[0].mxu0
    %v2485 = vadd.f32 0.0, %v2484
    %v2486 = vpop.f32.mrb[0].mxu0
    %v2487 = vadd.f32 0.0, %v2486
    %2488 = vdwg.mxu0
    %2489 = vmatprep.subr.mxu0 0.0
    %2490 = vmatpush1.msra.mxu0 %v305
    %2491 = vmatprep.subr.mxu0 0.0
    %2492 = vmatpush1.msra.mxu0 %v308
    %2493 = vmatprep.subr.mxu0 0.0
    %2494 = vmatpush1.msra.mxu0 %v311
    %2495 = vmatprep.subr.mxu0 0.0
    %2496 = vmatpush1.msra.mxu0 %v314
    %2497 = vmatprep.subr.mxu0 0.0
    %2498 = vmatpush1.msra.mxu0 %v317
    %2499 = vmatprep.subr.mxu0 0.0
    %2500 = vmatpush1.msra.mxu0 %v320
    %2501 = vmatprep.subr.mxu0 0.0
    %2502 = vmatpush1.msra.mxu0 %v323
    %2503 = vmatprep.subr.mxu0 0.0
    %2504 = vmatpush1.msra.mxu0 %v326
    %2505 = vmatprep.subr.mxu0 0.0
    %2506 = vmatpush1.msra.mxu0 %v329
    %2507 = vmatprep.subr.mxu0 0.0
    %2508 = vmatpush1.msra.mxu0 %v332
    %2509 = vmatprep.subr.mxu0 0.0
    %2510 = vmatpush1.msra.mxu0 %v335
    %2511 = vmatprep.subr.mxu0 0.0
    %2512 = vmatpush1.msra.mxu0 %v338
    %2513 = vmatprep.subr.mxu0 0.0
    %2514 = vmatpush1.msra.mxu0 %v341
    %2515 = vmatprep.subr.mxu0 0.0
    %2516 = vmatpush1.msra.mxu0 %v344
    %2517 = vmatprep.subr.mxu0 0.0
    %2518 = vmatpush1.msra.mxu0 %v347
    %2519 = vmatprep.subr.mxu0 0.0
    %2520 = vmatpush1.msra.mxu0 %v350
    %2521 = vmatprep.subr.mxu0 0.0
    %2522 = vmatpush1.msra.mxu0 0.0
    %2523 = vmatprep.subr.mxu0 0.0
    %2524 = vmatpush1.msra.mxu0 0.0
    %2525 = vmatprep.subr.mxu0 0.0
    %2526 = vmatpush1.msra.mxu0 0.0
    %2527 = vmatprep.subr.mxu0 0.0
    %2528 = vmatpush1.msra.mxu0 0.0
    %2529 = vmatprep.subr.mxu0 0.0
    %2530 = vmatpush1.msra.mxu0 0.0
    %2531 = vmatprep.subr.mxu0 0.0
    %2532 = vmatpush1.msra.mxu0 0.0
    %2533 = vmatprep.subr.mxu0 0.0
    %2534 = vmatpush1.msra.mxu0 0.0
    %2535 = vmatprep.subr.mxu0 0.0
    %2536 = vmatpush1.msra.mxu0 0.0
    %2537 = vmatprep.subr.mxu0 0.0
    %2538 = vmatpush1.msra.mxu0 0.0
    %2539 = vmatprep.subr.mxu0 0.0
    %2540 = vmatpush1.msra.mxu0 0.0
    %2541 = vmatprep.subr.mxu0 0.0
    %2542 = vmatpush1.msra.mxu0 0.0
    %2543 = vmatprep.subr.mxu0 0.0
    %2544 = vmatpush1.msra.mxu0 0.0
    %2545 = vmatprep.subr.mxu0 0.0
    %2546 = vmatpush1.msra.mxu0 0.0
    %2547 = vmatprep.subr.mxu0 0.0
    %2548 = vmatpush1.msra.mxu0 0.0
    %2549 = vmatprep.subr.mxu0 0.0
    %2550 = vmatpush1.msra.mxu0 0.0
    %2551 = vmatprep.subr.mxu0 0.0
    %2552 = vmatpush1.msra.mxu0 0.0
    %2553 = vmatprep.mubr.f32.mxu0 0.0
    %2554 = vmatmul.mubr.f32.gmra.mrb[0].mxu0 %v2413
    %v2555 = vpop.f32.mrb[0].mxu0
    %v2556 = vadd.f32 0.0, %v2555
    %v2557 = vpop.f32.mrb[0].mxu0
    %2558 = vdwg.mxu0
    %v2562 = vcombine.low %v2485, %v2487
    %v2564 = vunpack.c.l.s4 1966171168
    %v2565 = vunpack.c.0.s8 %v2564
    %v2566 = vlaneseq
    %v2567 = vshrl.u32 %v2566, 7
    %v2568 = vsub.s32 %v2565, %v2567
    %v2569 = vrot.slane %v2562, %v2568
    %v2571 = vunpack.c.l.s4 1966171168
    %v2572 = vunpack.c.0.s8 %v2571
    %v2573 = vlaneseq
    %v2574 = vshrl.u32 %v2573, 7
    %v2575 = vsub.s32 %v2572, %v2574
    %v2576 = vrot.slane %v2556, %v2575
    %v2577 = vcombine.low %v2569, %v2576
    %v2579 = vunpack.c.l.s4 1966171168
    %v2580 = vunpack.c.0.s8 %v2579
    %v2581 = vlaneseq
    %v2582 = vshrl.u32 %v2581, 7
    %v2583 = vsub.s32 %v2580, %v2582
    %v2584 = vrot.slane %v2577, %v2583
    %v2586 = vadd.f32 %v2417, %v2584
    %2587 = vmatprep.subr.mxu0 0.0
    %2588 = vmatpush1.msra.mxu0 %v351
    %2589 = vmatprep.subr.mxu0 0.0
    %2590 = vmatpush1.msra.mxu0 %v352
    %2591 = vmatprep.subr.mxu0 0.0
    %2592 = vmatpush1.msra.mxu0 %v353
    %2593 = vmatprep.subr.mxu0 0.0
    %2594 = vmatpush1.msra.mxu0 %v354
    %2595 = vmatprep.subr.mxu0 0.0
    %2596 = vmatpush1.msra.mxu0 %v355
    %2597 = vmatprep.subr.mxu0 0.0
    %2598 = vmatpush1.msra.mxu0 %v356
    %2599 = vmatprep.subr.mxu0 0.0
    %2600 = vmatpush1.msra.mxu0 %v357
    %2601 = vmatprep.subr.mxu0 0.0
    %2602 = vmatpush1.msra.mxu0 %v358
    %2603 = vmatprep.subr.mxu0 0.0
    %2604 = vmatpush1.msra.mxu0 %v359
    %2605 = vmatprep.subr.mxu0 0.0
    %2606 = vmatpush1.msra.mxu0 %v360
    %2607 = vmatprep.subr.mxu0 0.0
    %2608 = vmatpush1.msra.mxu0 %v361
    %2609 = vmatprep.subr.mxu0 0.0
    %2610 = vmatpush1.msra.mxu0 %v362
    %2611 = vmatprep.subr.mxu0 0.0
    %2612 = vmatpush1.msra.mxu0 %v363
    %2613 = vmatprep.subr.mxu0 0.0
    %2614 = vmatpush1.msra.mxu0 %v364
    %2615 = vmatprep.subr.mxu0 0.0
    %2616 = vmatpush1.msra.mxu0 %v365
    %2617 = vmatprep.subr.mxu0 0.0
    %2618 = vmatpush1.msra.mxu0 %v366
    %2619 = vmatprep.subr.mxu0 0.0
    %2620 = vmatpush1.msra.mxu0 0.0
    %2621 = vmatprep.subr.mxu0 0.0
    %2622 = vmatpush1.msra.mxu0 0.0
    %2623 = vmatprep.subr.mxu0 0.0
    %2624 = vmatpush1.msra.mxu0 0.0
    %2625 = vmatprep.subr.mxu0 0.0
    %2626 = vmatpush1.msra.mxu0 0.0
    %2627 = vmatprep.subr.mxu0 0.0
    %2628 = vmatpush1.msra.mxu0 0.0
    %2629 = vmatprep.subr.mxu0 0.0
    %2630 = vmatpush1.msra.mxu0 0.0
    %2631 = vmatprep.subr.mxu0 0.0
    %2632 = vmatpush1.msra.mxu0 0.0
    %2633 = vmatprep.subr.mxu0 0.0
    %2634 = vmatpush1.msra.mxu0 0.0
    %2635 = vmatprep.subr.mxu0 0.0
    %2636 = vmatpush1.msra.mxu0 0.0
    %2637 = vmatprep.subr.mxu0 0.0
    %2638 = vmatpush1.msra.mxu0 0.0
    %2639 = vmatprep.subr.mxu0 0.0
    %2640 = vmatpush1.msra.mxu0 0.0
    %2641 = vmatprep.subr.mxu0 0.0
    %2642 = vmatpush1.msra.mxu0 0.0
    %2643 = vmatprep.subr.mxu0 0.0
    %2644 = vmatpush1.msra.mxu0 0.0
    %2645 = vmatprep.subr.mxu0 0.0
    %2646 = vmatpush1.msra.mxu0 0.0
    %2647 = vmatprep.subr.mxu0 0.0
    %2648 = vmatpush1.msra.mxu0 0.0
    %2649 = vmatprep.subr.mxu0 0.0
    %2650 = vmatpush1.msra.mxu0 0.0
    %2651 = vmatprep.mubr.f32.mxu0 0.0
    %2652 = vmatmul.mubr.f32.gmra.mrb[0].mxu0 %v2332
    %v2653 = vpop.f32.mrb[0].mxu0
    %v2654 = vadd.f32 0.0, %v2653
    %v2655 = vpop.f32.mrb[0].mxu0
    %2656 = vdwg.mxu0
    %v2657 = vadd.f32 %v2586, %v2654
    %v2658 = vxor.u32 %v2657, 2147483648
    %v2659 = vmul.f32 %v2658, 1.442695
    %v2660 = vpow.pop %v2659
    %v2661 = vadd.f32 %v2660, 1.0
    %v2662 = vrcp.pop %v2661
    %v2663 = vmul.f32 1.0, %v2662
    %v2664 = vsub.f32 1.0, %v2663
    %v2666 = vrot.slane %v2586, 2
    %v2668 = vtanh.pop %v2666
    %v2669 = vmul.f32 %v2663, %v2668
    %v2670 = vmul.f32 %v2664, %v2332
    %v2671 = vadd.f32 %v2669, %v2670
    %2672 = vmatprep.subr.mxu0 0.0
    %2673 = vmatpush1.msra.mxu0 %v367
    %2674 = vmatprep.subr.mxu0 0.0
    %2675 = vmatpush1.msra.mxu0 %v368
    %2676 = vmatprep.subr.mxu0 0.0
    %2677 = vmatpush1.msra.mxu0 %v369
    %2678 = vmatprep.subr.mxu0 0.0
    %2679 = vmatpush1.msra.mxu0 %v370
    %2680 = vmatprep.subr.mxu0 0.0
    %2681 = vmatpush1.msra.mxu0 %v371
    %2682 = vmatprep.subr.mxu0 0.0
    %2683 = vmatpush1.msra.mxu0 %v372
    %2684 = vmatprep.subr.mxu0 0.0
    %2685 = vmatpush1.msra.mxu0 %v373
    %2686 = vmatprep.subr.mxu0 0.0
    %2687 = vmatpush1.msra.mxu0 %v374
    %2688 = vmatprep.subr.mxu0 0.0
    %2689 = vmatpush1.msra.mxu0 %v375
    %2690 = vmatprep.subr.mxu0 0.0
    %2691 = vmatpush1.msra.mxu0 %v376
    %2692 = vmatprep.subr.mxu0 0.0
    %2693 = vmatpush1.msra.mxu0 %v377
    %2694 = vmatprep.subr.mxu0 0.0
    %2695 = vmatpush1.msra.mxu0 %v378
    %2696 = vmatprep.subr.mxu0 0.0
    %2697 = vmatpush1.msra.mxu0 %v379
    %2698 = vmatprep.subr.mxu0 0.0
    %2699 = vmatpush1.msra.mxu0 %v380
    %2700 = vmatprep.subr.mxu0 0.0
    %2701 = vmatpush1.msra.mxu0 %v381
    %2702 = vmatprep.subr.mxu0 0.0
    %2703 = vmatpush1.msra.mxu0 %v382
    %2704 = vmatprep.subr.mxu0 0.0
    %2705 = vmatpush1.msra.mxu0 0.0
    %2706 = vmatprep.subr.mxu0 0.0
    %2707 = vmatpush1.msra.mxu0 0.0
    %2708 = vmatprep.subr.mxu0 0.0
    %2709 = vmatpush1.msra.mxu0 0.0
    %2710 = vmatprep.subr.mxu0 0.0
    %2711 = vmatpush1.msra.mxu0 0.0
    %2712 = vmatprep.subr.mxu0 0.0
    %2713 = vmatpush1.msra.mxu0 0.0
    %2714 = vmatprep.subr.mxu0 0.0
    %2715 = vmatpush1.msra.mxu0 0.0
    %2716 = vmatprep.subr.mxu0 0.0
    %2717 = vmatpush1.msra.mxu0 0.0
    %2718 = vmatprep.subr.mxu0 0.0
    %2719 = vmatpush1.msra.mxu0 0.0
    %2720 = vmatprep.subr.mxu0 0.0
    %2721 = vmatpush1.msra.mxu0 0.0
    %2722 = vmatprep.subr.mxu0 0.0
    %2723 = vmatpush1.msra.mxu0 0.0
    %2724 = vmatprep.subr.mxu0 0.0
    %2725 = vmatpush1.msra.mxu0 0.0
    %2726 = vmatprep.subr.mxu0 0.0
    %2727 = vmatpush1.msra.mxu0 0.0
    %2728 = vmatprep.subr.mxu0 0.0
    %2729 = vmatpush1.msra.mxu0 0.0
    %2730 = vmatprep.subr.mxu0 0.0
    %2731 = vmatpush1.msra.mxu0 0.0
    %2732 = vmatprep.subr.mxu0 0.0
    %2733 = vmatpush1.msra.mxu0 0.0
    %2734 = vmatprep.subr.mxu0 0.0
    %2735 = vmatpush1.msra.mxu0 0.0
    %2736 = vmatprep.mubr.f32.mxu0 0.0
    %2737 = vmatmul.mubr.f32.gmra.mrb[0].mxu0 %v2671
    %v2738 = vpop.f32.mrb[0].mxu0
    %v2739 = vadd.f32 0.0, %v2738
    %v2740 = vpop.f32.mrb[0].mxu0
    %2741 = vdwg.mxu0
    %v2742 = vrot.slane %v2586, 1
    %v2744 = vadd.f32 %v2742, %v2739
    %v2745 = vxor.u32 %v2744, 2147483648
    %v2746 = vmul.f32 %v2745, 1.442695
    %v2747 = vpow.pop %v2746
    %v2748 = vadd.f32 %v2747, 1.0
    %v2749 = vrcp.pop %v2748
    %v2750 = vmul.f32 1.0, %v2749
    %v2751 = vtanh.pop %v2671
    %v2752 = vmul.f32 %v2750, %v2751
    %2753 = vst [vmem:[#allocation12 + $0x6] sm:$0x1] %v2752
    %2754 = vst [vmem:[#allocation13 + $0x6] sm:$0x1] %v2671
    %s2755 = scalar_lea.vmem [#allocation2], 7
    %v2756 = vld [vmem:[%s2755] ss:$8 sm:$0x7]
    %2757 = vmatprep.subr.mxu0 %v304
    %2758 = vmatpush1.msra.mxu0 %v303
    %2759 = vmatprep.subr.mxu0 %v307
    %2760 = vmatpush1.msra.mxu0 %v306
    %2761 = vmatprep.subr.mxu0 %v310
    %2762 = vmatpush1.msra.mxu0 %v309
    %2763 = vmatprep.subr.mxu0 %v313
    %2764 = vmatpush1.msra.mxu0 %v312
    %2765 = vmatprep.subr.mxu0 %v316
    %2766 = vmatpush1.msra.mxu0 %v315
    %2767 = vmatprep.subr.mxu0 %v319
    %2768 = vmatpush1.msra.mxu0 %v318
    %2769 = vmatprep.subr.mxu0 %v322
    %2770 = vmatpush1.msra.mxu0 %v321
    %2771 = vmatprep.subr.mxu0 %v325
    %2772 = vmatpush1.msra.mxu0 %v324
    %2773 = vmatprep.subr.mxu0 %v328
    %2774 = vmatpush1.msra.mxu0 %v327
    %2775 = vmatprep.subr.mxu0 %v331
    %2776 = vmatpush1.msra.mxu0 %v330
    %2777 = vmatprep.subr.mxu0 %v334
    %2778 = vmatpush1.msra.mxu0 %v333
    %2779 = vmatprep.subr.mxu0 %v337
    %2780 = vmatpush1.msra.mxu0 %v336
    %2781 = vmatprep.subr.mxu0 %v340
    %2782 = vmatpush1.msra.mxu0 %v339
    %2783 = vmatprep.subr.mxu0 %v343
    %2784 = vmatpush1.msra.mxu0 %v342
    %2785 = vmatprep.subr.mxu0 %v346
    %2786 = vmatpush1.msra.mxu0 %v345
    %2787 = vmatprep.subr.mxu0 %v349
    %2788 = vmatpush1.msra.mxu0 %v348
    %2789 = vmatprep.subr.mxu0 0.0
    %2790 = vmatpush1.msra.mxu0 0.0
    %2791 = vmatprep.subr.mxu0 0.0
    %2792 = vmatpush1.msra.mxu0 0.0
    %2793 = vmatprep.subr.mxu0 0.0
    %2794 = vmatpush1.msra.mxu0 0.0
    %2795 = vmatprep.subr.mxu0 0.0
    %2796 = vmatpush1.msra.mxu0 0.0
    %2797 = vmatprep.subr.mxu0 0.0
    %2798 = vmatpush1.msra.mxu0 0.0
    %2799 = vmatprep.subr.mxu0 0.0
    %2800 = vmatpush1.msra.mxu0 0.0
    %2801 = vmatprep.subr.mxu0 0.0
    %2802 = vmatpush1.msra.mxu0 0.0
    %2803 = vmatprep.subr.mxu0 0.0
    %2804 = vmatpush1.msra.mxu0 0.0
    %2805 = vmatprep.subr.mxu0 0.0
    %2806 = vmatpush1.msra.mxu0 0.0
    %2807 = vmatprep.subr.mxu0 0.0
    %2808 = vmatpush1.msra.mxu0 0.0
    %2809 = vmatprep.subr.mxu0 0.0
    %2810 = vmatpush1.msra.mxu0 0.0
    %2811 = vmatprep.subr.mxu0 0.0
    %2812 = vmatpush1.msra.mxu0 0.0
    %2813 = vmatprep.subr.mxu0 0.0
    %2814 = vmatpush1.msra.mxu0 0.0
    %2815 = vmatprep.subr.mxu0 0.0
    %2816 = vmatpush1.msra.mxu0 0.0
    %2817 = vmatprep.subr.mxu0 0.0
    %2818 = vmatpush1.msra.mxu0 0.0
    %2819 = vmatprep.subr.mxu0 0.0
    %2820 = vmatpush1.msra.mxu0 0.0
    %2821 = vmatprep.mubr.f32.mxu0 0.0
    %2822 = vmatmul.mubr.f32.gmra.mrb[0].mxu0 %v2752
    %v2823 = vpop.f32.mrb[0].mxu0
    %v2824 = vadd.f32 0.0, %v2823
    %v2825 = vpop.f32.mrb[0].mxu0
    %v2826 = vadd.f32 0.0, %v2825
    %2827 = vdwg.mxu0
    %2828 = vmatprep.subr.mxu0 0.0
    %2829 = vmatpush1.msra.mxu0 %v305
    %2830 = vmatprep.subr.mxu0 0.0
    %2831 = vmatpush1.msra.mxu0 %v308
    %2832 = vmatprep.subr.mxu0 0.0
    %2833 = vmatpush1.msra.mxu0 %v311
    %2834 = vmatprep.subr.mxu0 0.0
    %2835 = vmatpush1.msra.mxu0 %v314
    %2836 = vmatprep.subr.mxu0 0.0
    %2837 = vmatpush1.msra.mxu0 %v317
    %2838 = vmatprep.subr.mxu0 0.0
    %2839 = vmatpush1.msra.mxu0 %v320
    %2840 = vmatprep.subr.mxu0 0.0
    %2841 = vmatpush1.msra.mxu0 %v323
    %2842 = vmatprep.subr.mxu0 0.0
    %2843 = vmatpush1.msra.mxu0 %v326
    %2844 = vmatprep.subr.mxu0 0.0
    %2845 = vmatpush1.msra.mxu0 %v329
    %2846 = vmatprep.subr.mxu0 0.0
    %2847 = vmatpush1.msra.mxu0 %v332
    %2848 = vmatprep.subr.mxu0 0.0
    %2849 = vmatpush1.msra.mxu0 %v335
    %2850 = vmatprep.subr.mxu0 0.0
    %2851 = vmatpush1.msra.mxu0 %v338
    %2852 = vmatprep.subr.mxu0 0.0
    %2853 = vmatpush1.msra.mxu0 %v341
    %2854 = vmatprep.subr.mxu0 0.0
    %2855 = vmatpush1.msra.mxu0 %v344
    %2856 = vmatprep.subr.mxu0 0.0
    %2857 = vmatpush1.msra.mxu0 %v347
    %2858 = vmatprep.subr.mxu0 0.0
    %2859 = vmatpush1.msra.mxu0 %v350
    %2860 = vmatprep.subr.mxu0 0.0
    %2861 = vmatpush1.msra.mxu0 0.0
    %2862 = vmatprep.subr.mxu0 0.0
    %2863 = vmatpush1.msra.mxu0 0.0
    %2864 = vmatprep.subr.mxu0 0.0
    %2865 = vmatpush1.msra.mxu0 0.0
    %2866 = vmatprep.subr.mxu0 0.0
    %2867 = vmatpush1.msra.mxu0 0.0
    %2868 = vmatprep.subr.mxu0 0.0
    %2869 = vmatpush1.msra.mxu0 0.0
    %2870 = vmatprep.subr.mxu0 0.0
    %2871 = vmatpush1.msra.mxu0 0.0
    %2872 = vmatprep.subr.mxu0 0.0
    %2873 = vmatpush1.msra.mxu0 0.0
    %2874 = vmatprep.subr.mxu0 0.0
    %2875 = vmatpush1.msra.mxu0 0.0
    %2876 = vmatprep.subr.mxu0 0.0
    %2877 = vmatpush1.msra.mxu0 0.0
    %2878 = vmatprep.subr.mxu0 0.0
    %2879 = vmatpush1.msra.mxu0 0.0
    %2880 = vmatprep.subr.mxu0 0.0
    %2881 = vmatpush1.msra.mxu0 0.0
    %2882 = vmatprep.subr.mxu0 0.0
    %2883 = vmatpush1.msra.mxu0 0.0
    %2884 = vmatprep.subr.mxu0 0.0
    %2885 = vmatpush1.msra.mxu0 0.0
    %2886 = vmatprep.subr.mxu0 0.0
    %2887 = vmatpush1.msra.mxu0 0.0
    %2888 = vmatprep.subr.mxu0 0.0
    %2889 = vmatpush1.msra.mxu0 0.0
    %2890 = vmatprep.subr.mxu0 0.0
    %2891 = vmatpush1.msra.mxu0 0.0
    %2892 = vmatprep.mubr.f32.mxu0 0.0
    %2893 = vmatmul.mubr.f32.gmra.mrb[0].mxu0 %v2752
    %v2894 = vpop.f32.mrb[0].mxu0
    %v2895 = vadd.f32 0.0, %v2894
    %v2896 = vpop.f32.mrb[0].mxu0
    %2897 = vdwg.mxu0
    %v2901 = vcombine.low %v2824, %v2826
    %v2903 = vunpack.c.l.s4 1966171168
    %v2904 = vunpack.c.0.s8 %v2903
    %v2905 = vlaneseq
    %v2906 = vshrl.u32 %v2905, 7
    %v2907 = vsub.s32 %v2904, %v2906
    %v2908 = vrot.slane %v2901, %v2907
    %v2910 = vunpack.c.l.s4 1966171168
    %v2911 = vunpack.c.0.s8 %v2910
    %v2912 = vlaneseq
    %v2913 = vshrl.u32 %v2912, 7
    %v2914 = vsub.s32 %v2911, %v2913
    %v2915 = vrot.slane %v2895, %v2914
    %v2916 = vcombine.low %v2908, %v2915
    %v2918 = vunpack.c.l.s4 1966171168
    %v2919 = vunpack.c.0.s8 %v2918
    %v2920 = vlaneseq
    %v2921 = vshrl.u32 %v2920, 7
    %v2922 = vsub.s32 %v2919, %v2921
    %v2923 = vrot.slane %v2916, %v2922
    %v2925 = vadd.f32 %v2756, %v2923
    %2926 = vmatprep.subr.mxu0 0.0
    %2927 = vmatpush1.msra.mxu0 %v351
    %2928 = vmatprep.subr.mxu0 0.0
    %2929 = vmatpush1.msra.mxu0 %v352
    %2930 = vmatprep.subr.mxu0 0.0
    %2931 = vmatpush1.msra.mxu0 %v353
    %2932 = vmatprep.subr.mxu0 0.0
    %2933 = vmatpush1.msra.mxu0 %v354
    %2934 = vmatprep.subr.mxu0 0.0
    %2935 = vmatpush1.msra.mxu0 %v355
    %2936 = vmatprep.subr.mxu0 0.0
    %2937 = vmatpush1.msra.mxu0 %v356
    %2938 = vmatprep.subr.mxu0 0.0
    %2939 = vmatpush1.msra.mxu0 %v357
    %2940 = vmatprep.subr.mxu0 0.0
    %2941 = vmatpush1.msra.mxu0 %v358
    %2942 = vmatprep.subr.mxu0 0.0
    %2943 = vmatpush1.msra.mxu0 %v359
    %2944 = vmatprep.subr.mxu0 0.0
    %2945 = vmatpush1.msra.mxu0 %v360
    %2946 = vmatprep.subr.mxu0 0.0
    %2947 = vmatpush1.msra.mxu0 %v361
    %2948 = vmatprep.subr.mxu0 0.0
    %2949 = vmatpush1.msra.mxu0 %v362
    %2950 = vmatprep.subr.mxu0 0.0
    %2951 = vmatpush1.msra.mxu0 %v363
    %2952 = vmatprep.subr.mxu0 0.0
    %2953 = vmatpush1.msra.mxu0 %v364
    %2954 = vmatprep.subr.mxu0 0.0
    %2955 = vmatpush1.msra.mxu0 %v365
    %2956 = vmatprep.subr.mxu0 0.0
    %2957 = vmatpush1.msra.mxu0 %v366
    %2958 = vmatprep.subr.mxu0 0.0
    %2959 = vmatpush1.msra.mxu0 0.0
    %2960 = vmatprep.subr.mxu0 0.0
    %2961 = vmatpush1.msra.mxu0 0.0
    %2962 = vmatprep.subr.mxu0 0.0
    %2963 = vmatpush1.msra.mxu0 0.0
    %2964 = vmatprep.subr.mxu0 0.0
    %2965 = vmatpush1.msra.mxu0 0.0
    %2966 = vmatprep.subr.mxu0 0.0
    %2967 = vmatpush1.msra.mxu0 0.0
    %2968 = vmatprep.subr.mxu0 0.0
    %2969 = vmatpush1.msra.mxu0 0.0
    %2970 = vmatprep.subr.mxu0 0.0
    %2971 = vmatpush1.msra.mxu0 0.0
    %2972 = vmatprep.subr.mxu0 0.0
    %2973 = vmatpush1.msra.mxu0 0.0
    %2974 = vmatprep.subr.mxu0 0.0
    %2975 = vmatpush1.msra.mxu0 0.0
    %2976 = vmatprep.subr.mxu0 0.0
    %2977 = vmatpush1.msra.mxu0 0.0
    %2978 = vmatprep.subr.mxu0 0.0
    %2979 = vmatpush1.msra.mxu0 0.0
    %2980 = vmatprep.subr.mxu0 0.0
    %2981 = vmatpush1.msra.mxu0 0.0
    %2982 = vmatprep.subr.mxu0 0.0
    %2983 = vmatpush1.msra.mxu0 0.0
    %2984 = vmatprep.subr.mxu0 0.0
    %2985 = vmatpush1.msra.mxu0 0.0
    %2986 = vmatprep.subr.mxu0 0.0
    %2987 = vmatpush1.msra.mxu0 0.0
    %2988 = vmatprep.subr.mxu0 0.0
    %2989 = vmatpush1.msra.mxu0 0.0
    %2990 = vmatprep.mubr.f32.mxu0 0.0
    %2991 = vmatmul.mubr.f32.gmra.mrb[0].mxu0 %v2671
    %v2992 = vpop.f32.mrb[0].mxu0
    %v2993 = vadd.f32 0.0, %v2992
    %v2994 = vpop.f32.mrb[0].mxu0
    %2995 = vdwg.mxu0
    %v2996 = vadd.f32 %v2925, %v2993
    %v2997 = vxor.u32 %v2996, 2147483648
    %v2998 = vmul.f32 %v2997, 1.442695
    %v2999 = vpow.pop %v2998
    %v3000 = vadd.f32 %v2999, 1.0
    %v3001 = vrcp.pop %v3000
    %v3002 = vmul.f32 1.0, %v3001
    %v3003 = vsub.f32 1.0, %v3002
    %v3005 = vrot.slane %v2925, 2
    %v3007 = vtanh.pop %v3005
    %v3008 = vmul.f32 %v3002, %v3007
    %v3009 = vmul.f32 %v3003, %v2671
    %v3010 = vadd.f32 %v3008, %v3009
    %3011 = vmatprep.subr.mxu0 0.0
    %3012 = vmatpush1.msra.mxu0 %v367
    %3013 = vmatprep.subr.mxu0 0.0
    %3014 = vmatpush1.msra.mxu0 %v368
    %3015 = vmatprep.subr.mxu0 0.0
    %3016 = vmatpush1.msra.mxu0 %v369
    %3017 = vmatprep.subr.mxu0 0.0
    %3018 = vmatpush1.msra.mxu0 %v370
    %3019 = vmatprep.subr.mxu0 0.0
    %3020 = vmatpush1.msra.mxu0 %v371
    %3021 = vmatprep.subr.mxu0 0.0
    %3022 = vmatpush1.msra.mxu0 %v372
    %3023 = vmatprep.subr.mxu0 0.0
    %3024 = vmatpush1.msra.mxu0 %v373
    %3025 = vmatprep.subr.mxu0 0.0
    %3026 = vmatpush1.msra.mxu0 %v374
    %3027 = vmatprep.subr.mxu0 0.0
    %3028 = vmatpush1.msra.mxu0 %v375
    %3029 = vmatprep.subr.mxu0 0.0
    %3030 = vmatpush1.msra.mxu0 %v376
    %3031 = vmatprep.subr.mxu0 0.0
    %3032 = vmatpush1.msra.mxu0 %v377
    %3033 = vmatprep.subr.mxu0 0.0
    %3034 = vmatpush1.msra.mxu0 %v378
    %3035 = vmatprep.subr.mxu0 0.0
    %3036 = vmatpush1.msra.mxu0 %v379
    %3037 = vmatprep.subr.mxu0 0.0
    %3038 = vmatpush1.msra.mxu0 %v380
    %3039 = vmatprep.subr.mxu0 0.0
    %3040 = vmatpush1.msra.mxu0 %v381
    %3041 = vmatprep.subr.mxu0 0.0
    %3042 = vmatpush1.msra.mxu0 %v382
    %3043 = vmatprep.subr.mxu0 0.0
    %3044 = vmatpush1.msra.mxu0 0.0
    %3045 = vmatprep.subr.mxu0 0.0
    %3046 = vmatpush1.msra.mxu0 0.0
    %3047 = vmatprep.subr.mxu0 0.0
    %3048 = vmatpush1.msra.mxu0 0.0
    %3049 = vmatprep.subr.mxu0 0.0
    %3050 = vmatpush1.msra.mxu0 0.0
    %3051 = vmatprep.subr.mxu0 0.0
    %3052 = vmatpush1.msra.mxu0 0.0
    %3053 = vmatprep.subr.mxu0 0.0
    %3054 = vmatpush1.msra.mxu0 0.0
    %3055 = vmatprep.subr.mxu0 0.0
    %3056 = vmatpush1.msra.mxu0 0.0
    %3057 = vmatprep.subr.mxu0 0.0
    %3058 = vmatpush1.msra.mxu0 0.0
    %3059 = vmatprep.subr.mxu0 0.0
    %3060 = vmatpush1.msra.mxu0 0.0
    %3061 = vmatprep.subr.mxu0 0.0
    %3062 = vmatpush1.msra.mxu0 0.0
    %3063 = vmatprep.subr.mxu0 0.0
    %3064 = vmatpush1.msra.mxu0 0.0
    %3065 = vmatprep.subr.mxu0 0.0
    %3066 = vmatpush1.msra.mxu0 0.0
    %3067 = vmatprep.subr.mxu0 0.0
    %3068 = vmatpush1.msra.mxu0 0.0
    %3069 = vmatprep.subr.mxu0 0.0
    %3070 = vmatpush1.msra.mxu0 0.0
    %3071 = vmatprep.subr.mxu0 0.0
    %3072 = vmatpush1.msra.mxu0 0.0
    %3073 = vmatprep.subr.mxu0 0.0
    %3074 = vmatpush1.msra.mxu0 0.0
    %3075 = vmatprep.mubr.f32.mxu0 0.0
    %3076 = vmatmul.mubr.f32.gmra.mrb[0].mxu0 %v3010
    %v3077 = vpop.f32.mrb[0].mxu0
    %v3078 = vadd.f32 0.0, %v3077
    %v3079 = vpop.f32.mrb[0].mxu0
    %3080 = vdwg.mxu0
    %v3081 = vrot.slane %v2925, 1
    %v3083 = vadd.f32 %v3081, %v3078
    %v3084 = vxor.u32 %v3083, 2147483648
    %v3085 = vmul.f32 %v3084, 1.442695
    %v3086 = vpow.pop %v3085
    %v3087 = vadd.f32 %v3086, 1.0
    %v3088 = vrcp.pop %v3087
    %v3089 = vmul.f32 1.0, %v3088
    %v3090 = vtanh.pop %v3010
    %v3091 = vmul.f32 %v3089, %v3090
    %3092 = vst [vmem:[#allocation12 + $0x7] sm:$0x1] %v3091
    %3093 = vst [vmem:[#allocation13 + $0x7] sm:$0x1] %v3010
    // Predicated region
    $region46: #{tpu_custom_call.1} parent=1 // pred_check
      _
    $region47: #{tpu_custom_call.1} parent=1 // pred_check_branch
      %3095 = sbr.rel (0) target = $region49
    $region48: #{tpu_custom_call.1} parent=1 // pred_region
      %s3097 = ssub.s32 128, 128
      %3098 = vsyncadd [#allocation5], %s3097
      %s3100 = sshll.u32 [#allocation12], 4
      %s3101 = int_to_ptr.vmem [resolvable:$true] %s3100
      %3103 = dma.vmem_to_hbm [thread:$0]  %s3101, 128, %s6, [#allocation5]
    $region49: #{tpu_custom_call.1} parent=1 // pred_fallthru
      _
    // Predicated region
    $region50: #{tpu_custom_call.1} parent=1 // pred_check
      _
    $region51: #{tpu_custom_call.1} parent=1 // pred_check_branch
      %3105 = sbr.rel (0) target = $region53
    $region52: #{tpu_custom_call.1} parent=1 // pred_region
      %s3107 = ssub.s32 128, 128
      %3108 = vsyncadd [#allocation14], %s3107
      %s3110 = sshll.u32 [#allocation13], 4
      %s3111 = int_to_ptr.vmem [resolvable:$true] %s3110
      %3113 = dma.vmem_to_hbm [thread:$0]  %s3111, 128, %s7, [#allocation14]
    $region53: #{tpu_custom_call.1} parent=1 // pred_fallthru
      _
    // Predicated region
    $region54: #{tpu_custom_call.1} parent=1 // pred_check
      _
    $region55: #{tpu_custom_call.1} parent=1 // pred_check_branch
      %3115 = sbr.rel (0) target = $region57
    $region56: #{tpu_custom_call.1} parent=1 // pred_region
      %3116 = dma.done [#allocation5], 128
    $region57: #{tpu_custom_call.1} parent=1 // pred_fallthru
      _
    // Predicated region
    $region58: #{tpu_custom_call.1} parent=1 // pred_check
      _
    $region59: #{tpu_custom_call.1} parent=1 // pred_check_branch
      %3118 = sbr.rel (0) target = $region61
    $region60: #{tpu_custom_call.1} parent=1 // pred_region
      %3119 = dma.done [#allocation14], 128
    $region61: #{tpu_custom_call.1} parent=1 // pred_fallthru
      _
    %3120 = vsyncpa [#allocation4], 1
    %3121 = vsyncpa [#allocation7], 1
    %3122 = vsyncpa [#allocation10], 1
    %3123 = vsyncpa [#allocation5], 1
    %3124 = vsyncpa [#allocation14], 1

</llo_original>
